<compile_context>
chip_gen: v5e
topology: v5e:2x2
jax: 0.10.0
libtpu: 0.0.40
codegen_flags: <defaults>
</compile_context>

<pallas_src>
import functools

import jax
import jax.numpy as jnp
import numpy as np
from jax.experimental import pallas as pl
from jax.experimental.pallas import tpu as pltpu


# ----------------------------- Pallas kernel --------------------------------


def _stnkd_fused_kernel(x_ref, w1_ref, b1_ref, w2_ref, b2_ref, w3_ref, b3_ref,
                        w4_ref, b4_ref, w5_ref, b5_ref, w6_ref, b6_ref,
                        o_ref, acc_ref, *, k):
    """Grid = (B, N_tiles).  Per step: per-point MLP on one N tile, running max.

    On the last N tile: FC head (fc1/fc2/fc3 + folded BN + ReLU) on the pooled
    (1, 1024) row, add flattened identity, write (1, 1, k*k) output.
    MXU matmuls run in bf16 with f32 accumulation; elementwise tail is f32.
    """
    n = pl.program_id(1)
    n_last = pl.num_programs(1) - 1

    @pl.when(n == 0)
    def _():
        acc_ref[...] = jnp.full_like(acc_ref, -jnp.inf)

    x = x_ref[0]  # (N_tile, k) bf16
    h = jnp.dot(x, w1_ref[...], preferred_element_type=jnp.float32) + b1_ref[...]
    h = jnp.maximum(h, 0.0)
    h = jnp.dot(h.astype(jnp.bfloat16), w2_ref[...],
                preferred_element_type=jnp.float32) + b2_ref[...]
    h = jnp.maximum(h, 0.0)
    h = jnp.dot(h.astype(jnp.bfloat16), w3_ref[...],
                preferred_element_type=jnp.float32) + b3_ref[...]
    h = jnp.maximum(h, 0.0)

    # running max over points (f32)
    acc_ref[...] = jnp.maximum(acc_ref[...], jnp.max(h, axis=0, keepdims=True))

    @pl.when(n == n_last)
    def _():
        pooled = acc_ref[...].astype(jnp.bfloat16)  # (1, 1024)
        g = jnp.dot(pooled, w4_ref[...],
                    preferred_element_type=jnp.float32) + b4_ref[...]
        g = jnp.maximum(g, 0.0)
        g = jnp.dot(g.astype(jnp.bfloat16), w5_ref[...],
                    preferred_element_type=jnp.float32) + b5_ref[...]
        g = jnp.maximum(g, 0.0)
        out = jnp.dot(g.astype(jnp.bfloat16), w6_ref[...],
                      preferred_element_type=jnp.float32) + b6_ref[...]
        # identity eye(k) flattened: position j is 1 iff j % (k+1) == 0
        j = jax.lax.broadcasted_iota(jnp.int32, out.shape, dimension=1)
        iden = jnp.where(j % (k + 1) == 0, 1.0, 0.0).astype(out.dtype)
        o_ref[0] = out + iden


# ------------------------------- wrapper -------------------------------------


def _const_spec(shape):
    # full-array block, constant index map (stays VMEM-resident across the grid)
    return pl.BlockSpec(shape, lambda *_: tuple(0 for _ in shape))


def stnkd_forward(x_bnk, params, k):
    """x_bnk: (B, N, k) float32. Returns (B, k, k) float32."""
    B, N, K = x_bnk.shape
    assert K == k
    (w1, b1, w2, b2, w3, b3, w4, b4, w5, b5, w6, b6) = params

    # Choose an N tile that fills the 256-wide MXU M dimension when possible.
    if N % 256 == 0:
        n_tile = 256
    elif N % 128 == 0:
        n_tile = 128
    else:
        n_tile = N  # TODO(synk): pad + mask (-inf) for N not a multiple of the tile
    num_n = N // n_tile

    # bf16 MXU operands; biases (and all accumulation) stay f32.
    x_bf = x_bnk.astype(jnp.bfloat16)
    w1b, w2b, w3b, w4b, w5b, w6b = (
        w.astype(jnp.bfloat16) for w in (w1, w2, w3, w4, w5, w6))

    flops = (2 * B * N * (K * 64 + 64 * 128 + 128 * 1024)
             + 2 * B * (1024 * 512 + 512 * 256 + 256 * k * k))
    bytes_accessed = (x_bf.size * 2
                      + sum(w.size * 2 for w in (w1b, w2b, w3b, w4b, w5b, w6b))
                      + sum(b.size * 4 for b in (b1, b2, b3, b4, b5, b6))
                      + B * k * k * 4)

    out = pl.pallas_call(
        functools.partial(_stnkd_fused_kernel, k=k),
        out_shape=jax.ShapeDtypeStruct((B, 1, k * k), jnp.float32),
        grid_spec=pltpu.PrefetchScalarGridSpec(
            num_scalar_prefetch=0,
            grid=(B, num_n),
            in_specs=[
                pl.BlockSpec((1, n_tile, K), lambda b, n: (b, n, 0)),
                _const_spec(w1b.shape), _const_spec(b1.shape),
                _const_spec(w2b.shape), _const_spec(b2.shape),
                _const_spec(w3b.shape), _const_spec(b3.shape),
                _const_spec(w4b.shape), _const_spec(b4.shape),
                _const_spec(w5b.shape), _const_spec(b5.shape),
                _const_spec(w6b.shape), _const_spec(b6.shape),
            ],
            out_specs=pl.BlockSpec((1, 1, k * k), lambda b, n: (b, 0, 0)),
            scratch_shapes=[pltpu.VMEM((1, 1024), jnp.float32)],
        ),
        compiler_params=pltpu.CompilerParams(
            dimension_semantics=("parallel", "arbitrary")),
        cost_estimate=pl.CostEstimate(
            flops=flops, transcendentals=0, bytes_accessed=bytes_accessed),
    )(x_bf, w1b, b1, w2b, b2, w3b, b3, w4b, b4, w5b, b5, w6b, b6)

    return out.reshape(B, k, k)


# ------------------------- deterministic parameters --------------------------


def _fold_bn(w, b, gamma, beta, mean, var, eps=1e-5):
    """Fold eval-mode BatchNorm into preceding (in,out) weight + (1,out) bias."""
    scale = gamma / jnp.sqrt(var + eps)  # (out,)
    w_f = w * scale[None, :]
    b_f = (b - mean) * scale + beta
    return w_f.astype(jnp.float32), b_f[None, :].astype(jnp.float32)


def make_params(k, key):
    dims = [(k, 64), (64, 128), (128, 1024), (1024, 512), (512, 256),
            (256, k * k)]
    has_bn = [True, True, True, True, True, False]
    params = []
    for (cin, cout), bn in zip(dims, has_bn):
        key, kw, kb, kg, kbeta, km, kv = jax.random.split(key, 7)
        w = jax.random.normal(kw, (cin, cout), jnp.float32) * 0.05
        b = jax.random.normal(kb, (cout,), jnp.float32) * 0.05
        if bn:
            gamma = 1.0 + 0.1 * jax.random.normal(kg, (cout,), jnp.float32)
            beta = 0.1 * jax.random.normal(kbeta, (cout,), jnp.float32)
            mean = 0.1 * jax.random.normal(km, (cout,), jnp.float32)
            var = jnp.abs(jax.random.normal(kv, (cout,), jnp.float32)) + 0.5
            w, b2 = _fold_bn(w, b, gamma, beta, mean, var)
            params.extend([w, b2])
        else:
            params.extend([w, b[None, :].astype(jnp.float32)])
    return params


def reference_forward(x_bnk, params, k):
    """Pure-JAX f32 reference for validation."""
    (w1, b1, w2, b2, w3, b3, w4, b4, w5, b5, w6, b6) = params
    B = x_bnk.shape[0]
    h = jnp.maximum(x_bnk @ w1 + b1, 0.0)
    h = jnp.maximum(h @ w2 + b2, 0.0)
    h = jnp.maximum(h @ w3 + b3, 0.0)
    pooled = jnp.max(h, axis=1)  # (B, 1024)
    h = jnp.maximum(pooled @ w4 + b4, 0.0)
    h = jnp.maximum(h @ w5 + b5, 0.0)
    out = h @ w6 + b6 + jnp.eye(k, dtype=jnp.float32).reshape(1, k * k)
    return out.reshape(B, k, k)


if __name__ == "__main__":
    k = 16         # STNkd(k=16) -- small, lane-friendly
    B, N = 2, 512  # batch of 2 point clouds, 512 points each (2 N-tiles of 256)

    key = jax.random.PRNGKey(0)
    key, kx = jax.random.split(key)
    # PyTorch input would be (B, k, N); kernel layout is (B, N, k).
    x_bkn = jax.random.normal(kx, (B, k, N), jnp.float32)
    x_bnk = jnp.transpose(x_bkn, (0, 2, 1))

    params = make_params(k, key)

    out = stnkd_forward(x_bnk, params, k)
    out = jax.block_until_ready(out)

    ref = reference_forward(x_bnk, params, k)
    # bf16 MXU operands vs. f32 reference -> loosened tolerance.
    np.testing.assert_allclose(np.asarray(out), np.asarray(ref),
                               rtol=5e-2, atol=5e-2)
    assert out.shape == (B, k, k)
    print("KERNEL_OK")
</pallas_src>

<mosaic_0001>
module attributes {stable_mosaic.version = 11 : i64} {
  func.func @_stnkd_fused_kernel(%arg0: i32, %arg1: i32, %arg2: memref<1x256x16xbf16, #tpu.memory_space<vmem>>, %arg3: memref<16x64xbf16, #tpu.memory_space<vmem>>, %arg4: memref<1x64xf32, #tpu.memory_space<vmem>>, %arg5: memref<64x128xbf16, #tpu.memory_space<vmem>>, %arg6: memref<1x128xf32, #tpu.memory_space<vmem>>, %arg7: memref<128x1024xbf16, #tpu.memory_space<vmem>>, %arg8: memref<1x1024xf32, #tpu.memory_space<vmem>>, %arg9: memref<1024x512xbf16, #tpu.memory_space<vmem>>, %arg10: memref<1x512xf32, #tpu.memory_space<vmem>>, %arg11: memref<512x256xbf16, #tpu.memory_space<vmem>>, %arg12: memref<1x256xf32, #tpu.memory_space<vmem>>, %arg13: memref<256x256xbf16, #tpu.memory_space<vmem>>, %arg14: memref<1x256xf32, #tpu.memory_space<vmem>>, %arg15: memref<1x1x256xf32, #tpu.memory_space<vmem>>, %arg16: memref<1x1024xf32, #tpu.memory_space<vmem>>) attributes {dimension_semantics = [#tpu.dimension_semantics<parallel>, #tpu.dimension_semantics<arbitrary>], iteration_bounds = array<i64: 2, 2>, scalar_prefetch = 0 : i64, scratch_operands = 1 : i64, tpu.core_type = #tpu.core_type<tc>, window_params = [{transform_indices = @transform_0, window_bounds = array<i64: 1, 256, 16>}, {pipeline_mode = #tpu.pipeline_mode<synchronous>, transform_indices = @transform_1, window_bounds = array<i64: 16, 64>}, {pipeline_mode = #tpu.pipeline_mode<synchronous>, transform_indices = @transform_2, window_bounds = array<i64: 1, 64>}, {pipeline_mode = #tpu.pipeline_mode<synchronous>, transform_indices = @transform_3, window_bounds = array<i64: 64, 128>}, {pipeline_mode = #tpu.pipeline_mode<synchronous>, transform_indices = @transform_4, window_bounds = array<i64: 1, 128>}, {pipeline_mode = #tpu.pipeline_mode<synchronous>, transform_indices = @transform_5, window_bounds = array<i64: 128, 1024>}, {pipeline_mode = #tpu.pipeline_mode<synchronous>, transform_indices = @transform_6, window_bounds = array<i64: 1, 1024>}, {pipeline_mode = #tpu.pipeline_mode<synchronous>, transform_indices = @transform_7, window_bounds = array<i64: 1024, 512>}, {pipeline_mode = #tpu.pipeline_mode<synchronous>, transform_indices = @transform_8, window_bounds = array<i64: 1, 512>}, {pipeline_mode = #tpu.pipeline_mode<synchronous>, transform_indices = @transform_9, window_bounds = array<i64: 512, 256>}, {pipeline_mode = #tpu.pipeline_mode<synchronous>, transform_indices = @transform_10, window_bounds = array<i64: 1, 256>}, {pipeline_mode = #tpu.pipeline_mode<synchronous>, transform_indices = @transform_11, window_bounds = array<i64: 256, 256>}, {pipeline_mode = #tpu.pipeline_mode<synchronous>, transform_indices = @transform_12, window_bounds = array<i64: 1, 256>}, {transform_indices = @transform_13, window_bounds = array<i64: 1, 1, 256>}]} {
    %c0_i32 = arith.constant 0 : i32
    %0 = arith.cmpi eq, %arg1, %c0_i32 : i32
    %1 = arith.extui %0 : i1 to i32
    %c0_i32_0 = arith.constant 0 : i32
    %2 = arith.cmpi ne, %1, %c0_i32_0 : i32
    scf.if %2 {
      %cst_26 = arith.constant 0xFF800000 : f32
      %36 = vector.broadcast %cst_26 : f32 to vector<1x1024xf32>
      %c0_27 = arith.constant 0 : index
      %c0_28 = arith.constant 0 : index
      %37 = vector.load %arg16[%c0_27, %c0_28] : memref<1x1024xf32, #tpu.memory_space<vmem>>, vector<1x1024xf32>
      tpu.vector_store %arg16[%c0_27, %c0_28], %36 {strides = array<i32>} : memref<1x1024xf32, #tpu.memory_space<vmem>>, vector<1x1024xf32>,
    } else {
    }
    %c0 = arith.constant 0 : index
    %c0_1 = arith.constant 0 : index
    %c0_2 = arith.constant 0 : index
    %3 = vector.load %arg2[%c0, %c0_1, %c0_2] : memref<1x256x16xbf16, #tpu.memory_space<vmem>>, vector<1x256x16xbf16>
    %4 = vector.shape_cast %3 : vector<1x256x16xbf16> to vector<256x16xbf16>
    %c0_3 = arith.constant 0 : index
    %c0_4 = arith.constant 0 : index
    %5 = vector.load %arg3[%c0_3, %c0_4] : memref<16x64xbf16, #tpu.memory_space<vmem>>, vector<16x64xbf16>
    %cst = arith.constant dense<0.000000e+00> : vector<256x64xf32>
    %6 = tpu.matmul %4, %5, %cst {dimension_numbers = #tpu.dot_dimension_numbers<[1], [0], [0], [1], [0, 0, 1, 1], [], []>} : vector<256x16xbf16>, vector<16x64xbf16>, vector<256x64xf32> -> vector<256x64xf32>
    %c0_5 = arith.constant 0 : index
    %c0_6 = arith.constant 0 : index
    %7 = vector.load %arg4[%c0_5, %c0_6] : memref<1x64xf32, #tpu.memory_space<vmem>>, vector<1x64xf32>
    %8 = vector.broadcast %7 : vector<1x64xf32> to vector<256x64xf32>
    %9 = arith.addf %6, %8 : vector<256x64xf32>
    %cst_7 = arith.constant 0.000000e+00 : f32
    %10 = vector.broadcast %cst_7 : f32 to vector<256x64xf32>
    %11 = arith.maximumf %9, %10 : vector<256x64xf32>
    %12 = arith.truncf %11 : vector<256x64xf32> to vector<256x64xbf16>
    %c0_8 = arith.constant 0 : index
    %c0_9 = arith.constant 0 : index
    %13 = vector.load %arg5[%c0_8, %c0_9] : memref<64x128xbf16, #tpu.memory_space<vmem>>, vector<64x128xbf16>
    %cst_10 = arith.constant dense<0.000000e+00> : vector<256x128xf32>
    %14 = tpu.matmul %12, %13, %cst_10 {dimension_numbers = #tpu.dot_dimension_numbers<[1], [0], [0], [1], [0, 0, 1, 1], [], []>} : vector<256x64xbf16>, vector<64x128xbf16>, vector<256x128xf32> -> vector<256x128xf32>
    %c0_11 = arith.constant 0 : index
    %c0_12 = arith.constant 0 : index
    %15 = vector.load %arg6[%c0_11, %c0_12] : memref<1x128xf32, #tpu.memory_space<vmem>>, vector<1x128xf32>
    %16 = vector.broadcast %15 : vector<1x128xf32> to vector<256x128xf32>
    %17 = arith.addf %14, %16 : vector<256x128xf32>
    %cst_13 = arith.constant 0.000000e+00 : f32
    %18 = vector.broadcast %cst_13 : f32 to vector<256x128xf32>
    %19 = arith.maximumf %17, %18 : vector<256x128xf32>
    %20 = arith.truncf %19 : vector<256x128xf32> to vector<256x128xbf16>
    %c0_14 = arith.constant 0 : index
    %c0_15 = arith.constant 0 : index
    %21 = vector.load %arg7[%c0_14, %c0_15] : memref<128x1024xbf16, #tpu.memory_space<vmem>>, vector<128x1024xbf16>
    %cst_16 = arith.constant dense<0.000000e+00> : vector<256x1024xf32>
    %22 = tpu.matmul %20, %21, %cst_16 {dimension_numbers = #tpu.dot_dimension_numbers<[1], [0], [0], [1], [0, 0, 1, 1], [], []>} : vector<256x128xbf16>, vector<128x1024xbf16>, vector<256x1024xf32> -> vector<256x1024xf32>
    %c0_17 = arith.constant 0 : index
    %c0_18 = arith.constant 0 : index
    %23 = vector.load %arg8[%c0_17, %c0_18] : memref<1x1024xf32, #tpu.memory_space<vmem>>, vector<1x1024xf32>
    %24 = vector.broadcast %23 : vector<1x1024xf32> to vector<256x1024xf32>
    %25 = arith.addf %22, %24 : vector<256x1024xf32>
    %cst_19 = arith.constant 0.000000e+00 : f32
    %26 = vector.broadcast %cst_19 : f32 to vector<256x1024xf32>
    %27 = arith.maximumf %25, %26 : vector<256x1024xf32>
    %c0_20 = arith.constant 0 : index
    %c0_21 = arith.constant 0 : index
    %28 = vector.load %arg16[%c0_20, %c0_21] : memref<1x1024xf32, #tpu.memory_space<vmem>>, vector<1x1024xf32>
    %cst_22 = arith.constant dense<0xFF800000> : vector<1024xf32>
    %29 = vector.multi_reduction <maximumf>, %27, %cst_22 [0] : vector<256x1024xf32> to vector<1024xf32>
    %30 = vector.shape_cast %29 : vector<1024xf32> to vector<1x1024xf32>
    %31 = arith.maximumf %28, %30 : vector<1x1024xf32>
    %c0_23 = arith.constant 0 : index
    %c0_24 = arith.constant 0 : index
    %32 = vector.load %arg16[%c0_23, %c0_24] : memref<1x1024xf32, #tpu.memory_space<vmem>>, vector<1x1024xf32>
    tpu.vector_store %arg16[%c0_23, %c0_24], %31 {strides = array<i32>} : memref<1x1024xf32, #tpu.memory_space<vmem>>, vector<1x1024xf32>,
    %c1_i32 = arith.constant 1 : i32
    %33 = arith.cmpi eq, %arg1, %c1_i32 : i32
    %34 = arith.extui %33 : i1 to i32
    %c0_i32_25 = arith.constant 0 : i32
    %35 = arith.cmpi ne, %34, %c0_i32_25 : i32
    scf.if %35 {
      %c0_26 = arith.constant 0 : index
      %c0_27 = arith.constant 0 : index
      %36 = vector.load %arg16[%c0_26, %c0_27] : memref<1x1024xf32, #tpu.memory_space<vmem>>, vector<1x1024xf32>
      %37 = arith.truncf %36 : vector<1x1024xf32> to vector<1x1024xbf16>
      %c0_28 = arith.constant 0 : index
      %c0_29 = arith.constant 0 : index
      %38 = vector.load %arg9[%c0_28, %c0_29] : memref<1024x512xbf16, #tpu.memory_space<vmem>>, vector<1024x512xbf16>
      %cst_30 = arith.constant dense<0.000000e+00> : vector<1x512xf32>
      %39 = tpu.matmul %37, %38, %cst_30 {dimension_numbers = #tpu.dot_dimension_numbers<[1], [0], [0], [1], [0, 0, 1, 1], [], []>} : vector<1x1024xbf16>, vector<1024x512xbf16>, vector<1x512xf32> -> vector<1x512xf32>
      %c0_31 = arith.constant 0 : index
      %c0_32 = arith.constant 0 : index
      %40 = vector.load %arg10[%c0_31, %c0_32] : memref<1x512xf32, #tpu.memory_space<vmem>>, vector<1x512xf32>
      %41 = arith.addf %39, %40 : vector<1x512xf32>
      %cst_33 = arith.constant 0.000000e+00 : f32
      %42 = vector.broadcast %cst_33 : f32 to vector<1x512xf32>
      %43 = arith.maximumf %41, %42 : vector<1x512xf32>
      %44 = arith.truncf %43 : vector<1x512xf32> to vector<1x512xbf16>
      %c0_34 = arith.constant 0 : index
      %c0_35 = arith.constant 0 : index
      %45 = vector.load %arg11[%c0_34, %c0_35] : memref<512x256xbf16, #tpu.memory_space<vmem>>, vector<512x256xbf16>
      %cst_36 = arith.constant dense<0.000000e+00> : vector<1x256xf32>
      %46 = tpu.matmul %44, %45, %cst_36 {dimension_numbers = #tpu.dot_dimension_numbers<[1], [0], [0], [1], [0, 0, 1, 1], [], []>} : vector<1x512xbf16>, vector<512x256xbf16>, vector<1x256xf32> -> vector<1x256xf32>
      %c0_37 = arith.constant 0 : index
      %c0_38 = arith.constant 0 : index
      %47 = vector.load %arg12[%c0_37, %c0_38] : memref<1x256xf32, #tpu.memory_space<vmem>>, vector<1x256xf32>
      %48 = arith.addf %46, %47 : vector<1x256xf32>
      %cst_39 = arith.constant 0.000000e+00 : f32
      %49 = vector.broadcast %cst_39 : f32 to vector<1x256xf32>
      %50 = arith.maximumf %48, %49 : vector<1x256xf32>
      %51 = arith.truncf %50 : vector<1x256xf32> to vector<1x256xbf16>
      %c0_40 = arith.constant 0 : index
      %c0_41 = arith.constant 0 : index
      %52 = vector.load %arg13[%c0_40, %c0_41] : memref<256x256xbf16, #tpu.memory_space<vmem>>, vector<256x256xbf16>
      %cst_42 = arith.constant dense<0.000000e+00> : vector<1x256xf32>
      %53 = tpu.matmul %51, %52, %cst_42 {dimension_numbers = #tpu.dot_dimension_numbers<[1], [0], [0], [1], [0, 0, 1, 1], [], []>} : vector<1x256xbf16>, vector<256x256xbf16>, vector<1x256xf32> -> vector<1x256xf32>
      %c0_43 = arith.constant 0 : index
      %c0_44 = arith.constant 0 : index
      %54 = vector.load %arg14[%c0_43, %c0_44] : memref<1x256xf32, #tpu.memory_space<vmem>>, vector<1x256xf32>
      %55 = arith.addf %53, %54 : vector<1x256xf32>
      %56 = tpu.iota {dimensions = array<i32: 1>} : vector<1x256xi32>
      %c17_i32 = arith.constant 17 : i32
      %c0_i32_45 = arith.constant 0 : i32
      %57 = arith.cmpi eq, %c17_i32, %c0_i32_45 : i32
      %c1_i32_46 = arith.constant 1 : i32
      %58 = arith.select %57, %c1_i32_46, %c17_i32 : i32
      %59 = vector.broadcast %58 : i32 to vector<1x256xi32>
      %60 = arith.remsi %56, %59 : vector<1x256xi32>
      %c0_i32_47 = arith.constant 0 : i32
      %61 = vector.broadcast %c0_i32_47 : i32 to vector<1x256xi32>
      %62 = arith.cmpi ne, %60, %61 : vector<1x256xi32>
      %c0_i32_48 = arith.constant 0 : i32
      %63 = vector.broadcast %c0_i32_48 : i32 to vector<1x256xi32>
      %64 = arith.cmpi slt, %60, %63 : vector<1x256xi32>
      %c0_i32_49 = arith.constant 0 : i32
      %65 = arith.cmpi slt, %58, %c0_i32_49 : i32
      %66 = vector.broadcast %65 : i1 to vector<1x256xi1>
      %67 = vector.broadcast %66 : vector<1x256xi1> to vector<1x256xi1>
      %68 = arith.xori %64, %67 : vector<1x256xi1>
      %69 = arith.andi %68, %62 : vector<1x256xi1>
      %70 = vector.broadcast %58 : i32 to vector<1x256xi32>
      %71 = arith.addi %60, %70 : vector<1x256xi32>
      %72 = arith.select %69, %71, %60 : vector<1x256xi1>, vector<1x256xi32>
      %c0_i32_50 = arith.constant 0 : i32
      %73 = vector.broadcast %c0_i32_50 : i32 to vector<1x256xi32>
      %74 = arith.cmpi eq, %72, %73 : vector<1x256xi32>
      %cst_51 = arith.constant 1.000000e+00 : f32
      %cst_52 = arith.constant 0.000000e+00 : f32
      %75 = vector.broadcast %cst_51 : f32 to vector<1x256xf32>
      %76 = vector.broadcast %cst_52 : f32 to vector<1x256xf32>
      %77 = arith.select %74, %75, %76 : vector<1x256xi1>, vector<1x256xf32>
      %78 = arith.addf %55, %77 : vector<1x256xf32>
      %c0_53 = arith.constant 0 : index
      %c0_54 = arith.constant 0 : index
      %c0_55 = arith.constant 0 : index
      %79 = vector.load %arg15[%c0_53, %c0_54, %c0_55] : memref<1x1x256xf32, #tpu.memory_space<vmem>>, vector<1x1x256xf32>
      %80 = vector.shape_cast %79 : vector<1x1x256xf32> to vector<1x256xf32>
      %81 = vector.shape_cast %78 : vector<1x256xf32> to vector<1x1x256xf32>
      tpu.vector_store %arg15[%c0_53, %c0_54, %c0_55], %81 {strides = array<i32>} : memref<1x1x256xf32, #tpu.memory_space<vmem>>, vector<1x1x256xf32>,
    } else {
    }
    return
  }
  func.func @transform_0(%arg0: i32, %arg1: i32) -> (i32, i32, i32) {
    %c0_i32 = arith.constant 0 : i32
    %c0_i32_0 = arith.constant 0 : i32
    return %arg0, %arg1, %c0_i32 : i32, i32, i32
  }
  func.func @transform_1(%arg0: i32, %arg1: i32) -> (i32, i32) {
    %c0_i32 = arith.constant 0 : i32
    %c0_i32_0 = arith.constant 0 : i32
    %c0_i32_1 = arith.constant 0 : i32
    return %c0_i32, %c0_i32_0 : i32, i32
  }
  func.func @transform_2(%arg0: i32, %arg1: i32) -> (i32, i32) {
    %c0_i32 = arith.constant 0 : i32
    %c0_i32_0 = arith.constant 0 : i32
    %c0_i32_1 = arith.constant 0 : i32
    return %c0_i32, %c0_i32_0 : i32, i32
  }
  func.func @transform_3(%arg0: i32, %arg1: i32) -> (i32, i32) {
    %c0_i32 = arith.constant 0 : i32
    %c0_i32_0 = arith.constant 0 : i32
    %c0_i32_1 = arith.constant 0 : i32
    return %c0_i32, %c0_i32_0 : i32, i32
  }
  func.func @transform_4(%arg0: i32, %arg1: i32) -> (i32, i32) {
    %c0_i32 = arith.constant 0 : i32
    %c0_i32_0 = arith.constant 0 : i32
    %c0_i32_1 = arith.constant 0 : i32
    return %c0_i32, %c0_i32_0 : i32, i32
  }
  func.func @transform_5(%arg0: i32, %arg1: i32) -> (i32, i32) {
    %c0_i32 = arith.constant 0 : i32
    %c0_i32_0 = arith.constant 0 : i32
    %c0_i32_1 = arith.constant 0 : i32
    return %c0_i32, %c0_i32_0 : i32, i32
  }
  func.func @transform_6(%arg0: i32, %arg1: i32) -> (i32, i32) {
    %c0_i32 = arith.constant 0 : i32
    %c0_i32_0 = arith.constant 0 : i32
    %c0_i32_1 = arith.constant 0 : i32
    return %c0_i32, %c0_i32_0 : i32, i32
  }
  func.func @transform_7(%arg0: i32, %arg1: i32) -> (i32, i32) {
    %c0_i32 = arith.constant 0 : i32
    %c0_i32_0 = arith.constant 0 : i32
    %c0_i32_1 = arith.constant 0 : i32
    return %c0_i32, %c0_i32_0 : i32, i32
  }
  func.func @transform_8(%arg0: i32, %arg1: i32) -> (i32, i32) {
    %c0_i32 = arith.constant 0 : i32
    %c0_i32_0 = arith.constant 0 : i32
    %c0_i32_1 = arith.constant 0 : i32
    return %c0_i32, %c0_i32_0 : i32, i32
  }
  func.func @transform_9(%arg0: i32, %arg1: i32) -> (i32, i32) {
    %c0_i32 = arith.constant 0 : i32
    %c0_i32_0 = arith.constant 0 : i32
    %c0_i32_1 = arith.constant 0 : i32
    return %c0_i32, %c0_i32_0 : i32, i32
  }
  func.func @transform_10(%arg0: i32, %arg1: i32) -> (i32, i32) {
    %c0_i32 = arith.constant 0 : i32
    %c0_i32_0 = arith.constant 0 : i32
    %c0_i32_1 = arith.constant 0 : i32
    return %c0_i32, %c0_i32_0 : i32, i32
  }
  func.func @transform_11(%arg0: i32, %arg1: i32) -> (i32, i32) {
    %c0_i32 = arith.constant 0 : i32
    %c0_i32_0 = arith.constant 0 : i32
    %c0_i32_1 = arith.constant 0 : i32
    return %c0_i32, %c0_i32_0 : i32, i32
  }
  func.func @transform_12(%arg0: i32, %arg1: i32) -> (i32, i32) {
    %c0_i32 = arith.constant 0 : i32
    %c0_i32_0 = arith.constant 0 : i32
    %c0_i32_1 = arith.constant 0 : i32
    return %c0_i32, %c0_i32_0 : i32, i32
  }
  func.func @transform_13(%arg0: i32, %arg1: i32) -> (i32, i32, i32) {
    %c0_i32 = arith.constant 0 : i32
    %c0_i32_0 = arith.constant 0 : i32
    %c0_i32_1 = arith.constant 0 : i32
    return %arg0, %c0_i32, %c0_i32_0 : i32, i32, i32
  }
}

</mosaic_0001>

<llo_original>
// kernel: tpu_custom_call.1
$region0: #{tpu_custom_call.1}
  #allocation0 [shape = 'u32[]', space=smem, size = 0x4, offset = 0x4, fixed_abs, tag = 'smem constant byte address 0x4 - core index']
  #allocation1 [shape = 'u32[72,128]{1,0:T(1,128)}', space=vmem, size = 0x9000, scoped, tag = 'internal scratch']
  #allocation2 [shape = 'f32[1,1024]{1,0:T(1,128)}', space=vmem, size = 0x1000, scoped, tag = 'scratch operand']
  %s0 = inlined_call_operand.vmem [shape: bf16[2,512,16], index: 0, kind: input, shape index: {}]
  %s1 = inlined_call_operand.vmem [shape: bf16[16,64], index: 1, kind: input, shape index: {}]
  %s2 = inlined_call_operand.vmem [shape: f32[1,64], index: 2, kind: input, shape index: {}]
  %s3 = inlined_call_operand.vmem [shape: bf16[64,128], index: 3, kind: input, shape index: {}]
  %s4 = inlined_call_operand.vmem [shape: f32[1,128], index: 4, kind: input, shape index: {}]
  %s5 = inlined_call_operand.vmem [shape: bf16[128,1024], index: 5, kind: input, shape index: {}]
  %s6 = inlined_call_operand.vmem [shape: f32[1,1024], index: 6, kind: input, shape index: {}]
  %s7 = inlined_call_operand.hbm [shape: bf16[1024,512], index: 7, kind: input, shape index: {}]
  %s8 = inlined_call_operand.vmem [shape: f32[1,512], index: 8, kind: input, shape index: {}]
  %s9 = inlined_call_operand.hbm [shape: bf16[512,256], index: 9, kind: input, shape index: {}]
  %s10 = inlined_call_operand.vmem [shape: f32[1,256], index: 10, kind: input, shape index: {}]
  %s11 = inlined_call_operand.hbm [shape: bf16[256,256], index: 11, kind: input, shape index: {}]
  %s12 = inlined_call_operand.vmem [shape: f32[1,256], index: 12, kind: input, shape index: {}]
  %s13 = inlined_call_operand.hbm [shape: f32[2,1,256], index: 13, kind: output, shape index: {}]
  %s14 = sld [smem:[#allocation0]]
  $region105: #{tpu_custom_call.1} parent=0
    _
  %s16 = ssub.s32 1, %s14
  %s17 = scalar_select 0, %s16, %s14
  $region1: #{tpu_custom_call.1} parent=0
    #allocation3 [shape = 'u8[1048576]{0}', space=vmem, size = 0x100000, scoped, tag = 'input window, operand 7, single buffered']
    #allocation4 [shape = 's32[2]{0}', space=sflag, size = 0x8, scoped, tag = 'scoped memory for tpu_custom_call.1']
    #allocation5 [shape = 's32[2]{0}', space=sflag, size = 0x8, scoped, tag = 'scoped memory for tpu_custom_call.1']
    #allocation6 [shape = 'u8[262144]{0}', space=vmem, size = 0x40000, scoped, tag = 'input window, operand 9, single buffered']
    #allocation7 [shape = 's32[1]{0}', space=sflag, size = 0x4, scoped, tag = 'scoped memory for tpu_custom_call.1']
    #allocation8 [shape = 'u8[131072]{0}', space=vmem, size = 0x20000, scoped, tag = 'input window, operand 11, single buffered']
    #allocation9 [shape = 'u8[2048]{0}', space=vmem, size = 0x800, scoped, tag = 'output window, operand 0']
    %18 = vsyncpa [#allocation4], 0
    %19 = vsyncpa [#allocation7], 0
    %20 = vsyncpa [#allocation5], 0
    %s21 = scalar_lea.sflag [#allocation5], 1
    %22 = vsyncpa %s21, 0
    loop: start=0, step=1, limit=6
    $region2: #{tpu_custom_call.1} parent=1 // loop_pre_header
      _
    $region3: #{tpu_custom_call.1} parent=1 // loop_header
      %s24 = sphi 0, %s28
      %p25 = scmp.ge.s32.totalorder %s24, 6
      %s31 = sphi 0, %s43
      %s32 = sphi 0, %s39
      %s33 = sphi 0, %s31
      %s34 = sphi 0, %s32
      %s35 = sphi 0, %s33
      %s36 = sphi 0, %s34
      %s48 = sphi 0, %s50
      %s51 = sphi 0, %s48
      %s52 = sphi 0, %s51
      %s68 = sphi 0, %s52
      %s72 = sphi 0, %s72
      %s74 = sphi 0, %s72
      %s75 = sphi 0, %s74
      %s89 = sphi 0, %s75
      %s93 = sphi 0, %s93
      %s95 = sphi 0, %s93
      %s96 = sphi 0, %s95
      %s110 = sphi 0, %s96
      %s114 = sphi 0, %s114
      %s116 = sphi 0, %s114
      %s117 = sphi 0, %s116
      %s131 = sphi 0, %s117
      %s135 = sphi 0, %s135
      %s137 = sphi 0, %s135
      %s138 = sphi 0, %s137
      %s152 = sphi 0, %s138
      %s156 = sphi 0, %s156
      %s158 = sphi 0, %s156
      %s159 = sphi 0, %s158
      %s173 = sphi 0, %s159
      %s177 = sphi 0, %s177
      %s179 = sphi 0, %s177
      %s180 = sphi 0, %s179
      %s194 = sphi 0, %s180
      %s198 = sphi 0, %s198
      %s200 = sphi 0, %s198
      %s201 = sphi 0, %s200
      %s215 = sphi 0, %s201
      %s219 = sphi 0, %s219
      %s221 = sphi 0, %s219
      %s222 = sphi 0, %s221
      %s236 = sphi 0, %s222
      %s240 = sphi 0, %s240
      %s242 = sphi 0, %s240
      %s243 = sphi 0, %s242
      %s257 = sphi 0, %s243
      %s261 = sphi 0, %s261
      %s263 = sphi 0, %s261
      %s264 = sphi 0, %s263
      %s278 = sphi 0, %s264
      %s282 = sphi 0, %s282
      %s284 = sphi 0, %s282
      %s285 = sphi 0, %s284
      %s299 = sphi 0, %s285
      %s303 = sphi 0, %s303
      %s305 = sphi 0, %s303
      %s306 = sphi 0, %s305
      %s320 = sphi 0, %s306
      %s326 = sphi 0, %s328
      %s329 = sphi 0, %s326
      %s330 = sphi 0, %s329
      %s346 = sphi 0, %s330
    $region4: #{tpu_custom_call.1} parent=1 // loop_header_branch
      %27 = sbr.rel (%p25) target = $region8
    $region5: #{tpu_custom_call.1} parent=1 // loop_body
      %s29 = ssub.s32 %s24, 1
      %s30 = ssub.s32 %s24, 2
      %s37 = sadd.s32 1, %s32
      %p38 = scmp.ge.s32.totalorder %s37, 2
      %s39 = scalar_select %p38, 0, %s37
      %s40 = sadd.s32 1, %s31
      %s41 = scalar_select %p38, %s40, %s31
      %p42 = scmp.ge.s32.totalorder %s41, 2
      %s43 = scalar_select %p42, 0, %s41
      %s44 = ssub.s32 %s31, %s43
      %s45 = ssub.s32 %s32, %s39
      %s46 = sor.u32 %s44, %s45
      %p47 = scmp.eq.s32.totalorder %s46, 0
      %s49 = sadd.s32 %s48, 1
      %s50 = scalar_select %p47, %s48, %s49
      %p53 = pneg %p47
      %p54 = scmp.eq.s32.totalorder %s24, 3
      %p55 = por %p53, %p54
      %p56 = scmp.ne.s32.totalorder %s48, %s51
      %p57 = scmp.eq.s32.totalorder %s24, 0
      %p58 = por %p56, %p57
      %p59 = scmp.ne.s32.totalorder %s48, %s51
      %p60 = scmp.eq.s32.totalorder %s29, 3
      %p61 = por %p59, %p60
      %p62 = scmp.ne.s32.totalorder %s51, %s52
      %p63 = scmp.eq.s32.totalorder %s29, 0
      %p64 = por %p62, %p63
      %p65 = scmp.ne.s32.totalorder %s51, %s52
      %p66 = scmp.eq.s32.totalorder %s30, 3
      %p67 = por %p65, %p66
      %p69 = scmp.ne.s32.totalorder %s52, %s68
      %p70 = scmp.eq.s32.totalorder %s30, 0
      %p71 = por %p69, %p70
      %s73 = sadd.s32 %s72, 1
      %p76 = scmp.eq.s32.totalorder %s24, 3
      %p77 = scmp.ne.s32.totalorder %s72, %s74
      %p78 = scmp.eq.s32.totalorder %s24, 0
      %p79 = por %p77, %p78
      %p80 = scmp.ne.s32.totalorder %s72, %s74
      %p81 = scmp.eq.s32.totalorder %s29, 3
      %p82 = por %p80, %p81
      %p83 = scmp.ne.s32.totalorder %s74, %s75
      %p84 = scmp.eq.s32.totalorder %s29, 0
      %p85 = por %p83, %p84
      %p86 = scmp.ne.s32.totalorder %s74, %s75
      %p87 = scmp.eq.s32.totalorder %s30, 3
      %p88 = por %p86, %p87
      %p90 = scmp.ne.s32.totalorder %s75, %s89
      %p91 = scmp.eq.s32.totalorder %s30, 0
      %p92 = por %p90, %p91
      %s94 = sadd.s32 %s93, 1
      %p97 = scmp.eq.s32.totalorder %s24, 3
      %p98 = scmp.ne.s32.totalorder %s93, %s95
      %p99 = scmp.eq.s32.totalorder %s24, 0
      %p100 = por %p98, %p99
      %p101 = scmp.ne.s32.totalorder %s93, %s95
      %p102 = scmp.eq.s32.totalorder %s29, 3
      %p103 = por %p101, %p102
      %p104 = scmp.ne.s32.totalorder %s95, %s96
      %p105 = scmp.eq.s32.totalorder %s29, 0
      %p106 = por %p104, %p105
      %p107 = scmp.ne.s32.totalorder %s95, %s96
      %p108 = scmp.eq.s32.totalorder %s30, 3
      %p109 = por %p107, %p108
      %p111 = scmp.ne.s32.totalorder %s96, %s110
      %p112 = scmp.eq.s32.totalorder %s30, 0
      %p113 = por %p111, %p112
      %s115 = sadd.s32 %s114, 1
      %p118 = scmp.eq.s32.totalorder %s24, 3
      %p119 = scmp.ne.s32.totalorder %s114, %s116
      %p120 = scmp.eq.s32.totalorder %s24, 0
      %p121 = por %p119, %p120
      %p122 = scmp.ne.s32.totalorder %s114, %s116
      %p123 = scmp.eq.s32.totalorder %s29, 3
      %p124 = por %p122, %p123
      %p125 = scmp.ne.s32.totalorder %s116, %s117
      %p126 = scmp.eq.s32.totalorder %s29, 0
      %p127 = por %p125, %p126
      %p128 = scmp.ne.s32.totalorder %s116, %s117
      %p129 = scmp.eq.s32.totalorder %s30, 3
      %p130 = por %p128, %p129
      %p132 = scmp.ne.s32.totalorder %s117, %s131
      %p133 = scmp.eq.s32.totalorder %s30, 0
      %p134 = por %p132, %p133
      %s136 = sadd.s32 %s135, 1
      %p139 = scmp.eq.s32.totalorder %s24, 3
      %p140 = scmp.ne.s32.totalorder %s135, %s137
      %p141 = scmp.eq.s32.totalorder %s24, 0
      %p142 = por %p140, %p141
      %p143 = scmp.ne.s32.totalorder %s135, %s137
      %p144 = scmp.eq.s32.totalorder %s29, 3
      %p145 = por %p143, %p144
      %p146 = scmp.ne.s32.totalorder %s137, %s138
      %p147 = scmp.eq.s32.totalorder %s29, 0
      %p148 = por %p146, %p147
      %p149 = scmp.ne.s32.totalorder %s137, %s138
      %p150 = scmp.eq.s32.totalorder %s30, 3
      %p151 = por %p149, %p150
      %p153 = scmp.ne.s32.totalorder %s138, %s152
      %p154 = scmp.eq.s32.totalorder %s30, 0
      %p155 = por %p153, %p154
      %s157 = sadd.s32 %s156, 1
      %p160 = scmp.eq.s32.totalorder %s24, 3
      %p161 = scmp.ne.s32.totalorder %s156, %s158
      %p162 = scmp.eq.s32.totalorder %s24, 0
      %p163 = por %p161, %p162
      %p164 = scmp.ne.s32.totalorder %s156, %s158
      %p165 = scmp.eq.s32.totalorder %s29, 3
      %p166 = por %p164, %p165
      %p167 = scmp.ne.s32.totalorder %s158, %s159
      %p168 = scmp.eq.s32.totalorder %s29, 0
      %p169 = por %p167, %p168
      %p170 = scmp.ne.s32.totalorder %s158, %s159
      %p171 = scmp.eq.s32.totalorder %s30, 3
      %p172 = por %p170, %p171
      %p174 = scmp.ne.s32.totalorder %s159, %s173
      %p175 = scmp.eq.s32.totalorder %s30, 0
      %p176 = por %p174, %p175
      %s178 = sadd.s32 %s177, 1
      %p181 = scmp.eq.s32.totalorder %s24, 3
      %p182 = scmp.ne.s32.totalorder %s177, %s179
      %p183 = scmp.eq.s32.totalorder %s24, 0
      %p184 = por %p182, %p183
      %p185 = scmp.ne.s32.totalorder %s177, %s179
      %p186 = scmp.eq.s32.totalorder %s29, 3
      %p187 = por %p185, %p186
      %p188 = scmp.ne.s32.totalorder %s179, %s180
      %p189 = scmp.eq.s32.totalorder %s29, 0
      %p190 = por %p188, %p189
      %p191 = scmp.ne.s32.totalorder %s179, %s180
      %p192 = scmp.eq.s32.totalorder %s30, 3
      %p193 = por %p191, %p192
      %p195 = scmp.ne.s32.totalorder %s180, %s194
      %p196 = scmp.eq.s32.totalorder %s30, 0
      %p197 = por %p195, %p196
      %s199 = sadd.s32 %s198, 1
      %p202 = scmp.eq.s32.totalorder %s24, 3
      %p203 = scmp.ne.s32.totalorder %s198, %s200
      %p204 = scmp.eq.s32.totalorder %s24, 0
      %p205 = por %p203, %p204
      %p206 = scmp.ne.s32.totalorder %s198, %s200
      %p207 = scmp.eq.s32.totalorder %s29, 3
      %p208 = por %p206, %p207
      %p209 = scmp.ne.s32.totalorder %s200, %s201
      %p210 = scmp.eq.s32.totalorder %s29, 0
      %p211 = por %p209, %p210
      %p212 = scmp.ne.s32.totalorder %s200, %s201
      %p213 = scmp.eq.s32.totalorder %s30, 3
      %p214 = por %p212, %p213
      %p216 = scmp.ne.s32.totalorder %s201, %s215
      %p217 = scmp.eq.s32.totalorder %s30, 0
      %p218 = por %p216, %p217
      %s220 = sadd.s32 %s219, 1
      %p223 = scmp.eq.s32.totalorder %s24, 3
      %p224 = scmp.ne.s32.totalorder %s219, %s221
      %p225 = scmp.eq.s32.totalorder %s24, 0
      %p226 = por %p224, %p225
      %p227 = scmp.ne.s32.totalorder %s219, %s221
      %p228 = scmp.eq.s32.totalorder %s29, 3
      %p229 = por %p227, %p228
      %p230 = scmp.ne.s32.totalorder %s221, %s222
      %p231 = scmp.eq.s32.totalorder %s29, 0
      %p232 = por %p230, %p231
      %p233 = scmp.ne.s32.totalorder %s221, %s222
      %p234 = scmp.eq.s32.totalorder %s30, 3
      %p235 = por %p233, %p234
      %p237 = scmp.ne.s32.totalorder %s222, %s236
      %p238 = scmp.eq.s32.totalorder %s30, 0
      %p239 = por %p237, %p238
      %s241 = sadd.s32 %s240, 1
      %p244 = scmp.eq.s32.totalorder %s24, 3
      %p245 = scmp.ne.s32.totalorder %s240, %s242
      %p246 = scmp.eq.s32.totalorder %s24, 0
      %p247 = por %p245, %p246
      %p248 = scmp.ne.s32.totalorder %s240, %s242
      %p249 = scmp.eq.s32.totalorder %s29, 3
      %p250 = por %p248, %p249
      %p251 = scmp.ne.s32.totalorder %s242, %s243
      %p252 = scmp.eq.s32.totalorder %s29, 0
      %p253 = por %p251, %p252
      %p254 = scmp.ne.s32.totalorder %s242, %s243
      %p255 = scmp.eq.s32.totalorder %s30, 3
      %p256 = por %p254, %p255
      %p258 = scmp.ne.s32.totalorder %s243, %s257
      %p259 = scmp.eq.s32.totalorder %s30, 0
      %p260 = por %p258, %p259
      %s262 = sadd.s32 %s261, 1
      %p265 = scmp.eq.s32.totalorder %s24, 3
      %p266 = scmp.ne.s32.totalorder %s261, %s263
      %p267 = scmp.eq.s32.totalorder %s24, 0
      %p268 = por %p266, %p267
      %p269 = scmp.ne.s32.totalorder %s261, %s263
      %p270 = scmp.eq.s32.totalorder %s29, 3
      %p271 = por %p269, %p270
      %p272 = scmp.ne.s32.totalorder %s263, %s264
      %p273 = scmp.eq.s32.totalorder %s29, 0
      %p274 = por %p272, %p273
      %p275 = scmp.ne.s32.totalorder %s263, %s264
      %p276 = scmp.eq.s32.totalorder %s30, 3
      %p277 = por %p275, %p276
      %p279 = scmp.ne.s32.totalorder %s264, %s278
      %p280 = scmp.eq.s32.totalorder %s30, 0
      %p281 = por %p279, %p280
      %s283 = sadd.s32 %s282, 1
      %p286 = scmp.eq.s32.totalorder %s24, 3
      %p287 = scmp.ne.s32.totalorder %s282, %s284
      %p288 = scmp.eq.s32.totalorder %s24, 0
      %p289 = por %p287, %p288
      %p290 = scmp.ne.s32.totalorder %s282, %s284
      %p291 = scmp.eq.s32.totalorder %s29, 3
      %p292 = por %p290, %p291
      %p293 = scmp.ne.s32.totalorder %s284, %s285
      %p294 = scmp.eq.s32.totalorder %s29, 0
      %p295 = por %p293, %p294
      %p296 = scmp.ne.s32.totalorder %s284, %s285
      %p297 = scmp.eq.s32.totalorder %s30, 3
      %p298 = por %p296, %p297
      %p300 = scmp.ne.s32.totalorder %s285, %s299
      %p301 = scmp.eq.s32.totalorder %s30, 0
      %p302 = por %p300, %p301
      %s304 = sadd.s32 %s303, 1
      %p307 = scmp.eq.s32.totalorder %s24, 3
      %p308 = scmp.ne.s32.totalorder %s303, %s305
      %p309 = scmp.eq.s32.totalorder %s24, 0
      %p310 = por %p308, %p309
      %p311 = scmp.ne.s32.totalorder %s303, %s305
      %p312 = scmp.eq.s32.totalorder %s29, 3
      %p313 = por %p311, %p312
      %p314 = scmp.ne.s32.totalorder %s305, %s306
      %p315 = scmp.eq.s32.totalorder %s29, 0
      %p316 = por %p314, %p315
      %p317 = scmp.ne.s32.totalorder %s305, %s306
      %p318 = scmp.eq.s32.totalorder %s30, 3
      %p319 = por %p317, %p318
      %p321 = scmp.ne.s32.totalorder %s306, %s320
      %p322 = scmp.eq.s32.totalorder %s30, 0
      %p323 = por %p321, %p322
      %s324 = ssub.s32 %s31, %s43
      %p325 = scmp.eq.s32.totalorder %s324, 0
      %s327 = sadd.s32 %s326, 1
      %s328 = scalar_select %p325, %s326, %s327
      %p331 = pneg %p325
      %p332 = scmp.eq.s32.totalorder %s24, 3
      %p333 = por %p331, %p332
      %p334 = scmp.ne.s32.totalorder %s326, %s329
      %p335 = scmp.eq.s32.totalorder %s24, 0
      %p336 = por %p334, %p335
      %p337 = scmp.ne.s32.totalorder %s326, %s329
      %p338 = scmp.eq.s32.totalorder %s29, 3
      %p339 = por %p337, %p338
      %p340 = scmp.ne.s32.totalorder %s329, %s330
      %p341 = scmp.eq.s32.totalorder %s29, 0
      %p342 = por %p340, %p341
      %p343 = scmp.ne.s32.totalorder %s329, %s330
      %p344 = scmp.eq.s32.totalorder %s30, 3
      %p345 = por %p343, %p344
      %p347 = scmp.ne.s32.totalorder %s330, %s346
      %p348 = scmp.eq.s32.totalorder %s30, 0
      %p349 = por %p347, %p348
      %p350 = scmp.le.s32.totalorder 1, %s24
      %p351 = scmp.lt.s32.totalorder %s24, 5
      %p352 = pnand %p350, %p351
      %p353 = pneg %p352
      // Predicated region
      $region9: #{tpu_custom_call.1} parent=5 // pred_check
        _
      $region10: #{tpu_custom_call.1} parent=5 // pred_check_branch
        %355 = sbr.rel (%p352) target = $region12
      $region11: #{tpu_custom_call.1} parent=5 // pred_region
        %s356 = ssub.s32 %s24, 1
        // Predicated region
        $region13: #{tpu_custom_call.1} parent=11 // pred_check
          %p357 = pneg %p85
        $region14: #{tpu_custom_call.1} parent=11 // pred_check_branch
          %359 = sbr.rel (%p357) target = $region16
        $region15: #{tpu_custom_call.1} parent=11 // pred_region
          _
        $region16: #{tpu_custom_call.1} parent=11 // pred_fallthru
          _
        // Predicated region
        $region17: #{tpu_custom_call.1} parent=11 // pred_check
          %p360 = pneg %p106
        $region18: #{tpu_custom_call.1} parent=11 // pred_check_branch
          %362 = sbr.rel (%p360) target = $region20
        $region19: #{tpu_custom_call.1} parent=11 // pred_region
          _
        $region20: #{tpu_custom_call.1} parent=11 // pred_fallthru
          _
        // Predicated region
        $region21: #{tpu_custom_call.1} parent=11 // pred_check
          %p363 = pneg %p127
        $region22: #{tpu_custom_call.1} parent=11 // pred_check_branch
          %365 = sbr.rel (%p363) target = $region24
        $region23: #{tpu_custom_call.1} parent=11 // pred_region
          _
        $region24: #{tpu_custom_call.1} parent=11 // pred_fallthru
          _
        // Predicated region
        $region25: #{tpu_custom_call.1} parent=11 // pred_check
          %p366 = pneg %p148
        $region26: #{tpu_custom_call.1} parent=11 // pred_check_branch
          %368 = sbr.rel (%p366) target = $region28
        $region27: #{tpu_custom_call.1} parent=11 // pred_region
          _
        $region28: #{tpu_custom_call.1} parent=11 // pred_fallthru
          _
        // Predicated region
        $region29: #{tpu_custom_call.1} parent=11 // pred_check
          %p369 = pneg %p169
        $region30: #{tpu_custom_call.1} parent=11 // pred_check_branch
          %371 = sbr.rel (%p369) target = $region32
        $region31: #{tpu_custom_call.1} parent=11 // pred_region
          _
        $region32: #{tpu_custom_call.1} parent=11 // pred_fallthru
          _
        // Predicated region
        $region33: #{tpu_custom_call.1} parent=11 // pred_check
          %p372 = pneg %p190
        $region34: #{tpu_custom_call.1} parent=11 // pred_check_branch
          %374 = sbr.rel (%p372) target = $region36
        $region35: #{tpu_custom_call.1} parent=11 // pred_region
          _
        $region36: #{tpu_custom_call.1} parent=11 // pred_fallthru
          _
        // Predicated region
        $region37: #{tpu_custom_call.1} parent=11 // pred_check
          %p375 = pneg %p211
        $region38: #{tpu_custom_call.1} parent=11 // pred_check_branch
          %377 = sbr.rel (%p375) target = $region40
        $region39: #{tpu_custom_call.1} parent=11 // pred_region
          %379 = vsyncadd [#allocation4], 0
          %s380 = sshll.u32 %s7, 4
          %s381 = int_to_ptr.hbm [resolvable:$true] %s380
          %s382 = sshll.u32 [#allocation3], 4
          %s383 = int_to_ptr.vmem [resolvable:$true] %s382
          %388 = dma.hbm_to_vmem [thread:$0]  %s381, 32768, %s383, [#allocation4], 256, 256, 16
        $region40: #{tpu_custom_call.1} parent=11 // pred_fallthru
          _
        // Predicated region
        $region41: #{tpu_custom_call.1} parent=11 // pred_check
          %p389 = pneg %p232
        $region42: #{tpu_custom_call.1} parent=11 // pred_check_branch
          %391 = sbr.rel (%p389) target = $region44
        $region43: #{tpu_custom_call.1} parent=11 // pred_region
          _
        $region44: #{tpu_custom_call.1} parent=11 // pred_fallthru
          _
        // Predicated region
        $region45: #{tpu_custom_call.1} parent=11 // pred_check
          %p392 = pneg %p253
        $region46: #{tpu_custom_call.1} parent=11 // pred_check_branch
          %394 = sbr.rel (%p392) target = $region48
        $region47: #{tpu_custom_call.1} parent=11 // pred_region
          %396 = vsyncadd [#allocation7], 0
          %s397 = sshll.u32 %s9, 4
          %s398 = int_to_ptr.hbm [resolvable:$true] %s397
          %s399 = sshll.u32 [#allocation6], 4
          %s400 = int_to_ptr.vmem [resolvable:$true] %s399
          %405 = dma.hbm_to_vmem [thread:$0]  %s398, 8192, %s400, [#allocation7], 128, 128, 8
        $region48: #{tpu_custom_call.1} parent=11 // pred_fallthru
          _
        // Predicated region
        $region49: #{tpu_custom_call.1} parent=11 // pred_check
          %p406 = pneg %p274
        $region50: #{tpu_custom_call.1} parent=11 // pred_check_branch
          %408 = sbr.rel (%p406) target = $region52
        $region51: #{tpu_custom_call.1} parent=11 // pred_region
          _
        $region52: #{tpu_custom_call.1} parent=11 // pred_fallthru
          _
        // Predicated region
        $region53: #{tpu_custom_call.1} parent=11 // pred_check
          %p409 = pneg %p295
        $region54: #{tpu_custom_call.1} parent=11 // pred_check_branch
          %411 = sbr.rel (%p409) target = $region56
        $region55: #{tpu_custom_call.1} parent=11 // pred_region
          %413 = vsyncadd [#allocation7], 0
          %s414 = sshll.u32 %s11, 4
          %s415 = int_to_ptr.hbm [resolvable:$true] %s414
          %s416 = sshll.u32 [#allocation8], 4
          %s417 = int_to_ptr.vmem [resolvable:$true] %s416
          %422 = dma.hbm_to_vmem [thread:$0]  %s415, 4096, %s417, [#allocation7], 128, 128, 8
        $region56: #{tpu_custom_call.1} parent=11 // pred_fallthru
          _
        // Predicated region
        $region57: #{tpu_custom_call.1} parent=11 // pred_check
          %p423 = pneg %p316
        $region58: #{tpu_custom_call.1} parent=11 // pred_check_branch
          %425 = sbr.rel (%p423) target = $region60
        $region59: #{tpu_custom_call.1} parent=11 // pred_region
          _
        $region60: #{tpu_custom_call.1} parent=11 // pred_fallthru
          _
      $region12: #{tpu_custom_call.1} parent=5 // pred_fallthru
        _
      %p426 = scmp.lt.s32.totalorder %s24, 4
      // Predicated region
      $region61: #{tpu_custom_call.1} parent=5 // pred_check
        %p427 = pneg %p426
      $region62: #{tpu_custom_call.1} parent=5 // pred_check_branch
        %429 = sbr.rel (%p427) target = $region64
      $region63: #{tpu_custom_call.1} parent=5 // pred_region
        // Predicated region
        $region65: #{tpu_custom_call.1} parent=63 // pred_check
          %p430 = pneg %p58
        $region66: #{tpu_custom_call.1} parent=63 // pred_check_branch
          %432 = sbr.rel (%p430) target = $region68
        $region67: #{tpu_custom_call.1} parent=63 // pred_region
          %s433 = smul.u32 32, %s32
          %p434 = scmp.lt.s32.totalorder %s31, 1
          %s435 = scalar_select %p434, %s31, 1
          %p436 = scmp.lt.s32.totalorder %s433, 63
          %s437 = scalar_select %p436, %s433, 63
          %s438 = smul.addr %s435, 64
          %s439 = sadd.s32 %s437, %s438
          %s440 = smul.addr %s439, 4
          %s441 = scalar_lea.vmem %s0, %s440
          %s442 = smul.u32 32, %s32
        $region68: #{tpu_custom_call.1} parent=63 // pred_fallthru
          _
      $region64: #{tpu_custom_call.1} parent=5 // pred_fallthru
        _
      %p443 = scmp.le.s32.totalorder 1, %s24
      %p444 = scmp.lt.s32.totalorder %s24, 5
      %p445 = pnand %p443, %p444
      %p446 = pneg %p445
      // Predicated region
      $region69: #{tpu_custom_call.1} parent=5 // pred_check
        _
      $region70: #{tpu_custom_call.1} parent=5 // pred_check_branch
        %448 = sbr.rel (%p445) target = $region72
      $region71: #{tpu_custom_call.1} parent=5 // pred_region
        %s449 = ssub.s32 %s24, 1
        // Predicated region
        $region73: #{tpu_custom_call.1} parent=71 // pred_check
          %p450 = pneg %p211
        $region74: #{tpu_custom_call.1} parent=71 // pred_check_branch
          %452 = sbr.rel (%p450) target = $region76
        $region75: #{tpu_custom_call.1} parent=71 // pred_region
          %454 = dma.done [#allocation4], 32768
        $region76: #{tpu_custom_call.1} parent=71 // pred_fallthru
          _
        // Predicated region
        $region77: #{tpu_custom_call.1} parent=71 // pred_check
          %p455 = pneg %p253
        $region78: #{tpu_custom_call.1} parent=71 // pred_check_branch
          %457 = sbr.rel (%p455) target = $region80
        $region79: #{tpu_custom_call.1} parent=71 // pred_region
          %459 = dma.done [#allocation7], 8192
        $region80: #{tpu_custom_call.1} parent=71 // pred_fallthru
          _
        // Predicated region
        $region81: #{tpu_custom_call.1} parent=71 // pred_check
          %p460 = pneg %p295
        $region82: #{tpu_custom_call.1} parent=71 // pred_check_branch
          %462 = sbr.rel (%p460) target = $region84
        $region83: #{tpu_custom_call.1} parent=71 // pred_region
          %464 = dma.done [#allocation7], 4096
        $region84: #{tpu_custom_call.1} parent=71 // pred_fallthru
          _
        %s465 = smul.u32 32, %s34
        %p466 = scmp.lt.s32.totalorder %s33, 1
        %s467 = scalar_select %p466, %s33, 1
        %p468 = scmp.lt.s32.totalorder %s465, 63
        %s469 = scalar_select %p468, %s465, 63
        %s470 = smul.addr %s467, 64
        %s471 = sadd.s32 %s469, %s470
        %s472 = smul.addr %s471, 4
        %s473 = scalar_lea.vmem %s0, %s472
        %p474 = pneg %p64
        %p475 = pneg %p61
        %p476 = pneg %p85
        %p477 = pneg %p82
        %p478 = pneg %p106
        %p479 = pneg %p103
        %p480 = pneg %p127
        %p481 = pneg %p124
        %p482 = pneg %p148
        %p483 = pneg %p145
        %p484 = pneg %p169
        %p485 = pneg %p166
        %p486 = pneg %p190
        %p487 = pneg %p187
        %p488 = pneg %p211
        %p489 = pneg %p208
        %p490 = pneg %p232
        %p491 = pneg %p229
        %p492 = pneg %p253
        %p493 = pneg %p250
        %p494 = pneg %p274
        %p495 = pneg %p271
        %p496 = pneg %p295
        %p497 = pneg %p292
        %p498 = pneg %p316
        %p499 = pneg %p313
        %p500 = pneg %p342
        %p501 = pneg %p339
        %s502 = sand.u32 %s329, 1
        %s503 = scalar_lea.sflag [#allocation5], %s502
        %s504 = sand.u32 %s329, 1
        %s505 = smul.addr %s504, 2
        %s506 = scalar_lea.vmem [#allocation9], %s505
        %s507 = smul.u32 32, %s34
        %p508 = scmp.lt.s32.totalorder %s33, 1
        %s509 = scalar_select %p508, %s33, 1
        %p510 = scmp.lt.s32.totalorder %s507, 63
        %s511 = scalar_select %p510, %s507, 63
        %s512 = smul.addr %s509, 64
        %s513 = sadd.s32 %s511, %s512
        %s514 = smul.addr %s513, 4
        %s515 = scalar_lea.vmem %s0, %s514
        %s516 = smul.u32 32, %s34
        %p518 = scmp.eq.s32.totalorder %s34, 0
        // Predicated region
        $region85: #{tpu_custom_call.1} parent=71 // pred_check
          %p519 = pneg %p518
        $region86: #{tpu_custom_call.1} parent=71 // pred_check_branch
          %521 = sbr.rel (%p519) target = $region88
        $region87: #{tpu_custom_call.1} parent=71 // pred_region
          %522 = vst [vmem:[#allocation2] sm:$0xff] -inf
        $region88: #{tpu_custom_call.1} parent=71 // pred_fallthru
          _
        %v523 = vld [vmem:[%s515] sm:$0xf]
        %v524 = vld [vmem:[%s515 + $0x4] sm:$0xf]
        %v525 = vld [vmem:[%s515 + $0x8] sm:$0xf]
        %v526 = vld [vmem:[%s515 + $0xc] sm:$0xf]
        %v527 = vld [vmem:[%s515 + $0x10] sm:$0xf]
        %v528 = vld [vmem:[%s515 + $0x14] sm:$0xf]
        %v529 = vld [vmem:[%s515 + $0x18] sm:$0xf]
        %v530 = vld [vmem:[%s515 + $0x1c] sm:$0xf]
        %v531 = vld [vmem:[%s515 + $0x20] sm:$0xf]
        %v532 = vld [vmem:[%s515 + $0x24] sm:$0xf]
        %v533 = vld [vmem:[%s515 + $0x28] sm:$0xf]
        %v534 = vld [vmem:[%s515 + $0x2c] sm:$0xf]
        %v535 = vld [vmem:[%s515 + $0x30] sm:$0xf]
        %v536 = vld [vmem:[%s515 + $0x34] sm:$0xf]
        %v537 = vld [vmem:[%s515 + $0x38] sm:$0xf]
        %v538 = vld [vmem:[%s515 + $0x3c] sm:$0xf]
        %v539 = vld [vmem:[%s515 + $0x40] sm:$0xf]
        %v540 = vld [vmem:[%s515 + $0x44] sm:$0xf]
        %v541 = vld [vmem:[%s515 + $0x48] sm:$0xf]
        %v542 = vld [vmem:[%s515 + $0x4c] sm:$0xf]
        %v543 = vld [vmem:[%s515 + $0x50] sm:$0xf]
        %v544 = vld [vmem:[%s515 + $0x54] sm:$0xf]
        %v545 = vld [vmem:[%s515 + $0x58] sm:$0xf]
        %v546 = vld [vmem:[%s515 + $0x5c] sm:$0xf]
        %v547 = vld [vmem:[%s515 + $0x60] sm:$0xf]
        %v548 = vld [vmem:[%s515 + $0x64] sm:$0xf]
        %v549 = vld [vmem:[%s515 + $0x68] sm:$0xf]
        %v550 = vld [vmem:[%s515 + $0x6c] sm:$0xf]
        %v551 = vld [vmem:[%s515 + $0x70] sm:$0xf]
        %v552 = vld [vmem:[%s515 + $0x74] sm:$0xf]
        %v553 = vld [vmem:[%s515 + $0x78] sm:$0xf]
        %v554 = vld [vmem:[%s515 + $0x7c] sm:$0xf]
        %v555 = vld [vmem:[%s1] sm:$0xf]
        %v556 = vld [vmem:[%s1 + $0x4] sm:$0xf]
        %v557 = vld [vmem:[%s2] sm:$0x1]
        %v559 = vperm.slane %v557, 0
        %v593 = vunpack.c.l.b16 %v523
        %v594 = vunpack.c.l.b16 %v524
        %v595 = vunpack.c.l.b16 %v525
        %v596 = vunpack.c.l.b16 %v526
        %v597 = vunpack.c.l.b16 %v527
        %v598 = vunpack.c.l.b16 %v528
        %v599 = vunpack.c.l.b16 %v529
        %v600 = vunpack.c.l.b16 %v530
        %v601 = vunpack.c.l.b16 %v531
        %v602 = vunpack.c.l.b16 %v532
        %v603 = vunpack.c.l.b16 %v533
        %v604 = vunpack.c.l.b16 %v534
        %v605 = vunpack.c.l.b16 %v535
        %v606 = vunpack.c.l.b16 %v536
        %v607 = vunpack.c.l.b16 %v537
        %v608 = vunpack.c.l.b16 %v538
        %v609 = vunpack.c.l.b16 %v539
        %v610 = vunpack.c.l.b16 %v540
        %v611 = vunpack.c.l.b16 %v541
        %v612 = vunpack.c.l.b16 %v542
        %v613 = vunpack.c.l.b16 %v543
        %v614 = vunpack.c.l.b16 %v544
        %v615 = vunpack.c.l.b16 %v545
        %v616 = vunpack.c.l.b16 %v546
        %v617 = vunpack.c.l.b16 %v547
        %v618 = vunpack.c.l.b16 %v548
        %v619 = vunpack.c.l.b16 %v549
        %v620 = vunpack.c.l.b16 %v550
        %v621 = vunpack.c.l.b16 %v551
        %v622 = vunpack.c.l.b16 %v552
        %v623 = vunpack.c.l.b16 %v553
        %v624 = vunpack.c.l.b16 %v554
        %v625 = vpack.c.b16 %v594, %v593
        %v626 = vpack.c.b16 %v596, %v595
        %v627 = vpack.c.b16 %v598, %v597
        %v628 = vpack.c.b16 %v600, %v599
        %v629 = vpack.c.b16 %v602, %v601
        %v630 = vpack.c.b16 %v604, %v603
        %v631 = vpack.c.b16 %v606, %v605
        %v632 = vpack.c.b16 %v608, %v607
        %v633 = vpack.c.b16 %v610, %v609
        %v634 = vpack.c.b16 %v612, %v611
        %v635 = vpack.c.b16 %v614, %v613
        %v636 = vpack.c.b16 %v616, %v615
        %v637 = vpack.c.b16 %v618, %v617
        %v638 = vpack.c.b16 %v620, %v619
        %v639 = vpack.c.b16 %v622, %v621
        %v640 = vpack.c.b16 %v624, %v623
        %v643 = vunpack.c.l.b16 %v555
        %v644 = vunpack.c.l.b16 %v556
        %v645 = vpack.c.b16 %v644, %v643
        %vm647 = vcmask 130048
        %v649 = vsel %vm647, %v625, 0
        %v652 = vsel %vm647, %v626, 0
        %v655 = vsel %vm647, %v627, 0
        %v658 = vsel %vm647, %v628, 0
        %v661 = vsel %vm647, %v629, 0
        %v664 = vsel %vm647, %v630, 0
        %v667 = vsel %vm647, %v631, 0
        %v670 = vsel %vm647, %v632, 0
        %v673 = vsel %vm647, %v633, 0
        %v676 = vsel %vm647, %v634, 0
        %v679 = vsel %vm647, %v635, 0
        %v682 = vsel %vm647, %v636, 0
        %v685 = vsel %vm647, %v637, 0
        %v688 = vsel %vm647, %v638, 0
        %v691 = vsel %vm647, %v639, 0
        %v694 = vsel %vm647, %v640, 0
        %696 = vmatpush.bf16.msra.mxu0 0
        %697 = vmatpush.bf16.msra.mxu0 0
        %698 = vmatpush.bf16.msra.mxu0 0
        %699 = vmatpush.bf16.msra.mxu0 0
        %700 = vmatpush.bf16.msra.mxu0 0
        %701 = vmatpush.bf16.msra.mxu0 0
        %702 = vmatpush.bf16.msra.mxu0 0
        %703 = vmatpush.bf16.msra.mxu0 %v645
        %704 = vmatmul.bf16.gmra.mxu0 %v649
        %v705 = vpop.f32.mrf.mxu0
        %v706 = vadd.f32 %v559, %v705
        %v707 = vpop.f32.mrf.mxu0
        %v708 = vadd.f32 %v559, %v707
        %709 = vmatmul.bf16.gmra.mxu0 %v652
        %v710 = vpop.f32.mrf.mxu0
        %v711 = vadd.f32 %v559, %v710
        %v712 = vpop.f32.mrf.mxu0
        %v713 = vadd.f32 %v559, %v712
        %714 = vmatmul.bf16.gmra.mxu0 %v655
        %v715 = vpop.f32.mrf.mxu0
        %v716 = vadd.f32 %v559, %v715
        %v717 = vpop.f32.mrf.mxu0
        %v718 = vadd.f32 %v559, %v717
        %719 = vmatmul.bf16.gmra.mxu0 %v658
        %v720 = vpop.f32.mrf.mxu0
        %v721 = vadd.f32 %v559, %v720
        %v722 = vpop.f32.mrf.mxu0
        %v723 = vadd.f32 %v559, %v722
        %724 = vmatmul.bf16.gmra.mxu0 %v661
        %v725 = vpop.f32.mrf.mxu0
        %v726 = vadd.f32 %v559, %v725
        %v727 = vpop.f32.mrf.mxu0
        %v728 = vadd.f32 %v559, %v727
        %729 = vmatmul.bf16.gmra.mxu0 %v664
        %v730 = vpop.f32.mrf.mxu0
        %v731 = vadd.f32 %v559, %v730
        %v732 = vpop.f32.mrf.mxu0
        %v733 = vadd.f32 %v559, %v732
        %734 = vmatmul.bf16.gmra.mxu0 %v667
        %v735 = vpop.f32.mrf.mxu0
        %v736 = vadd.f32 %v559, %v735
        %v737 = vpop.f32.mrf.mxu0
        %v738 = vadd.f32 %v559, %v737
        %739 = vmatmul.bf16.gmra.mxu0 %v670
        %v740 = vpop.f32.mrf.mxu0
        %v741 = vadd.f32 %v559, %v740
        %v742 = vpop.f32.mrf.mxu0
        %v743 = vadd.f32 %v559, %v742
        %744 = vmatmul.bf16.gmra.mxu0 %v673
        %v745 = vpop.f32.mrf.mxu0
        %v746 = vadd.f32 %v559, %v745
        %v747 = vpop.f32.mrf.mxu0
        %v748 = vadd.f32 %v559, %v747
        %749 = vmatmul.bf16.gmra.mxu0 %v676
        %v750 = vpop.f32.mrf.mxu0
        %v751 = vadd.f32 %v559, %v750
        %v752 = vpop.f32.mrf.mxu0
        %v753 = vadd.f32 %v559, %v752
        %754 = vmatmul.bf16.gmra.mxu0 %v679
        %v755 = vpop.f32.mrf.mxu0
        %v756 = vadd.f32 %v559, %v755
        %v757 = vpop.f32.mrf.mxu0
        %v758 = vadd.f32 %v559, %v757
        %759 = vmatmul.bf16.gmra.mxu0 %v682
        %v760 = vpop.f32.mrf.mxu0
        %v761 = vadd.f32 %v559, %v760
        %v762 = vpop.f32.mrf.mxu0
        %v763 = vadd.f32 %v559, %v762
        %764 = vmatmul.bf16.gmra.mxu0 %v685
        %v765 = vpop.f32.mrf.mxu0
        %v766 = vadd.f32 %v559, %v765
        %v767 = vpop.f32.mrf.mxu0
        %v768 = vadd.f32 %v559, %v767
        %769 = vmatmul.bf16.gmra.mxu0 %v688
        %v770 = vpop.f32.mrf.mxu0
        %v771 = vadd.f32 %v559, %v770
        %v772 = vpop.f32.mrf.mxu0
        %v773 = vadd.f32 %v559, %v772
        %774 = vmatmul.bf16.gmra.mxu0 %v691
        %v775 = vpop.f32.mrf.mxu0
        %v776 = vadd.f32 %v559, %v775
        %v777 = vpop.f32.mrf.mxu0
        %v778 = vadd.f32 %v559, %v777
        %779 = vmatmul.bf16.gmra.mxu0 %v694
        %v780 = vpop.f32.mrf.mxu0
        %v781 = vadd.f32 %v559, %v780
        %v782 = vpop.f32.mrf.mxu0
        %v783 = vadd.f32 %v559, %v782
        %784 = vdwg.mxu0
        %v785 = vmax.f32 %v706, 0.0
        %v786 = vmax.f32 %v708, 0.0
        %v787 = vmax.f32 %v711, 0.0
        %v788 = vmax.f32 %v713, 0.0
        %v789 = vmax.f32 %v716, 0.0
        %v790 = vmax.f32 %v718, 0.0
        %v791 = vmax.f32 %v721, 0.0
        %v792 = vmax.f32 %v723, 0.0
        %v793 = vmax.f32 %v726, 0.0
        %v794 = vmax.f32 %v728, 0.0
        %v795 = vmax.f32 %v731, 0.0
        %v796 = vmax.f32 %v733, 0.0
        %v797 = vmax.f32 %v736, 0.0
        %v798 = vmax.f32 %v738, 0.0
        %v799 = vmax.f32 %v741, 0.0
        %v800 = vmax.f32 %v743, 0.0
        %v801 = vmax.f32 %v746, 0.0
        %v802 = vmax.f32 %v748, 0.0
        %v803 = vmax.f32 %v751, 0.0
        %v804 = vmax.f32 %v753, 0.0
        %v805 = vmax.f32 %v756, 0.0
        %v806 = vmax.f32 %v758, 0.0
        %v807 = vmax.f32 %v761, 0.0
        %v808 = vmax.f32 %v763, 0.0
        %v809 = vmax.f32 %v766, 0.0
        %v810 = vmax.f32 %v768, 0.0
        %v811 = vmax.f32 %v771, 0.0
        %v812 = vmax.f32 %v773, 0.0
        %v813 = vmax.f32 %v776, 0.0
        %v814 = vmax.f32 %v778, 0.0
        %v815 = vmax.f32 %v781, 0.0
        %v816 = vmax.f32 %v783, 0.0
        %v817 = vpack.c.bf16 %v786, %v785
        %v818 = vpack.c.bf16 %v788, %v787
        %v819 = vpack.c.bf16 %v790, %v789
        %v820 = vpack.c.bf16 %v792, %v791
        %v821 = vpack.c.bf16 %v794, %v793
        %v822 = vpack.c.bf16 %v796, %v795
        %v823 = vpack.c.bf16 %v798, %v797
        %v824 = vpack.c.bf16 %v800, %v799
        %v825 = vpack.c.bf16 %v802, %v801
        %v826 = vpack.c.bf16 %v804, %v803
        %v827 = vpack.c.bf16 %v806, %v805
        %v828 = vpack.c.bf16 %v808, %v807
        %v829 = vpack.c.bf16 %v810, %v809
        %v830 = vpack.c.bf16 %v812, %v811
        %v831 = vpack.c.bf16 %v814, %v813
        %v832 = vpack.c.bf16 %v816, %v815
        %v833 = vld [vmem:[%s3] sm:$0xf]
        %v834 = vld [vmem:[%s3 + $0x4] sm:$0xf]
        %v835 = vld [vmem:[%s3 + $0x8] sm:$0xf]
        %v836 = vld [vmem:[%s3 + $0xc] sm:$0xf]
        %v837 = vld [vmem:[%s3 + $0x10] sm:$0xf]
        %v838 = vld [vmem:[%s3 + $0x14] sm:$0xf]
        %v839 = vld [vmem:[%s3 + $0x18] sm:$0xf]
        %v840 = vld [vmem:[%s3 + $0x1c] sm:$0xf]
        %v841 = vld [vmem:[%s4] sm:$0x1]
        %v843 = vperm.slane %v841, 0
        %v853 = vunpack.c.l.b16 %v833
        %v854 = vunpack.c.l.b16 %v834
        %v855 = vunpack.c.l.b16 %v835
        %v856 = vunpack.c.l.b16 %v836
        %v857 = vunpack.c.l.b16 %v837
        %v858 = vunpack.c.l.b16 %v838
        %v859 = vunpack.c.l.b16 %v839
        %v860 = vunpack.c.l.b16 %v840
        %v861 = vpack.c.b16 %v854, %v853
        %v862 = vpack.c.b16 %v856, %v855
        %v863 = vpack.c.b16 %v858, %v857
        %v864 = vpack.c.b16 %v860, %v859
        %vm869 = vcmask 523264
        %v871 = vsel %vm869, %v817, 0
        %v874 = vsel %vm869, %v818, 0
        %v877 = vsel %vm869, %v819, 0
        %v880 = vsel %vm869, %v820, 0
        %v883 = vsel %vm869, %v821, 0
        %v886 = vsel %vm869, %v822, 0
        %v889 = vsel %vm869, %v823, 0
        %v892 = vsel %vm869, %v824, 0
        %v895 = vsel %vm869, %v825, 0
        %v898 = vsel %vm869, %v826, 0
        %v901 = vsel %vm869, %v827, 0
        %v904 = vsel %vm869, %v828, 0
        %v907 = vsel %vm869, %v829, 0
        %v910 = vsel %vm869, %v830, 0
        %v913 = vsel %vm869, %v831, 0
        %v916 = vsel %vm869, %v832, 0
        %918 = vmatpush.bf16.msra.mxu0 0
        %919 = vmatpush.bf16.msra.mxu0 0
        %920 = vmatpush.bf16.msra.mxu0 0
        %921 = vmatpush.bf16.msra.mxu0 0
        %922 = vmatpush.bf16.msra.mxu0 %v864
        %923 = vmatpush.bf16.msra.mxu0 %v863
        %924 = vmatpush.bf16.msra.mxu0 %v862
        %925 = vmatpush.bf16.msra.mxu0 %v861
        %926 = vmatmul.bf16.gmra.mxu0 %v871
        %v927 = vpop.f32.mrf.mxu0
        %v928 = vadd.f32 %v843, %v927
        %v929 = vpop.f32.mrf.mxu0
        %v930 = vadd.f32 %v843, %v929
        %931 = vmatmul.bf16.gmra.mxu0 %v874
        %v932 = vpop.f32.mrf.mxu0
        %v933 = vadd.f32 %v843, %v932
        %v934 = vpop.f32.mrf.mxu0
        %v935 = vadd.f32 %v843, %v934
        %936 = vmatmul.bf16.gmra.mxu0 %v877
        %v937 = vpop.f32.mrf.mxu0
        %v938 = vadd.f32 %v843, %v937
        %v939 = vpop.f32.mrf.mxu0
        %v940 = vadd.f32 %v843, %v939
        %941 = vmatmul.bf16.gmra.mxu0 %v880
        %v942 = vpop.f32.mrf.mxu0
        %v943 = vadd.f32 %v843, %v942
        %v944 = vpop.f32.mrf.mxu0
        %v945 = vadd.f32 %v843, %v944
        %946 = vmatmul.bf16.gmra.mxu0 %v883
        %v947 = vpop.f32.mrf.mxu0
        %v948 = vadd.f32 %v843, %v947
        %v949 = vpop.f32.mrf.mxu0
        %v950 = vadd.f32 %v843, %v949
        %951 = vmatmul.bf16.gmra.mxu0 %v886
        %v952 = vpop.f32.mrf.mxu0
        %v953 = vadd.f32 %v843, %v952
        %v954 = vpop.f32.mrf.mxu0
        %v955 = vadd.f32 %v843, %v954
        %956 = vmatmul.bf16.gmra.mxu0 %v889
        %v957 = vpop.f32.mrf.mxu0
        %v958 = vadd.f32 %v843, %v957
        %v959 = vpop.f32.mrf.mxu0
        %v960 = vadd.f32 %v843, %v959
        %961 = vmatmul.bf16.gmra.mxu0 %v892
        %v962 = vpop.f32.mrf.mxu0
        %v963 = vadd.f32 %v843, %v962
        %v964 = vpop.f32.mrf.mxu0
        %v965 = vadd.f32 %v843, %v964
        %966 = vmatmul.bf16.gmra.mxu0 %v895
        %v967 = vpop.f32.mrf.mxu0
        %v968 = vadd.f32 %v843, %v967
        %v969 = vpop.f32.mrf.mxu0
        %v970 = vadd.f32 %v843, %v969
        %971 = vmatmul.bf16.gmra.mxu0 %v898
        %v972 = vpop.f32.mrf.mxu0
        %v973 = vadd.f32 %v843, %v972
        %v974 = vpop.f32.mrf.mxu0
        %v975 = vadd.f32 %v843, %v974
        %976 = vmatmul.bf16.gmra.mxu0 %v901
        %v977 = vpop.f32.mrf.mxu0
        %v978 = vadd.f32 %v843, %v977
        %v979 = vpop.f32.mrf.mxu0
        %v980 = vadd.f32 %v843, %v979
        %981 = vmatmul.bf16.gmra.mxu0 %v904
        %v982 = vpop.f32.mrf.mxu0
        %v983 = vadd.f32 %v843, %v982
        %v984 = vpop.f32.mrf.mxu0
        %v985 = vadd.f32 %v843, %v984
        %986 = vmatmul.bf16.gmra.mxu0 %v907
        %v987 = vpop.f32.mrf.mxu0
        %v988 = vadd.f32 %v843, %v987
        %v989 = vpop.f32.mrf.mxu0
        %v990 = vadd.f32 %v843, %v989
        %991 = vmatmul.bf16.gmra.mxu0 %v910
        %v992 = vpop.f32.mrf.mxu0
        %v993 = vadd.f32 %v843, %v992
        %v994 = vpop.f32.mrf.mxu0
        %v995 = vadd.f32 %v843, %v994
        %996 = vmatmul.bf16.gmra.mxu0 %v913
        %v997 = vpop.f32.mrf.mxu0
        %v998 = vadd.f32 %v843, %v997
        %v999 = vpop.f32.mrf.mxu0
        %v1000 = vadd.f32 %v843, %v999
        %1001 = vmatmul.bf16.gmra.mxu0 %v916
        %v1002 = vpop.f32.mrf.mxu0
        %v1003 = vadd.f32 %v843, %v1002
        %v1004 = vpop.f32.mrf.mxu0
        %v1005 = vadd.f32 %v843, %v1004
        %1006 = vdwg.mxu0
        %v1007 = vmax.f32 %v928, 0.0
        %v1008 = vmax.f32 %v930, 0.0
        %v1009 = vmax.f32 %v933, 0.0
        %v1010 = vmax.f32 %v935, 0.0
        %v1011 = vmax.f32 %v938, 0.0
        %v1012 = vmax.f32 %v940, 0.0
        %v1013 = vmax.f32 %v943, 0.0
        %v1014 = vmax.f32 %v945, 0.0
        %v1015 = vmax.f32 %v948, 0.0
        %v1016 = vmax.f32 %v950, 0.0
        %v1017 = vmax.f32 %v953, 0.0
        %v1018 = vmax.f32 %v955, 0.0
        %v1019 = vmax.f32 %v958, 0.0
        %v1020 = vmax.f32 %v960, 0.0
        %v1021 = vmax.f32 %v963, 0.0
        %v1022 = vmax.f32 %v965, 0.0
        %v1023 = vmax.f32 %v968, 0.0
        %v1024 = vmax.f32 %v970, 0.0
        %v1025 = vmax.f32 %v973, 0.0
        %v1026 = vmax.f32 %v975, 0.0
        %v1027 = vmax.f32 %v978, 0.0
        %v1028 = vmax.f32 %v980, 0.0
        %v1029 = vmax.f32 %v983, 0.0
        %v1030 = vmax.f32 %v985, 0.0
        %v1031 = vmax.f32 %v988, 0.0
        %v1032 = vmax.f32 %v990, 0.0
        %v1033 = vmax.f32 %v993, 0.0
        %v1034 = vmax.f32 %v995, 0.0
        %v1035 = vmax.f32 %v998, 0.0
        %v1036 = vmax.f32 %v1000, 0.0
        %v1037 = vmax.f32 %v1003, 0.0
        %v1038 = vmax.f32 %v1005, 0.0
        %v1039 = vpack.c.bf16 %v1008, %v1007
        %v1040 = vpack.c.bf16 %v1010, %v1009
        %v1041 = vpack.c.bf16 %v1012, %v1011
        %v1042 = vpack.c.bf16 %v1014, %v1013
        %v1043 = vpack.c.bf16 %v1016, %v1015
        %v1044 = vpack.c.bf16 %v1018, %v1017
        %v1045 = vpack.c.bf16 %v1020, %v1019
        %v1046 = vpack.c.bf16 %v1022, %v1021
        %v1047 = vpack.c.bf16 %v1024, %v1023
        %v1048 = vpack.c.bf16 %v1026, %v1025
        %v1049 = vpack.c.bf16 %v1028, %v1027
        %v1050 = vpack.c.bf16 %v1030, %v1029
        %v1051 = vpack.c.bf16 %v1032, %v1031
        %v1052 = vpack.c.bf16 %v1034, %v1033
        %v1053 = vpack.c.bf16 %v1036, %v1035
        %v1054 = vpack.c.bf16 %v1038, %v1037
        %v1055 = vld [vmem:[%s5] sm:$0xff]
        %v1056 = vld [vmem:[%s5 + $0x8] sm:$0xff]
        %v1057 = vld [vmem:[%s5 + $0x10] sm:$0xff]
        %v1058 = vld [vmem:[%s5 + $0x18] sm:$0xff]
        %v1059 = vld [vmem:[%s5 + $0x20] sm:$0xff]
        %v1060 = vld [vmem:[%s5 + $0x28] sm:$0xff]
        %v1061 = vld [vmem:[%s5 + $0x30] sm:$0xff]
        %v1062 = vld [vmem:[%s5 + $0x38] sm:$0xff]
        %v1063 = vld [vmem:[%s5 + $0x40] sm:$0xff]
        %v1064 = vld [vmem:[%s5 + $0x48] sm:$0xff]
        %v1065 = vld [vmem:[%s5 + $0x50] sm:$0xff]
        %v1066 = vld [vmem:[%s5 + $0x58] sm:$0xff]
        %v1067 = vld [vmem:[%s5 + $0x60] sm:$0xff]
        %v1068 = vld [vmem:[%s5 + $0x68] sm:$0xff]
        %v1069 = vld [vmem:[%s5 + $0x70] sm:$0xff]
        %v1070 = vld [vmem:[%s5 + $0x78] sm:$0xff]
        %v1071 = vld [vmem:[%s5 + $0x80] sm:$0xff]
        %v1072 = vld [vmem:[%s5 + $0x88] sm:$0xff]
        %v1073 = vld [vmem:[%s5 + $0x90] sm:$0xff]
        %v1074 = vld [vmem:[%s5 + $0x98] sm:$0xff]
        %v1075 = vld [vmem:[%s5 + $0xa0] sm:$0xff]
        %v1076 = vld [vmem:[%s5 + $0xa8] sm:$0xff]
        %v1077 = vld [vmem:[%s5 + $0xb0] sm:$0xff]
        %v1078 = vld [vmem:[%s5 + $0xb8] sm:$0xff]
        %v1079 = vld [vmem:[%s5 + $0xc0] sm:$0xff]
        %v1080 = vld [vmem:[%s5 + $0xc8] sm:$0xff]
        %v1081 = vld [vmem:[%s5 + $0xd0] sm:$0xff]
        %v1082 = vld [vmem:[%s5 + $0xd8] sm:$0xff]
        %v1083 = vld [vmem:[%s5 + $0xe0] sm:$0xff]
        %v1084 = vld [vmem:[%s5 + $0xe8] sm:$0xff]
        %v1085 = vld [vmem:[%s5 + $0xf0] sm:$0xff]
        %v1086 = vld [vmem:[%s5 + $0xf8] sm:$0xff]
        %v1087 = vld [vmem:[%s5 + $0x100] sm:$0xff]
        %v1088 = vld [vmem:[%s5 + $0x108] sm:$0xff]
        %v1089 = vld [vmem:[%s5 + $0x110] sm:$0xff]
        %v1090 = vld [vmem:[%s5 + $0x118] sm:$0xff]
        %v1091 = vld [vmem:[%s5 + $0x120] sm:$0xff]
        %v1092 = vld [vmem:[%s5 + $0x128] sm:$0xff]
        %v1093 = vld [vmem:[%s5 + $0x130] sm:$0xff]
        %v1094 = vld [vmem:[%s5 + $0x138] sm:$0xff]
        %v1095 = vld [vmem:[%s5 + $0x140] sm:$0xff]
        %v1096 = vld [vmem:[%s5 + $0x148] sm:$0xff]
        %v1097 = vld [vmem:[%s5 + $0x150] sm:$0xff]
        %v1098 = vld [vmem:[%s5 + $0x158] sm:$0xff]
        %v1099 = vld [vmem:[%s5 + $0x160] sm:$0xff]
        %v1100 = vld [vmem:[%s5 + $0x168] sm:$0xff]
        %v1101 = vld [vmem:[%s5 + $0x170] sm:$0xff]
        %v1102 = vld [vmem:[%s5 + $0x178] sm:$0xff]
        %v1103 = vld [vmem:[%s5 + $0x180] sm:$0xff]
        %v1104 = vld [vmem:[%s5 + $0x188] sm:$0xff]
        %v1105 = vld [vmem:[%s5 + $0x190] sm:$0xff]
        %v1106 = vld [vmem:[%s5 + $0x198] sm:$0xff]
        %v1107 = vld [vmem:[%s5 + $0x1a0] sm:$0xff]
        %v1108 = vld [vmem:[%s5 + $0x1a8] sm:$0xff]
        %v1109 = vld [vmem:[%s5 + $0x1b0] sm:$0xff]
        %v1110 = vld [vmem:[%s5 + $0x1b8] sm:$0xff]
        %v1111 = vld [vmem:[%s5 + $0x1c0] sm:$0xff]
        %v1112 = vld [vmem:[%s5 + $0x1c8] sm:$0xff]
        %v1113 = vld [vmem:[%s5 + $0x1d0] sm:$0xff]
        %v1114 = vld [vmem:[%s5 + $0x1d8] sm:$0xff]
        %v1115 = vld [vmem:[%s5 + $0x1e0] sm:$0xff]
        %v1116 = vld [vmem:[%s5 + $0x1e8] sm:$0xff]
        %v1117 = vld [vmem:[%s5 + $0x1f0] sm:$0xff]
        %v1118 = vld [vmem:[%s5 + $0x1f8] sm:$0xff]
        %v1119 = vld [vmem:[%s6] sm:$0xff]
        %v1121 = vperm.slane %v1119, 0
        %v1122 = vperm.slane %v1119, 1
        %v1123 = vperm.slane %v1119, 2
        %v1124 = vperm.slane %v1119, 3
        %v1125 = vperm.slane %v1119, 4
        %v1126 = vperm.slane %v1119, 5
        %v1127 = vperm.slane %v1119, 6
        %v1128 = vperm.slane %v1119, 7
        %v1201 = vunpack.c.l.b16 %v1055
        %v1202 = vunpack.c.h.b16 %v1055
        %v1203 = vunpack.c.l.b16 %v1056
        %v1204 = vunpack.c.h.b16 %v1056
        %v1205 = vunpack.c.l.b16 %v1057
        %v1206 = vunpack.c.h.b16 %v1057
        %v1207 = vunpack.c.l.b16 %v1058
        %v1208 = vunpack.c.h.b16 %v1058
        %v1209 = vunpack.c.l.b16 %v1059
        %v1210 = vunpack.c.h.b16 %v1059
        %v1211 = vunpack.c.l.b16 %v1060
        %v1212 = vunpack.c.h.b16 %v1060
        %v1213 = vunpack.c.l.b16 %v1061
        %v1214 = vunpack.c.h.b16 %v1061
        %v1215 = vunpack.c.l.b16 %v1062
        %v1216 = vunpack.c.h.b16 %v1062
        %v1217 = vunpack.c.l.b16 %v1063
        %v1218 = vunpack.c.h.b16 %v1063
        %v1219 = vunpack.c.l.b16 %v1064
        %v1220 = vunpack.c.h.b16 %v1064
        %v1221 = vunpack.c.l.b16 %v1065
        %v1222 = vunpack.c.h.b16 %v1065
        %v1223 = vunpack.c.l.b16 %v1066
        %v1224 = vunpack.c.h.b16 %v1066
        %v1225 = vunpack.c.l.b16 %v1067
        %v1226 = vunpack.c.h.b16 %v1067
        %v1227 = vunpack.c.l.b16 %v1068
        %v1228 = vunpack.c.h.b16 %v1068
        %v1229 = vunpack.c.l.b16 %v1069
        %v1230 = vunpack.c.h.b16 %v1069
        %v1231 = vunpack.c.l.b16 %v1070
        %v1232 = vunpack.c.h.b16 %v1070
        %v1233 = vunpack.c.l.b16 %v1071
        %v1234 = vunpack.c.h.b16 %v1071
        %v1235 = vunpack.c.l.b16 %v1072
        %v1236 = vunpack.c.h.b16 %v1072
        %v1237 = vunpack.c.l.b16 %v1073
        %v1238 = vunpack.c.h.b16 %v1073
        %v1239 = vunpack.c.l.b16 %v1074
        %v1240 = vunpack.c.h.b16 %v1074
        %v1241 = vunpack.c.l.b16 %v1075
        %v1242 = vunpack.c.h.b16 %v1075
        %v1243 = vunpack.c.l.b16 %v1076
        %v1244 = vunpack.c.h.b16 %v1076
        %v1245 = vunpack.c.l.b16 %v1077
        %v1246 = vunpack.c.h.b16 %v1077
        %v1247 = vunpack.c.l.b16 %v1078
        %v1248 = vunpack.c.h.b16 %v1078
        %v1249 = vunpack.c.l.b16 %v1079
        %v1250 = vunpack.c.h.b16 %v1079
        %v1251 = vunpack.c.l.b16 %v1080
        %v1252 = vunpack.c.h.b16 %v1080
        %v1253 = vunpack.c.l.b16 %v1081
        %v1254 = vunpack.c.h.b16 %v1081
        %v1255 = vunpack.c.l.b16 %v1082
        %v1256 = vunpack.c.h.b16 %v1082
        %v1257 = vunpack.c.l.b16 %v1083
        %v1258 = vunpack.c.h.b16 %v1083
        %v1259 = vunpack.c.l.b16 %v1084
        %v1260 = vunpack.c.h.b16 %v1084
        %v1261 = vunpack.c.l.b16 %v1085
        %v1262 = vunpack.c.h.b16 %v1085
        %v1263 = vunpack.c.l.b16 %v1086
        %v1264 = vunpack.c.h.b16 %v1086
        %v1265 = vunpack.c.l.b16 %v1087
        %v1266 = vunpack.c.h.b16 %v1087
        %v1267 = vunpack.c.l.b16 %v1088
        %v1268 = vunpack.c.h.b16 %v1088
        %v1269 = vunpack.c.l.b16 %v1089
        %v1270 = vunpack.c.h.b16 %v1089
        %v1271 = vunpack.c.l.b16 %v1090
        %v1272 = vunpack.c.h.b16 %v1090
        %v1273 = vunpack.c.l.b16 %v1091
        %v1274 = vunpack.c.h.b16 %v1091
        %v1275 = vunpack.c.l.b16 %v1092
        %v1276 = vunpack.c.h.b16 %v1092
        %v1277 = vunpack.c.l.b16 %v1093
        %v1278 = vunpack.c.h.b16 %v1093
        %v1279 = vunpack.c.l.b16 %v1094
        %v1280 = vunpack.c.h.b16 %v1094
        %v1281 = vunpack.c.l.b16 %v1095
        %v1282 = vunpack.c.h.b16 %v1095
        %v1283 = vunpack.c.l.b16 %v1096
        %v1284 = vunpack.c.h.b16 %v1096
        %v1285 = vunpack.c.l.b16 %v1097
        %v1286 = vunpack.c.h.b16 %v1097
        %v1287 = vunpack.c.l.b16 %v1098
        %v1288 = vunpack.c.h.b16 %v1098
        %v1289 = vunpack.c.l.b16 %v1099
        %v1290 = vunpack.c.h.b16 %v1099
        %v1291 = vunpack.c.l.b16 %v1100
        %v1292 = vunpack.c.h.b16 %v1100
        %v1293 = vunpack.c.l.b16 %v1101
        %v1294 = vunpack.c.h.b16 %v1101
        %v1295 = vunpack.c.l.b16 %v1102
        %v1296 = vunpack.c.h.b16 %v1102
        %v1297 = vunpack.c.l.b16 %v1103
        %v1298 = vunpack.c.h.b16 %v1103
        %v1299 = vunpack.c.l.b16 %v1104
        %v1300 = vunpack.c.h.b16 %v1104
        %v1301 = vunpack.c.l.b16 %v1105
        %v1302 = vunpack.c.h.b16 %v1105
        %v1303 = vunpack.c.l.b16 %v1106
        %v1304 = vunpack.c.h.b16 %v1106
        %v1305 = vunpack.c.l.b16 %v1107
        %v1306 = vunpack.c.h.b16 %v1107
        %v1307 = vunpack.c.l.b16 %v1108
        %v1308 = vunpack.c.h.b16 %v1108
        %v1309 = vunpack.c.l.b16 %v1109
        %v1310 = vunpack.c.h.b16 %v1109
        %v1311 = vunpack.c.l.b16 %v1110
        %v1312 = vunpack.c.h.b16 %v1110
        %v1313 = vunpack.c.l.b16 %v1111
        %v1314 = vunpack.c.h.b16 %v1111
        %v1315 = vunpack.c.l.b16 %v1112
        %v1316 = vunpack.c.h.b16 %v1112
        %v1317 = vunpack.c.l.b16 %v1113
        %v1318 = vunpack.c.h.b16 %v1113
        %v1319 = vunpack.c.l.b16 %v1114
        %v1320 = vunpack.c.h.b16 %v1114
        %v1321 = vunpack.c.l.b16 %v1115
        %v1322 = vunpack.c.h.b16 %v1115
        %v1323 = vunpack.c.l.b16 %v1116
        %v1324 = vunpack.c.h.b16 %v1116
        %v1325 = vunpack.c.l.b16 %v1117
        %v1326 = vunpack.c.h.b16 %v1117
        %v1327 = vunpack.c.l.b16 %v1118
        %v1328 = vunpack.c.h.b16 %v1118
        %v1329 = vpack.c.b16 %v1209, %v1201
        %v1330 = vpack.c.b16 %v1210, %v1202
        %v1331 = vpack.c.b16 %v1211, %v1203
        %v1332 = vpack.c.b16 %v1212, %v1204
        %v1333 = vpack.c.b16 %v1213, %v1205
        %v1334 = vpack.c.b16 %v1214, %v1206
        %v1335 = vpack.c.b16 %v1215, %v1207
        %v1336 = vpack.c.b16 %v1216, %v1208
        %v1337 = vpack.c.b16 %v1225, %v1217
        %v1338 = vpack.c.b16 %v1226, %v1218
        %v1339 = vpack.c.b16 %v1227, %v1219
        %v1340 = vpack.c.b16 %v1228, %v1220
        %v1341 = vpack.c.b16 %v1229, %v1221
        %v1342 = vpack.c.b16 %v1230, %v1222
        %v1343 = vpack.c.b16 %v1231, %v1223
        %v1344 = vpack.c.b16 %v1232, %v1224
        %v1345 = vpack.c.b16 %v1241, %v1233
        %v1346 = vpack.c.b16 %v1242, %v1234
        %v1347 = vpack.c.b16 %v1243, %v1235
        %v1348 = vpack.c.b16 %v1244, %v1236
        %v1349 = vpack.c.b16 %v1245, %v1237
        %v1350 = vpack.c.b16 %v1246, %v1238
        %v1351 = vpack.c.b16 %v1247, %v1239
        %v1352 = vpack.c.b16 %v1248, %v1240
        %v1353 = vpack.c.b16 %v1257, %v1249
        %v1354 = vpack.c.b16 %v1258, %v1250
        %v1355 = vpack.c.b16 %v1259, %v1251
        %v1356 = vpack.c.b16 %v1260, %v1252
        %v1357 = vpack.c.b16 %v1261, %v1253
        %v1358 = vpack.c.b16 %v1262, %v1254
        %v1359 = vpack.c.b16 %v1263, %v1255
        %v1360 = vpack.c.b16 %v1264, %v1256
        %v1361 = vpack.c.b16 %v1273, %v1265
        %v1362 = vpack.c.b16 %v1274, %v1266
        %v1363 = vpack.c.b16 %v1275, %v1267
        %v1364 = vpack.c.b16 %v1276, %v1268
        %v1365 = vpack.c.b16 %v1277, %v1269
        %v1366 = vpack.c.b16 %v1278, %v1270
        %v1367 = vpack.c.b16 %v1279, %v1271
        %v1368 = vpack.c.b16 %v1280, %v1272
        %v1369 = vpack.c.b16 %v1289, %v1281
        %v1370 = vpack.c.b16 %v1290, %v1282
        %v1371 = vpack.c.b16 %v1291, %v1283
        %v1372 = vpack.c.b16 %v1292, %v1284
        %v1373 = vpack.c.b16 %v1293, %v1285
        %v1374 = vpack.c.b16 %v1294, %v1286
        %v1375 = vpack.c.b16 %v1295, %v1287
        %v1376 = vpack.c.b16 %v1296, %v1288
        %v1377 = vpack.c.b16 %v1305, %v1297
        %v1378 = vpack.c.b16 %v1306, %v1298
        %v1379 = vpack.c.b16 %v1307, %v1299
        %v1380 = vpack.c.b16 %v1308, %v1300
        %v1381 = vpack.c.b16 %v1309, %v1301
        %v1382 = vpack.c.b16 %v1310, %v1302
        %v1383 = vpack.c.b16 %v1311, %v1303
        %v1384 = vpack.c.b16 %v1312, %v1304
        %v1385 = vpack.c.b16 %v1321, %v1313
        %v1386 = vpack.c.b16 %v1322, %v1314
        %v1387 = vpack.c.b16 %v1323, %v1315
        %v1388 = vpack.c.b16 %v1324, %v1316
        %v1389 = vpack.c.b16 %v1325, %v1317
        %v1390 = vpack.c.b16 %v1326, %v1318
        %v1391 = vpack.c.b16 %v1327, %v1319
        %v1392 = vpack.c.b16 %v1328, %v1320
        %1457 = vmatpush.bf16.msra.mxu0 %v1385
        %1458 = vmatpush.bf16.msra.mxu0 %v1377
        %1459 = vmatpush.bf16.msra.mxu0 %v1369
        %1460 = vmatpush.bf16.msra.mxu0 %v1361
        %1461 = vmatpush.bf16.msra.mxu0 %v1353
        %1462 = vmatpush.bf16.msra.mxu0 %v1345
        %1463 = vmatpush.bf16.msra.mxu0 %v1337
        %1464 = vmatpush.bf16.msra.mxu0 %v1329
        %1465 = vmatmul.bf16.gmra.mxu0 %v1039
        %v1466 = vpop.f32.mrf.mxu0
        %v1467 = vadd.f32 %v1121, %v1466
        %v1468 = vpop.f32.mrf.mxu0
        %v1469 = vadd.f32 %v1121, %v1468
        %1470 = vmatmul.bf16.gmra.mxu0 %v1040
        %v1471 = vpop.f32.mrf.mxu0
        %v1472 = vadd.f32 %v1121, %v1471
        %v1473 = vpop.f32.mrf.mxu0
        %v1474 = vadd.f32 %v1121, %v1473
        %1475 = vmatmul.bf16.gmra.mxu0 %v1041
        %v1476 = vpop.f32.mrf.mxu0
        %v1477 = vadd.f32 %v1121, %v1476
        %v1478 = vpop.f32.mrf.mxu0
        %v1479 = vadd.f32 %v1121, %v1478
        %1480 = vmatmul.bf16.gmra.mxu0 %v1042
        %v1481 = vpop.f32.mrf.mxu0
        %v1482 = vadd.f32 %v1121, %v1481
        %v1483 = vpop.f32.mrf.mxu0
        %v1484 = vadd.f32 %v1121, %v1483
        %1485 = vmatmul.bf16.gmra.mxu0 %v1043
        %v1486 = vpop.f32.mrf.mxu0
        %v1487 = vadd.f32 %v1121, %v1486
        %v1488 = vpop.f32.mrf.mxu0
        %v1489 = vadd.f32 %v1121, %v1488
        %1490 = vmatmul.bf16.gmra.mxu0 %v1044
        %v1491 = vpop.f32.mrf.mxu0
        %v1492 = vadd.f32 %v1121, %v1491
        %v1493 = vpop.f32.mrf.mxu0
        %v1494 = vadd.f32 %v1121, %v1493
        %1495 = vmatmul.bf16.gmra.mxu0 %v1045
        %v1496 = vpop.f32.mrf.mxu0
        %v1497 = vadd.f32 %v1121, %v1496
        %v1498 = vpop.f32.mrf.mxu0
        %v1499 = vadd.f32 %v1121, %v1498
        %1500 = vmatmul.bf16.gmra.mxu0 %v1046
        %v1501 = vpop.f32.mrf.mxu0
        %v1502 = vadd.f32 %v1121, %v1501
        %v1503 = vpop.f32.mrf.mxu0
        %v1504 = vadd.f32 %v1121, %v1503
        %1505 = vmatmul.bf16.gmra.mxu0 %v1047
        %v1506 = vpop.f32.mrf.mxu0
        %v1507 = vadd.f32 %v1121, %v1506
        %v1508 = vpop.f32.mrf.mxu0
        %v1509 = vadd.f32 %v1121, %v1508
        %1510 = vmatmul.bf16.gmra.mxu0 %v1048
        %v1511 = vpop.f32.mrf.mxu0
        %v1512 = vadd.f32 %v1121, %v1511
        %v1513 = vpop.f32.mrf.mxu0
        %v1514 = vadd.f32 %v1121, %v1513
        %1515 = vmatmul.bf16.gmra.mxu0 %v1049
        %v1516 = vpop.f32.mrf.mxu0
        %v1517 = vadd.f32 %v1121, %v1516
        %v1518 = vpop.f32.mrf.mxu0
        %v1519 = vadd.f32 %v1121, %v1518
        %1520 = vmatmul.bf16.gmra.mxu0 %v1050
        %v1521 = vpop.f32.mrf.mxu0
        %v1522 = vadd.f32 %v1121, %v1521
        %v1523 = vpop.f32.mrf.mxu0
        %v1524 = vadd.f32 %v1121, %v1523
        %1525 = vmatmul.bf16.gmra.mxu0 %v1051
        %v1526 = vpop.f32.mrf.mxu0
        %v1527 = vadd.f32 %v1121, %v1526
        %v1528 = vpop.f32.mrf.mxu0
        %v1529 = vadd.f32 %v1121, %v1528
        %1530 = vmatmul.bf16.gmra.mxu0 %v1052
        %v1531 = vpop.f32.mrf.mxu0
        %v1532 = vadd.f32 %v1121, %v1531
        %v1533 = vpop.f32.mrf.mxu0
        %v1534 = vadd.f32 %v1121, %v1533
        %1535 = vmatmul.bf16.gmra.mxu0 %v1053
        %v1536 = vpop.f32.mrf.mxu0
        %v1537 = vadd.f32 %v1121, %v1536
        %v1538 = vpop.f32.mrf.mxu0
        %v1539 = vadd.f32 %v1121, %v1538
        %1540 = vmatmul.bf16.gmra.mxu0 %v1054
        %v1541 = vpop.f32.mrf.mxu0
        %v1542 = vadd.f32 %v1121, %v1541
        %v1543 = vpop.f32.mrf.mxu0
        %v1544 = vadd.f32 %v1121, %v1543
        %1545 = vdwg.mxu0
        %1546 = vmatpush.bf16.msra.mxu0 %v1386
        %1547 = vmatpush.bf16.msra.mxu0 %v1378
        %1548 = vmatpush.bf16.msra.mxu0 %v1370
        %1549 = vmatpush.bf16.msra.mxu0 %v1362
        %1550 = vmatpush.bf16.msra.mxu0 %v1354
        %1551 = vmatpush.bf16.msra.mxu0 %v1346
        %1552 = vmatpush.bf16.msra.mxu0 %v1338
        %1553 = vmatpush.bf16.msra.mxu0 %v1330
        %1554 = vmatmul.bf16.gmra.mxu0 %v1039
        %v1555 = vpop.f32.mrf.mxu0
        %v1556 = vadd.f32 %v1122, %v1555
        %v1557 = vpop.f32.mrf.mxu0
        %v1558 = vadd.f32 %v1122, %v1557
        %1559 = vmatmul.bf16.gmra.mxu0 %v1040
        %v1560 = vpop.f32.mrf.mxu0
        %v1561 = vadd.f32 %v1122, %v1560
        %v1562 = vpop.f32.mrf.mxu0
        %v1563 = vadd.f32 %v1122, %v1562
        %1564 = vmatmul.bf16.gmra.mxu0 %v1041
        %v1565 = vpop.f32.mrf.mxu0
        %v1566 = vadd.f32 %v1122, %v1565
        %v1567 = vpop.f32.mrf.mxu0
        %v1568 = vadd.f32 %v1122, %v1567
        %1569 = vmatmul.bf16.gmra.mxu0 %v1042
        %v1570 = vpop.f32.mrf.mxu0
        %v1571 = vadd.f32 %v1122, %v1570
        %v1572 = vpop.f32.mrf.mxu0
        %v1573 = vadd.f32 %v1122, %v1572
        %1574 = vmatmul.bf16.gmra.mxu0 %v1043
        %v1575 = vpop.f32.mrf.mxu0
        %v1576 = vadd.f32 %v1122, %v1575
        %v1577 = vpop.f32.mrf.mxu0
        %v1578 = vadd.f32 %v1122, %v1577
        %1579 = vmatmul.bf16.gmra.mxu0 %v1044
        %v1580 = vpop.f32.mrf.mxu0
        %v1581 = vadd.f32 %v1122, %v1580
        %v1582 = vpop.f32.mrf.mxu0
        %v1583 = vadd.f32 %v1122, %v1582
        %1584 = vmatmul.bf16.gmra.mxu0 %v1045
        %v1585 = vpop.f32.mrf.mxu0
        %v1586 = vadd.f32 %v1122, %v1585
        %v1587 = vpop.f32.mrf.mxu0
        %v1588 = vadd.f32 %v1122, %v1587
        %1589 = vmatmul.bf16.gmra.mxu0 %v1046
        %v1590 = vpop.f32.mrf.mxu0
        %v1591 = vadd.f32 %v1122, %v1590
        %v1592 = vpop.f32.mrf.mxu0
        %v1593 = vadd.f32 %v1122, %v1592
        %1594 = vmatmul.bf16.gmra.mxu0 %v1047
        %v1595 = vpop.f32.mrf.mxu0
        %v1596 = vadd.f32 %v1122, %v1595
        %v1597 = vpop.f32.mrf.mxu0
        %v1598 = vadd.f32 %v1122, %v1597
        %1599 = vmatmul.bf16.gmra.mxu0 %v1048
        %v1600 = vpop.f32.mrf.mxu0
        %v1601 = vadd.f32 %v1122, %v1600
        %v1602 = vpop.f32.mrf.mxu0
        %v1603 = vadd.f32 %v1122, %v1602
        %1604 = vmatmul.bf16.gmra.mxu0 %v1049
        %v1605 = vpop.f32.mrf.mxu0
        %v1606 = vadd.f32 %v1122, %v1605
        %v1607 = vpop.f32.mrf.mxu0
        %v1608 = vadd.f32 %v1122, %v1607
        %1609 = vmatmul.bf16.gmra.mxu0 %v1050
        %v1610 = vpop.f32.mrf.mxu0
        %v1611 = vadd.f32 %v1122, %v1610
        %v1612 = vpop.f32.mrf.mxu0
        %v1613 = vadd.f32 %v1122, %v1612
        %1614 = vmatmul.bf16.gmra.mxu0 %v1051
        %v1615 = vpop.f32.mrf.mxu0
        %v1616 = vadd.f32 %v1122, %v1615
        %v1617 = vpop.f32.mrf.mxu0
        %v1618 = vadd.f32 %v1122, %v1617
        %1619 = vmatmul.bf16.gmra.mxu0 %v1052
        %v1620 = vpop.f32.mrf.mxu0
        %v1621 = vadd.f32 %v1122, %v1620
        %v1622 = vpop.f32.mrf.mxu0
        %v1623 = vadd.f32 %v1122, %v1622
        %1624 = vmatmul.bf16.gmra.mxu0 %v1053
        %v1625 = vpop.f32.mrf.mxu0
        %v1626 = vadd.f32 %v1122, %v1625
        %v1627 = vpop.f32.mrf.mxu0
        %v1628 = vadd.f32 %v1122, %v1627
        %1629 = vmatmul.bf16.gmra.mxu0 %v1054
        %v1630 = vpop.f32.mrf.mxu0
        %v1631 = vadd.f32 %v1122, %v1630
        %v1632 = vpop.f32.mrf.mxu0
        %v1633 = vadd.f32 %v1122, %v1632
        %1634 = vdwg.mxu0
        %1635 = vmatpush.bf16.msra.mxu0 %v1387
        %1636 = vmatpush.bf16.msra.mxu0 %v1379
        %1637 = vmatpush.bf16.msra.mxu0 %v1371
        %1638 = vmatpush.bf16.msra.mxu0 %v1363
        %1639 = vmatpush.bf16.msra.mxu0 %v1355
        %1640 = vmatpush.bf16.msra.mxu0 %v1347
        %1641 = vmatpush.bf16.msra.mxu0 %v1339
        %1642 = vmatpush.bf16.msra.mxu0 %v1331
        %1643 = vmatmul.bf16.gmra.mxu0 %v1039
        %v1644 = vpop.f32.mrf.mxu0
        %v1645 = vadd.f32 %v1123, %v1644
        %v1646 = vpop.f32.mrf.mxu0
        %v1647 = vadd.f32 %v1123, %v1646
        %1648 = vmatmul.bf16.gmra.mxu0 %v1040
        %v1649 = vpop.f32.mrf.mxu0
        %v1650 = vadd.f32 %v1123, %v1649
        %v1651 = vpop.f32.mrf.mxu0
        %v1652 = vadd.f32 %v1123, %v1651
        %1653 = vmatmul.bf16.gmra.mxu0 %v1041
        %v1654 = vpop.f32.mrf.mxu0
        %v1655 = vadd.f32 %v1123, %v1654
        %v1656 = vpop.f32.mrf.mxu0
        %v1657 = vadd.f32 %v1123, %v1656
        %1658 = vmatmul.bf16.gmra.mxu0 %v1042
        %v1659 = vpop.f32.mrf.mxu0
        %v1660 = vadd.f32 %v1123, %v1659
        %v1661 = vpop.f32.mrf.mxu0
        %v1662 = vadd.f32 %v1123, %v1661
        %1663 = vmatmul.bf16.gmra.mxu0 %v1043
        %v1664 = vpop.f32.mrf.mxu0
        %v1665 = vadd.f32 %v1123, %v1664
        %v1666 = vpop.f32.mrf.mxu0
        %v1667 = vadd.f32 %v1123, %v1666
        %1668 = vmatmul.bf16.gmra.mxu0 %v1044
        %v1669 = vpop.f32.mrf.mxu0
        %v1670 = vadd.f32 %v1123, %v1669
        %v1671 = vpop.f32.mrf.mxu0
        %v1672 = vadd.f32 %v1123, %v1671
        %1673 = vmatmul.bf16.gmra.mxu0 %v1045
        %v1674 = vpop.f32.mrf.mxu0
        %v1675 = vadd.f32 %v1123, %v1674
        %v1676 = vpop.f32.mrf.mxu0
        %v1677 = vadd.f32 %v1123, %v1676
        %1678 = vmatmul.bf16.gmra.mxu0 %v1046
        %v1679 = vpop.f32.mrf.mxu0
        %v1680 = vadd.f32 %v1123, %v1679
        %v1681 = vpop.f32.mrf.mxu0
        %v1682 = vadd.f32 %v1123, %v1681
        %1683 = vmatmul.bf16.gmra.mxu0 %v1047
        %v1684 = vpop.f32.mrf.mxu0
        %v1685 = vadd.f32 %v1123, %v1684
        %v1686 = vpop.f32.mrf.mxu0
        %v1687 = vadd.f32 %v1123, %v1686
        %1688 = vmatmul.bf16.gmra.mxu0 %v1048
        %v1689 = vpop.f32.mrf.mxu0
        %v1690 = vadd.f32 %v1123, %v1689
        %v1691 = vpop.f32.mrf.mxu0
        %v1692 = vadd.f32 %v1123, %v1691
        %1693 = vmatmul.bf16.gmra.mxu0 %v1049
        %v1694 = vpop.f32.mrf.mxu0
        %v1695 = vadd.f32 %v1123, %v1694
        %v1696 = vpop.f32.mrf.mxu0
        %v1697 = vadd.f32 %v1123, %v1696
        %1698 = vmatmul.bf16.gmra.mxu0 %v1050
        %v1699 = vpop.f32.mrf.mxu0
        %v1700 = vadd.f32 %v1123, %v1699
        %v1701 = vpop.f32.mrf.mxu0
        %v1702 = vadd.f32 %v1123, %v1701
        %1703 = vmatmul.bf16.gmra.mxu0 %v1051
        %v1704 = vpop.f32.mrf.mxu0
        %v1705 = vadd.f32 %v1123, %v1704
        %v1706 = vpop.f32.mrf.mxu0
        %v1707 = vadd.f32 %v1123, %v1706
        %1708 = vmatmul.bf16.gmra.mxu0 %v1052
        %v1709 = vpop.f32.mrf.mxu0
        %v1710 = vadd.f32 %v1123, %v1709
        %v1711 = vpop.f32.mrf.mxu0
        %v1712 = vadd.f32 %v1123, %v1711
        %1713 = vmatmul.bf16.gmra.mxu0 %v1053
        %v1714 = vpop.f32.mrf.mxu0
        %v1715 = vadd.f32 %v1123, %v1714
        %v1716 = vpop.f32.mrf.mxu0
        %v1717 = vadd.f32 %v1123, %v1716
        %1718 = vmatmul.bf16.gmra.mxu0 %v1054
        %v1719 = vpop.f32.mrf.mxu0
        %v1720 = vadd.f32 %v1123, %v1719
        %v1721 = vpop.f32.mrf.mxu0
        %v1722 = vadd.f32 %v1123, %v1721
        %1723 = vdwg.mxu0
        %1724 = vmatpush.bf16.msra.mxu0 %v1388
        %1725 = vmatpush.bf16.msra.mxu0 %v1380
        %1726 = vmatpush.bf16.msra.mxu0 %v1372
        %1727 = vmatpush.bf16.msra.mxu0 %v1364
        %1728 = vmatpush.bf16.msra.mxu0 %v1356
        %1729 = vmatpush.bf16.msra.mxu0 %v1348
        %1730 = vmatpush.bf16.msra.mxu0 %v1340
        %1731 = vmatpush.bf16.msra.mxu0 %v1332
        %1732 = vmatmul.bf16.gmra.mxu0 %v1039
        %v1733 = vpop.f32.mrf.mxu0
        %v1734 = vadd.f32 %v1124, %v1733
        %v1735 = vpop.f32.mrf.mxu0
        %v1736 = vadd.f32 %v1124, %v1735
        %1737 = vmatmul.bf16.gmra.mxu0 %v1040
        %v1738 = vpop.f32.mrf.mxu0
        %v1739 = vadd.f32 %v1124, %v1738
        %v1740 = vpop.f32.mrf.mxu0
        %v1741 = vadd.f32 %v1124, %v1740
        %1742 = vmatmul.bf16.gmra.mxu0 %v1041
        %v1743 = vpop.f32.mrf.mxu0
        %v1744 = vadd.f32 %v1124, %v1743
        %v1745 = vpop.f32.mrf.mxu0
        %v1746 = vadd.f32 %v1124, %v1745
        %1747 = vmatmul.bf16.gmra.mxu0 %v1042
        %v1748 = vpop.f32.mrf.mxu0
        %v1749 = vadd.f32 %v1124, %v1748
        %v1750 = vpop.f32.mrf.mxu0
        %v1751 = vadd.f32 %v1124, %v1750
        %1752 = vmatmul.bf16.gmra.mxu0 %v1043
        %v1753 = vpop.f32.mrf.mxu0
        %v1754 = vadd.f32 %v1124, %v1753
        %v1755 = vpop.f32.mrf.mxu0
        %v1756 = vadd.f32 %v1124, %v1755
        %1757 = vmatmul.bf16.gmra.mxu0 %v1044
        %v1758 = vpop.f32.mrf.mxu0
        %v1759 = vadd.f32 %v1124, %v1758
        %v1760 = vpop.f32.mrf.mxu0
        %v1761 = vadd.f32 %v1124, %v1760
        %1762 = vmatmul.bf16.gmra.mxu0 %v1045
        %v1763 = vpop.f32.mrf.mxu0
        %v1764 = vadd.f32 %v1124, %v1763
        %v1765 = vpop.f32.mrf.mxu0
        %v1766 = vadd.f32 %v1124, %v1765
        %1767 = vmatmul.bf16.gmra.mxu0 %v1046
        %v1768 = vpop.f32.mrf.mxu0
        %v1769 = vadd.f32 %v1124, %v1768
        %v1770 = vpop.f32.mrf.mxu0
        %v1771 = vadd.f32 %v1124, %v1770
        %1772 = vmatmul.bf16.gmra.mxu0 %v1047
        %v1773 = vpop.f32.mrf.mxu0
        %v1774 = vadd.f32 %v1124, %v1773
        %v1775 = vpop.f32.mrf.mxu0
        %v1776 = vadd.f32 %v1124, %v1775
        %1777 = vmatmul.bf16.gmra.mxu0 %v1048
        %v1778 = vpop.f32.mrf.mxu0
        %v1779 = vadd.f32 %v1124, %v1778
        %v1780 = vpop.f32.mrf.mxu0
        %v1781 = vadd.f32 %v1124, %v1780
        %1782 = vmatmul.bf16.gmra.mxu0 %v1049
        %v1783 = vpop.f32.mrf.mxu0
        %v1784 = vadd.f32 %v1124, %v1783
        %v1785 = vpop.f32.mrf.mxu0
        %v1786 = vadd.f32 %v1124, %v1785
        %1787 = vmatmul.bf16.gmra.mxu0 %v1050
        %v1788 = vpop.f32.mrf.mxu0
        %v1789 = vadd.f32 %v1124, %v1788
        %v1790 = vpop.f32.mrf.mxu0
        %v1791 = vadd.f32 %v1124, %v1790
        %1792 = vmatmul.bf16.gmra.mxu0 %v1051
        %v1793 = vpop.f32.mrf.mxu0
        %v1794 = vadd.f32 %v1124, %v1793
        %v1795 = vpop.f32.mrf.mxu0
        %v1796 = vadd.f32 %v1124, %v1795
        %1797 = vmatmul.bf16.gmra.mxu0 %v1052
        %v1798 = vpop.f32.mrf.mxu0
        %v1799 = vadd.f32 %v1124, %v1798
        %v1800 = vpop.f32.mrf.mxu0
        %v1801 = vadd.f32 %v1124, %v1800
        %1802 = vmatmul.bf16.gmra.mxu0 %v1053
        %v1803 = vpop.f32.mrf.mxu0
        %v1804 = vadd.f32 %v1124, %v1803
        %v1805 = vpop.f32.mrf.mxu0
        %v1806 = vadd.f32 %v1124, %v1805
        %1807 = vmatmul.bf16.gmra.mxu0 %v1054
        %v1808 = vpop.f32.mrf.mxu0
        %v1809 = vadd.f32 %v1124, %v1808
        %v1810 = vpop.f32.mrf.mxu0
        %v1811 = vadd.f32 %v1124, %v1810
        %1812 = vdwg.mxu0
        %1813 = vmatpush.bf16.msra.mxu0 %v1389
        %1814 = vmatpush.bf16.msra.mxu0 %v1381
        %1815 = vmatpush.bf16.msra.mxu0 %v1373
        %1816 = vmatpush.bf16.msra.mxu0 %v1365
        %1817 = vmatpush.bf16.msra.mxu0 %v1357
        %1818 = vmatpush.bf16.msra.mxu0 %v1349
        %1819 = vmatpush.bf16.msra.mxu0 %v1341
        %1820 = vmatpush.bf16.msra.mxu0 %v1333
        %1821 = vmatmul.bf16.gmra.mxu0 %v1039
        %v1822 = vpop.f32.mrf.mxu0
        %v1823 = vadd.f32 %v1125, %v1822
        %v1824 = vpop.f32.mrf.mxu0
        %v1825 = vadd.f32 %v1125, %v1824
        %1826 = vmatmul.bf16.gmra.mxu0 %v1040
        %v1827 = vpop.f32.mrf.mxu0
        %v1828 = vadd.f32 %v1125, %v1827
        %v1829 = vpop.f32.mrf.mxu0
        %v1830 = vadd.f32 %v1125, %v1829
        %1831 = vmatmul.bf16.gmra.mxu0 %v1041
        %v1832 = vpop.f32.mrf.mxu0
        %v1833 = vadd.f32 %v1125, %v1832
        %v1834 = vpop.f32.mrf.mxu0
        %v1835 = vadd.f32 %v1125, %v1834
        %1836 = vmatmul.bf16.gmra.mxu0 %v1042
        %v1837 = vpop.f32.mrf.mxu0
        %v1838 = vadd.f32 %v1125, %v1837
        %v1839 = vpop.f32.mrf.mxu0
        %v1840 = vadd.f32 %v1125, %v1839
        %1841 = vmatmul.bf16.gmra.mxu0 %v1043
        %v1842 = vpop.f32.mrf.mxu0
        %v1843 = vadd.f32 %v1125, %v1842
        %v1844 = vpop.f32.mrf.mxu0
        %v1845 = vadd.f32 %v1125, %v1844
        %1846 = vmatmul.bf16.gmra.mxu0 %v1044
        %v1847 = vpop.f32.mrf.mxu0
        %v1848 = vadd.f32 %v1125, %v1847
        %v1849 = vpop.f32.mrf.mxu0
        %v1850 = vadd.f32 %v1125, %v1849
        %1851 = vmatmul.bf16.gmra.mxu0 %v1045
        %v1852 = vpop.f32.mrf.mxu0
        %v1853 = vadd.f32 %v1125, %v1852
        %v1854 = vpop.f32.mrf.mxu0
        %v1855 = vadd.f32 %v1125, %v1854
        %1856 = vmatmul.bf16.gmra.mxu0 %v1046
        %v1857 = vpop.f32.mrf.mxu0
        %v1858 = vadd.f32 %v1125, %v1857
        %v1859 = vpop.f32.mrf.mxu0
        %v1860 = vadd.f32 %v1125, %v1859
        %1861 = vmatmul.bf16.gmra.mxu0 %v1047
        %v1862 = vpop.f32.mrf.mxu0
        %v1863 = vadd.f32 %v1125, %v1862
        %v1864 = vpop.f32.mrf.mxu0
        %v1865 = vadd.f32 %v1125, %v1864
        %1866 = vmatmul.bf16.gmra.mxu0 %v1048
        %v1867 = vpop.f32.mrf.mxu0
        %v1868 = vadd.f32 %v1125, %v1867
        %v1869 = vpop.f32.mrf.mxu0
        %v1870 = vadd.f32 %v1125, %v1869
        %1871 = vmatmul.bf16.gmra.mxu0 %v1049
        %v1872 = vpop.f32.mrf.mxu0
        %v1873 = vadd.f32 %v1125, %v1872
        %v1874 = vpop.f32.mrf.mxu0
        %v1875 = vadd.f32 %v1125, %v1874
        %1876 = vmatmul.bf16.gmra.mxu0 %v1050
        %v1877 = vpop.f32.mrf.mxu0
        %v1878 = vadd.f32 %v1125, %v1877
        %v1879 = vpop.f32.mrf.mxu0
        %v1880 = vadd.f32 %v1125, %v1879
        %1881 = vmatmul.bf16.gmra.mxu0 %v1051
        %v1882 = vpop.f32.mrf.mxu0
        %v1883 = vadd.f32 %v1125, %v1882
        %v1884 = vpop.f32.mrf.mxu0
        %v1885 = vadd.f32 %v1125, %v1884
        %1886 = vmatmul.bf16.gmra.mxu0 %v1052
        %v1887 = vpop.f32.mrf.mxu0
        %v1888 = vadd.f32 %v1125, %v1887
        %v1889 = vpop.f32.mrf.mxu0
        %v1890 = vadd.f32 %v1125, %v1889
        %1891 = vmatmul.bf16.gmra.mxu0 %v1053
        %v1892 = vpop.f32.mrf.mxu0
        %v1893 = vadd.f32 %v1125, %v1892
        %v1894 = vpop.f32.mrf.mxu0
        %v1895 = vadd.f32 %v1125, %v1894
        %1896 = vmatmul.bf16.gmra.mxu0 %v1054
        %v1897 = vpop.f32.mrf.mxu0
        %v1898 = vadd.f32 %v1125, %v1897
        %v1899 = vpop.f32.mrf.mxu0
        %v1900 = vadd.f32 %v1125, %v1899
        %1901 = vdwg.mxu0
        %1902 = vmatpush.bf16.msra.mxu0 %v1390
        %1903 = vmatpush.bf16.msra.mxu0 %v1382
        %1904 = vmatpush.bf16.msra.mxu0 %v1374
        %1905 = vmatpush.bf16.msra.mxu0 %v1366
        %1906 = vmatpush.bf16.msra.mxu0 %v1358
        %1907 = vmatpush.bf16.msra.mxu0 %v1350
        %1908 = vmatpush.bf16.msra.mxu0 %v1342
        %1909 = vmatpush.bf16.msra.mxu0 %v1334
        %1910 = vmatmul.bf16.gmra.mxu0 %v1039
        %v1911 = vpop.f32.mrf.mxu0
        %v1912 = vadd.f32 %v1126, %v1911
        %v1913 = vpop.f32.mrf.mxu0
        %v1914 = vadd.f32 %v1126, %v1913
        %1915 = vmatmul.bf16.gmra.mxu0 %v1040
        %v1916 = vpop.f32.mrf.mxu0
        %v1917 = vadd.f32 %v1126, %v1916
        %v1918 = vpop.f32.mrf.mxu0
        %v1919 = vadd.f32 %v1126, %v1918
        %1920 = vmatmul.bf16.gmra.mxu0 %v1041
        %v1921 = vpop.f32.mrf.mxu0
        %v1922 = vadd.f32 %v1126, %v1921
        %v1923 = vpop.f32.mrf.mxu0
        %v1924 = vadd.f32 %v1126, %v1923
        %1925 = vmatmul.bf16.gmra.mxu0 %v1042
        %v1926 = vpop.f32.mrf.mxu0
        %v1927 = vadd.f32 %v1126, %v1926
        %v1928 = vpop.f32.mrf.mxu0
        %v1929 = vadd.f32 %v1126, %v1928
        %1930 = vmatmul.bf16.gmra.mxu0 %v1043
        %v1931 = vpop.f32.mrf.mxu0
        %v1932 = vadd.f32 %v1126, %v1931
        %v1933 = vpop.f32.mrf.mxu0
        %v1934 = vadd.f32 %v1126, %v1933
        %1935 = vmatmul.bf16.gmra.mxu0 %v1044
        %v1936 = vpop.f32.mrf.mxu0
        %v1937 = vadd.f32 %v1126, %v1936
        %v1938 = vpop.f32.mrf.mxu0
        %v1939 = vadd.f32 %v1126, %v1938
        %1940 = vmatmul.bf16.gmra.mxu0 %v1045
        %v1941 = vpop.f32.mrf.mxu0
        %v1942 = vadd.f32 %v1126, %v1941
        %v1943 = vpop.f32.mrf.mxu0
        %v1944 = vadd.f32 %v1126, %v1943
        %1945 = vmatmul.bf16.gmra.mxu0 %v1046
        %v1946 = vpop.f32.mrf.mxu0
        %v1947 = vadd.f32 %v1126, %v1946
        %v1948 = vpop.f32.mrf.mxu0
        %v1949 = vadd.f32 %v1126, %v1948
        %1950 = vmatmul.bf16.gmra.mxu0 %v1047
        %v1951 = vpop.f32.mrf.mxu0
        %v1952 = vadd.f32 %v1126, %v1951
        %v1953 = vpop.f32.mrf.mxu0
        %v1954 = vadd.f32 %v1126, %v1953
        %1955 = vmatmul.bf16.gmra.mxu0 %v1048
        %v1956 = vpop.f32.mrf.mxu0
        %v1957 = vadd.f32 %v1126, %v1956
        %v1958 = vpop.f32.mrf.mxu0
        %v1959 = vadd.f32 %v1126, %v1958
        %1960 = vmatmul.bf16.gmra.mxu0 %v1049
        %v1961 = vpop.f32.mrf.mxu0
        %v1962 = vadd.f32 %v1126, %v1961
        %v1963 = vpop.f32.mrf.mxu0
        %v1964 = vadd.f32 %v1126, %v1963
        %1965 = vmatmul.bf16.gmra.mxu0 %v1050
        %v1966 = vpop.f32.mrf.mxu0
        %v1967 = vadd.f32 %v1126, %v1966
        %v1968 = vpop.f32.mrf.mxu0
        %v1969 = vadd.f32 %v1126, %v1968
        %1970 = vmatmul.bf16.gmra.mxu0 %v1051
        %v1971 = vpop.f32.mrf.mxu0
        %v1972 = vadd.f32 %v1126, %v1971
        %v1973 = vpop.f32.mrf.mxu0
        %v1974 = vadd.f32 %v1126, %v1973
        %1975 = vmatmul.bf16.gmra.mxu0 %v1052
        %v1976 = vpop.f32.mrf.mxu0
        %v1977 = vadd.f32 %v1126, %v1976
        %v1978 = vpop.f32.mrf.mxu0
        %v1979 = vadd.f32 %v1126, %v1978
        %1980 = vmatmul.bf16.gmra.mxu0 %v1053
        %v1981 = vpop.f32.mrf.mxu0
        %v1982 = vadd.f32 %v1126, %v1981
        %v1983 = vpop.f32.mrf.mxu0
        %v1984 = vadd.f32 %v1126, %v1983
        %1985 = vmatmul.bf16.gmra.mxu0 %v1054
        %v1986 = vpop.f32.mrf.mxu0
        %v1987 = vadd.f32 %v1126, %v1986
        %v1988 = vpop.f32.mrf.mxu0
        %v1989 = vadd.f32 %v1126, %v1988
        %1990 = vdwg.mxu0
        %1991 = vmatpush.bf16.msra.mxu0 %v1391
        %1992 = vmatpush.bf16.msra.mxu0 %v1383
        %1993 = vmatpush.bf16.msra.mxu0 %v1375
        %1994 = vmatpush.bf16.msra.mxu0 %v1367
        %1995 = vmatpush.bf16.msra.mxu0 %v1359
        %1996 = vmatpush.bf16.msra.mxu0 %v1351
        %1997 = vmatpush.bf16.msra.mxu0 %v1343
        %1998 = vmatpush.bf16.msra.mxu0 %v1335
        %1999 = vmatmul.bf16.gmra.mxu0 %v1039
        %v2000 = vpop.f32.mrf.mxu0
        %v2001 = vadd.f32 %v1127, %v2000
        %v2002 = vpop.f32.mrf.mxu0
        %v2003 = vadd.f32 %v1127, %v2002
        %2004 = vmatmul.bf16.gmra.mxu0 %v1040
        %v2005 = vpop.f32.mrf.mxu0
        %v2006 = vadd.f32 %v1127, %v2005
        %v2007 = vpop.f32.mrf.mxu0
        %v2008 = vadd.f32 %v1127, %v2007
        %2009 = vmatmul.bf16.gmra.mxu0 %v1041
        %v2010 = vpop.f32.mrf.mxu0
        %v2011 = vadd.f32 %v1127, %v2010
        %v2012 = vpop.f32.mrf.mxu0
        %v2013 = vadd.f32 %v1127, %v2012
        %2014 = vmatmul.bf16.gmra.mxu0 %v1042
        %v2015 = vpop.f32.mrf.mxu0
        %v2016 = vadd.f32 %v1127, %v2015
        %v2017 = vpop.f32.mrf.mxu0
        %v2018 = vadd.f32 %v1127, %v2017
        %2019 = vmatmul.bf16.gmra.mxu0 %v1043
        %v2020 = vpop.f32.mrf.mxu0
        %v2021 = vadd.f32 %v1127, %v2020
        %v2022 = vpop.f32.mrf.mxu0
        %v2023 = vadd.f32 %v1127, %v2022
        %2024 = vmatmul.bf16.gmra.mxu0 %v1044
        %v2025 = vpop.f32.mrf.mxu0
        %v2026 = vadd.f32 %v1127, %v2025
        %v2027 = vpop.f32.mrf.mxu0
        %v2028 = vadd.f32 %v1127, %v2027
        %2029 = vmatmul.bf16.gmra.mxu0 %v1045
        %v2030 = vpop.f32.mrf.mxu0
        %v2031 = vadd.f32 %v1127, %v2030
        %v2032 = vpop.f32.mrf.mxu0
        %v2033 = vadd.f32 %v1127, %v2032
        %2034 = vmatmul.bf16.gmra.mxu0 %v1046
        %v2035 = vpop.f32.mrf.mxu0
        %v2036 = vadd.f32 %v1127, %v2035
        %v2037 = vpop.f32.mrf.mxu0
        %v2038 = vadd.f32 %v1127, %v2037
        %2039 = vmatmul.bf16.gmra.mxu0 %v1047
        %v2040 = vpop.f32.mrf.mxu0
        %v2041 = vadd.f32 %v1127, %v2040
        %v2042 = vpop.f32.mrf.mxu0
        %v2043 = vadd.f32 %v1127, %v2042
        %2044 = vmatmul.bf16.gmra.mxu0 %v1048
        %v2045 = vpop.f32.mrf.mxu0
        %v2046 = vadd.f32 %v1127, %v2045
        %v2047 = vpop.f32.mrf.mxu0
        %v2048 = vadd.f32 %v1127, %v2047
        %2049 = vmatmul.bf16.gmra.mxu0 %v1049
        %v2050 = vpop.f32.mrf.mxu0
        %v2051 = vadd.f32 %v1127, %v2050
        %v2052 = vpop.f32.mrf.mxu0
        %v2053 = vadd.f32 %v1127, %v2052
        %2054 = vmatmul.bf16.gmra.mxu0 %v1050
        %v2055 = vpop.f32.mrf.mxu0
        %v2056 = vadd.f32 %v1127, %v2055
        %v2057 = vpop.f32.mrf.mxu0
        %v2058 = vadd.f32 %v1127, %v2057
        %2059 = vmatmul.bf16.gmra.mxu0 %v1051
        %v2060 = vpop.f32.mrf.mxu0
        %v2061 = vadd.f32 %v1127, %v2060
        %v2062 = vpop.f32.mrf.mxu0
        %v2063 = vadd.f32 %v1127, %v2062
        %2064 = vmatmul.bf16.gmra.mxu0 %v1052
        %v2065 = vpop.f32.mrf.mxu0
        %v2066 = vadd.f32 %v1127, %v2065
        %v2067 = vpop.f32.mrf.mxu0
        %v2068 = vadd.f32 %v1127, %v2067
        %2069 = vmatmul.bf16.gmra.mxu0 %v1053
        %v2070 = vpop.f32.mrf.mxu0
        %v2071 = vadd.f32 %v1127, %v2070
        %v2072 = vpop.f32.mrf.mxu0
        %v2073 = vadd.f32 %v1127, %v2072
        %2074 = vmatmul.bf16.gmra.mxu0 %v1054
        %v2075 = vpop.f32.mrf.mxu0
        %v2076 = vadd.f32 %v1127, %v2075
        %v2077 = vpop.f32.mrf.mxu0
        %v2078 = vadd.f32 %v1127, %v2077
        %2079 = vdwg.mxu0
        %2080 = vmatpush.bf16.msra.mxu0 %v1392
        %2081 = vmatpush.bf16.msra.mxu0 %v1384
        %2082 = vmatpush.bf16.msra.mxu0 %v1376
        %2083 = vmatpush.bf16.msra.mxu0 %v1368
        %2084 = vmatpush.bf16.msra.mxu0 %v1360
        %2085 = vmatpush.bf16.msra.mxu0 %v1352
        %2086 = vmatpush.bf16.msra.mxu0 %v1344
        %2087 = vmatpush.bf16.msra.mxu0 %v1336
        %2088 = vmatmul.bf16.gmra.mxu0 %v1039
        %v2089 = vpop.f32.mrf.mxu0
        %v2090 = vadd.f32 %v1128, %v2089
        %v2091 = vpop.f32.mrf.mxu0
        %v2092 = vadd.f32 %v1128, %v2091
        %2093 = vmatmul.bf16.gmra.mxu0 %v1040
        %v2094 = vpop.f32.mrf.mxu0
        %v2095 = vadd.f32 %v1128, %v2094
        %v2096 = vpop.f32.mrf.mxu0
        %v2097 = vadd.f32 %v1128, %v2096
        %2098 = vmatmul.bf16.gmra.mxu0 %v1041
        %v2099 = vpop.f32.mrf.mxu0
        %v2100 = vadd.f32 %v1128, %v2099
        %v2101 = vpop.f32.mrf.mxu0
        %v2102 = vadd.f32 %v1128, %v2101
        %2103 = vmatmul.bf16.gmra.mxu0 %v1042
        %v2104 = vpop.f32.mrf.mxu0
        %v2105 = vadd.f32 %v1128, %v2104
        %v2106 = vpop.f32.mrf.mxu0
        %v2107 = vadd.f32 %v1128, %v2106
        %2108 = vmatmul.bf16.gmra.mxu0 %v1043
        %v2109 = vpop.f32.mrf.mxu0
        %v2110 = vadd.f32 %v1128, %v2109
        %v2111 = vpop.f32.mrf.mxu0
        %v2112 = vadd.f32 %v1128, %v2111
        %2113 = vmatmul.bf16.gmra.mxu0 %v1044
        %v2114 = vpop.f32.mrf.mxu0
        %v2115 = vadd.f32 %v1128, %v2114
        %v2116 = vpop.f32.mrf.mxu0
        %v2117 = vadd.f32 %v1128, %v2116
        %2118 = vmatmul.bf16.gmra.mxu0 %v1045
        %v2119 = vpop.f32.mrf.mxu0
        %v2120 = vadd.f32 %v1128, %v2119
        %v2121 = vpop.f32.mrf.mxu0
        %v2122 = vadd.f32 %v1128, %v2121
        %2123 = vmatmul.bf16.gmra.mxu0 %v1046
        %v2124 = vpop.f32.mrf.mxu0
        %v2125 = vadd.f32 %v1128, %v2124
        %v2126 = vpop.f32.mrf.mxu0
        %v2127 = vadd.f32 %v1128, %v2126
        %2128 = vmatmul.bf16.gmra.mxu0 %v1047
        %v2129 = vpop.f32.mrf.mxu0
        %v2130 = vadd.f32 %v1128, %v2129
        %v2131 = vpop.f32.mrf.mxu0
        %v2132 = vadd.f32 %v1128, %v2131
        %2133 = vmatmul.bf16.gmra.mxu0 %v1048
        %v2134 = vpop.f32.mrf.mxu0
        %v2135 = vadd.f32 %v1128, %v2134
        %v2136 = vpop.f32.mrf.mxu0
        %v2137 = vadd.f32 %v1128, %v2136
        %2138 = vmatmul.bf16.gmra.mxu0 %v1049
        %v2139 = vpop.f32.mrf.mxu0
        %v2140 = vadd.f32 %v1128, %v2139
        %v2141 = vpop.f32.mrf.mxu0
        %v2142 = vadd.f32 %v1128, %v2141
        %2143 = vmatmul.bf16.gmra.mxu0 %v1050
        %v2144 = vpop.f32.mrf.mxu0
        %v2145 = vadd.f32 %v1128, %v2144
        %v2146 = vpop.f32.mrf.mxu0
        %v2147 = vadd.f32 %v1128, %v2146
        %2148 = vmatmul.bf16.gmra.mxu0 %v1051
        %v2149 = vpop.f32.mrf.mxu0
        %v2150 = vadd.f32 %v1128, %v2149
        %v2151 = vpop.f32.mrf.mxu0
        %v2152 = vadd.f32 %v1128, %v2151
        %2153 = vmatmul.bf16.gmra.mxu0 %v1052
        %v2154 = vpop.f32.mrf.mxu0
        %v2155 = vadd.f32 %v1128, %v2154
        %v2156 = vpop.f32.mrf.mxu0
        %v2157 = vadd.f32 %v1128, %v2156
        %2158 = vmatmul.bf16.gmra.mxu0 %v1053
        %v2159 = vpop.f32.mrf.mxu0
        %v2160 = vadd.f32 %v1128, %v2159
        %v2161 = vpop.f32.mrf.mxu0
        %v2162 = vadd.f32 %v1128, %v2161
        %2163 = vmatmul.bf16.gmra.mxu0 %v1054
        %v2164 = vpop.f32.mrf.mxu0
        %v2165 = vadd.f32 %v1128, %v2164
        %v2166 = vpop.f32.mrf.mxu0
        %v2167 = vadd.f32 %v1128, %v2166
        %2168 = vdwg.mxu0
        %v2169 = vmax.f32 %v1467, 0.0
        %v2170 = vmax.f32 %v1556, 0.0
        %v2171 = vmax.f32 %v1645, 0.0
        %v2172 = vmax.f32 %v1734, 0.0
        %v2173 = vmax.f32 %v1823, 0.0
        %v2174 = vmax.f32 %v1912, 0.0
        %v2175 = vmax.f32 %v2001, 0.0
        %v2176 = vmax.f32 %v2090, 0.0
        %v2177 = vmax.f32 %v1469, 0.0
        %v2178 = vmax.f32 %v1558, 0.0
        %v2179 = vmax.f32 %v1647, 0.0
        %v2180 = vmax.f32 %v1736, 0.0
        %v2181 = vmax.f32 %v1825, 0.0
        %v2182 = vmax.f32 %v1914, 0.0
        %v2183 = vmax.f32 %v2003, 0.0
        %v2184 = vmax.f32 %v2092, 0.0
        %v2185 = vmax.f32 %v1472, 0.0
        %v2186 = vmax.f32 %v1561, 0.0
        %v2187 = vmax.f32 %v1650, 0.0
        %v2188 = vmax.f32 %v1739, 0.0
        %v2189 = vmax.f32 %v1828, 0.0
        %v2190 = vmax.f32 %v1917, 0.0
        %v2191 = vmax.f32 %v2006, 0.0
        %v2192 = vmax.f32 %v2095, 0.0
        %v2193 = vmax.f32 %v1474, 0.0
        %v2194 = vmax.f32 %v1563, 0.0
        %v2195 = vmax.f32 %v1652, 0.0
        %v2196 = vmax.f32 %v1741, 0.0
        %v2197 = vmax.f32 %v1830, 0.0
        %v2198 = vmax.f32 %v1919, 0.0
        %v2199 = vmax.f32 %v2008, 0.0
        %v2200 = vmax.f32 %v2097, 0.0
        %v2201 = vmax.f32 %v1477, 0.0
        %v2202 = vmax.f32 %v1566, 0.0
        %v2203 = vmax.f32 %v1655, 0.0
        %v2204 = vmax.f32 %v1744, 0.0
        %v2205 = vmax.f32 %v1833, 0.0
        %v2206 = vmax.f32 %v1922, 0.0
        %v2207 = vmax.f32 %v2011, 0.0
        %v2208 = vmax.f32 %v2100, 0.0
        %v2209 = vmax.f32 %v1479, 0.0
        %v2210 = vmax.f32 %v1568, 0.0
        %v2211 = vmax.f32 %v1657, 0.0
        %v2212 = vmax.f32 %v1746, 0.0
        %v2213 = vmax.f32 %v1835, 0.0
        %v2214 = vmax.f32 %v1924, 0.0
        %v2215 = vmax.f32 %v2013, 0.0
        %v2216 = vmax.f32 %v2102, 0.0
        %v2217 = vmax.f32 %v1482, 0.0
        %v2218 = vmax.f32 %v1571, 0.0
        %v2219 = vmax.f32 %v1660, 0.0
        %v2220 = vmax.f32 %v1749, 0.0
        %v2221 = vmax.f32 %v1838, 0.0
        %v2222 = vmax.f32 %v1927, 0.0
        %v2223 = vmax.f32 %v2016, 0.0
        %v2224 = vmax.f32 %v2105, 0.0
        %v2225 = vmax.f32 %v1484, 0.0
        %v2226 = vmax.f32 %v1573, 0.0
        %v2227 = vmax.f32 %v1662, 0.0
        %v2228 = vmax.f32 %v1751, 0.0
        %v2229 = vmax.f32 %v1840, 0.0
        %v2230 = vmax.f32 %v1929, 0.0
        %v2231 = vmax.f32 %v2018, 0.0
        %v2232 = vmax.f32 %v2107, 0.0
        %v2233 = vmax.f32 %v1487, 0.0
        %v2234 = vmax.f32 %v1576, 0.0
        %v2235 = vmax.f32 %v1665, 0.0
        %v2236 = vmax.f32 %v1754, 0.0
        %v2237 = vmax.f32 %v1843, 0.0
        %v2238 = vmax.f32 %v1932, 0.0
        %v2239 = vmax.f32 %v2021, 0.0
        %v2240 = vmax.f32 %v2110, 0.0
        %v2241 = vmax.f32 %v1489, 0.0
        %v2242 = vmax.f32 %v1578, 0.0
        %v2243 = vmax.f32 %v1667, 0.0
        %v2244 = vmax.f32 %v1756, 0.0
        %v2245 = vmax.f32 %v1845, 0.0
        %v2246 = vmax.f32 %v1934, 0.0
        %v2247 = vmax.f32 %v2023, 0.0
        %v2248 = vmax.f32 %v2112, 0.0
        %v2249 = vmax.f32 %v1492, 0.0
        %v2250 = vmax.f32 %v1581, 0.0
        %v2251 = vmax.f32 %v1670, 0.0
        %v2252 = vmax.f32 %v1759, 0.0
        %v2253 = vmax.f32 %v1848, 0.0
        %v2254 = vmax.f32 %v1937, 0.0
        %v2255 = vmax.f32 %v2026, 0.0
        %v2256 = vmax.f32 %v2115, 0.0
        %v2257 = vmax.f32 %v1494, 0.0
        %v2258 = vmax.f32 %v1583, 0.0
        %v2259 = vmax.f32 %v1672, 0.0
        %v2260 = vmax.f32 %v1761, 0.0
        %v2261 = vmax.f32 %v1850, 0.0
        %v2262 = vmax.f32 %v1939, 0.0
        %v2263 = vmax.f32 %v2028, 0.0
        %v2264 = vmax.f32 %v2117, 0.0
        %v2265 = vmax.f32 %v1497, 0.0
        %v2266 = vmax.f32 %v1586, 0.0
        %v2267 = vmax.f32 %v1675, 0.0
        %v2268 = vmax.f32 %v1764, 0.0
        %v2269 = vmax.f32 %v1853, 0.0
        %v2270 = vmax.f32 %v1942, 0.0
        %v2271 = vmax.f32 %v2031, 0.0
        %v2272 = vmax.f32 %v2120, 0.0
        %v2273 = vmax.f32 %v1499, 0.0
        %v2274 = vmax.f32 %v1588, 0.0
        %v2275 = vmax.f32 %v1677, 0.0
        %v2276 = vmax.f32 %v1766, 0.0
        %v2277 = vmax.f32 %v1855, 0.0
        %v2278 = vmax.f32 %v1944, 0.0
        %v2279 = vmax.f32 %v2033, 0.0
        %v2280 = vmax.f32 %v2122, 0.0
        %v2281 = vmax.f32 %v1502, 0.0
        %v2282 = vmax.f32 %v1591, 0.0
        %v2283 = vmax.f32 %v1680, 0.0
        %v2284 = vmax.f32 %v1769, 0.0
        %v2285 = vmax.f32 %v1858, 0.0
        %v2286 = vmax.f32 %v1947, 0.0
        %v2287 = vmax.f32 %v2036, 0.0
        %v2288 = vmax.f32 %v2125, 0.0
        %v2289 = vmax.f32 %v1504, 0.0
        %v2290 = vmax.f32 %v1593, 0.0
        %v2291 = vmax.f32 %v1682, 0.0
        %v2292 = vmax.f32 %v1771, 0.0
        %v2293 = vmax.f32 %v1860, 0.0
        %v2294 = vmax.f32 %v1949, 0.0
        %v2295 = vmax.f32 %v2038, 0.0
        %v2296 = vmax.f32 %v2127, 0.0
        %v2297 = vmax.f32 %v1507, 0.0
        %v2298 = vmax.f32 %v1596, 0.0
        %v2299 = vmax.f32 %v1685, 0.0
        %v2300 = vmax.f32 %v1774, 0.0
        %v2301 = vmax.f32 %v1863, 0.0
        %v2302 = vmax.f32 %v1952, 0.0
        %v2303 = vmax.f32 %v2041, 0.0
        %v2304 = vmax.f32 %v2130, 0.0
        %v2305 = vmax.f32 %v1509, 0.0
        %v2306 = vmax.f32 %v1598, 0.0
        %v2307 = vmax.f32 %v1687, 0.0
        %v2308 = vmax.f32 %v1776, 0.0
        %v2309 = vmax.f32 %v1865, 0.0
        %v2310 = vmax.f32 %v1954, 0.0
        %v2311 = vmax.f32 %v2043, 0.0
        %v2312 = vmax.f32 %v2132, 0.0
        %v2313 = vmax.f32 %v1512, 0.0
        %v2314 = vmax.f32 %v1601, 0.0
        %v2315 = vmax.f32 %v1690, 0.0
        %v2316 = vmax.f32 %v1779, 0.0
        %v2317 = vmax.f32 %v1868, 0.0
        %v2318 = vmax.f32 %v1957, 0.0
        %v2319 = vmax.f32 %v2046, 0.0
        %v2320 = vmax.f32 %v2135, 0.0
        %v2321 = vmax.f32 %v1514, 0.0
        %v2322 = vmax.f32 %v1603, 0.0
        %v2323 = vmax.f32 %v1692, 0.0
        %v2324 = vmax.f32 %v1781, 0.0
        %v2325 = vmax.f32 %v1870, 0.0
        %v2326 = vmax.f32 %v1959, 0.0
        %v2327 = vmax.f32 %v2048, 0.0
        %v2328 = vmax.f32 %v2137, 0.0
        %v2329 = vmax.f32 %v1517, 0.0
        %v2330 = vmax.f32 %v1606, 0.0
        %v2331 = vmax.f32 %v1695, 0.0
        %v2332 = vmax.f32 %v1784, 0.0
        %v2333 = vmax.f32 %v1873, 0.0
        %v2334 = vmax.f32 %v1962, 0.0
        %v2335 = vmax.f32 %v2051, 0.0
        %v2336 = vmax.f32 %v2140, 0.0
        %v2337 = vmax.f32 %v1519, 0.0
        %v2338 = vmax.f32 %v1608, 0.0
        %v2339 = vmax.f32 %v1697, 0.0
        %v2340 = vmax.f32 %v1786, 0.0
        %v2341 = vmax.f32 %v1875, 0.0
        %v2342 = vmax.f32 %v1964, 0.0
        %v2343 = vmax.f32 %v2053, 0.0
        %v2344 = vmax.f32 %v2142, 0.0
        %v2345 = vmax.f32 %v1522, 0.0
        %v2346 = vmax.f32 %v1611, 0.0
        %v2347 = vmax.f32 %v1700, 0.0
        %v2348 = vmax.f32 %v1789, 0.0
        %v2349 = vmax.f32 %v1878, 0.0
        %v2350 = vmax.f32 %v1967, 0.0
        %v2351 = vmax.f32 %v2056, 0.0
        %v2352 = vmax.f32 %v2145, 0.0
        %v2353 = vmax.f32 %v1524, 0.0
        %v2354 = vmax.f32 %v1613, 0.0
        %v2355 = vmax.f32 %v1702, 0.0
        %v2356 = vmax.f32 %v1791, 0.0
        %v2357 = vmax.f32 %v1880, 0.0
        %v2358 = vmax.f32 %v1969, 0.0
        %v2359 = vmax.f32 %v2058, 0.0
        %v2360 = vmax.f32 %v2147, 0.0
        %v2361 = vmax.f32 %v1527, 0.0
        %v2362 = vmax.f32 %v1616, 0.0
        %v2363 = vmax.f32 %v1705, 0.0
        %v2364 = vmax.f32 %v1794, 0.0
        %v2365 = vmax.f32 %v1883, 0.0
        %v2366 = vmax.f32 %v1972, 0.0
        %v2367 = vmax.f32 %v2061, 0.0
        %v2368 = vmax.f32 %v2150, 0.0
        %v2369 = vmax.f32 %v1529, 0.0
        %v2370 = vmax.f32 %v1618, 0.0
        %v2371 = vmax.f32 %v1707, 0.0
        %v2372 = vmax.f32 %v1796, 0.0
        %v2373 = vmax.f32 %v1885, 0.0
        %v2374 = vmax.f32 %v1974, 0.0
        %v2375 = vmax.f32 %v2063, 0.0
        %v2376 = vmax.f32 %v2152, 0.0
        %v2377 = vmax.f32 %v1532, 0.0
        %v2378 = vmax.f32 %v1621, 0.0
        %v2379 = vmax.f32 %v1710, 0.0
        %v2380 = vmax.f32 %v1799, 0.0
        %v2381 = vmax.f32 %v1888, 0.0
        %v2382 = vmax.f32 %v1977, 0.0
        %v2383 = vmax.f32 %v2066, 0.0
        %v2384 = vmax.f32 %v2155, 0.0
        %v2385 = vmax.f32 %v1534, 0.0
        %v2386 = vmax.f32 %v1623, 0.0
        %v2387 = vmax.f32 %v1712, 0.0
        %v2388 = vmax.f32 %v1801, 0.0
        %v2389 = vmax.f32 %v1890, 0.0
        %v2390 = vmax.f32 %v1979, 0.0
        %v2391 = vmax.f32 %v2068, 0.0
        %v2392 = vmax.f32 %v2157, 0.0
        %v2393 = vmax.f32 %v1537, 0.0
        %v2394 = vmax.f32 %v1626, 0.0
        %v2395 = vmax.f32 %v1715, 0.0
        %v2396 = vmax.f32 %v1804, 0.0
        %v2397 = vmax.f32 %v1893, 0.0
        %v2398 = vmax.f32 %v1982, 0.0
        %v2399 = vmax.f32 %v2071, 0.0
        %v2400 = vmax.f32 %v2160, 0.0
        %v2401 = vmax.f32 %v1539, 0.0
        %v2402 = vmax.f32 %v1628, 0.0
        %v2403 = vmax.f32 %v1717, 0.0
        %v2404 = vmax.f32 %v1806, 0.0
        %v2405 = vmax.f32 %v1895, 0.0
        %v2406 = vmax.f32 %v1984, 0.0
        %v2407 = vmax.f32 %v2073, 0.0
        %v2408 = vmax.f32 %v2162, 0.0
        %v2409 = vmax.f32 %v1542, 0.0
        %v2410 = vmax.f32 %v1631, 0.0
        %v2411 = vmax.f32 %v1720, 0.0
        %v2412 = vmax.f32 %v1809, 0.0
        %v2413 = vmax.f32 %v1898, 0.0
        %v2414 = vmax.f32 %v1987, 0.0
        %v2415 = vmax.f32 %v2076, 0.0
        %v2416 = vmax.f32 %v2165, 0.0
        %v2417 = vmax.f32 %v1544, 0.0
        %v2418 = vmax.f32 %v1633, 0.0
        %v2419 = vmax.f32 %v1722, 0.0
        %v2420 = vmax.f32 %v1811, 0.0
        %v2421 = vmax.f32 %v1900, 0.0
        %v2422 = vmax.f32 %v1989, 0.0
        %v2423 = vmax.f32 %v2078, 0.0
        %v2424 = vmax.f32 %v2167, 0.0
        %v2425 = vld [vmem:[#allocation2] sm:$0xff]
        %v2426 = vmax.f32 %v2169, %v2177
        %v2427 = vmax.f32 %v2426, %v2185
        %v2428 = vmax.f32 %v2427, %v2193
        %v2429 = vmax.f32 %v2428, %v2201
        %v2430 = vmax.f32 %v2429, %v2209
        %v2431 = vmax.f32 %v2430, %v2217
        %v2432 = vmax.f32 %v2431, %v2225
        %v2433 = vmax.f32 %v2432, %v2233
        %v2434 = vmax.f32 %v2433, %v2241
        %v2435 = vmax.f32 %v2434, %v2249
        %v2436 = vmax.f32 %v2435, %v2257
        %v2437 = vmax.f32 %v2436, %v2265
        %v2438 = vmax.f32 %v2437, %v2273
        %v2439 = vmax.f32 %v2438, %v2281
        %v2440 = vmax.f32 %v2439, %v2289
        %v2441 = vmax.f32 %v2440, %v2297
        %v2442 = vmax.f32 %v2441, %v2305
        %v2443 = vmax.f32 %v2442, %v2313
        %v2444 = vmax.f32 %v2443, %v2321
        %v2445 = vmax.f32 %v2444, %v2329
        %v2446 = vmax.f32 %v2445, %v2337
        %v2447 = vmax.f32 %v2446, %v2345
        %v2448 = vmax.f32 %v2447, %v2353
        %v2449 = vmax.f32 %v2448, %v2361
        %v2450 = vmax.f32 %v2449, %v2369
        %v2451 = vmax.f32 %v2450, %v2377
        %v2452 = vmax.f32 %v2451, %v2385
        %v2453 = vmax.f32 %v2452, %v2393
        %v2454 = vmax.f32 %v2453, %v2401
        %v2455 = vmax.f32 %v2454, %v2409
        %v2456 = vmax.f32 %v2455, %v2417
        %v2457 = vrot.slane %v2456, 4
        %v2458 = vmax.f32 %v2456, %v2457
        %v2459 = vrot.slane %v2458, 2
        %v2460 = vmax.f32 %v2458, %v2459
        %v2461 = vrot.slane %v2460, 1
        %v2462 = vmax.f32 %v2460, %v2461
        %v2463 = vmax.f32 %v2170, %v2178
        %v2464 = vmax.f32 %v2463, %v2186
        %v2465 = vmax.f32 %v2464, %v2194
        %v2466 = vmax.f32 %v2465, %v2202
        %v2467 = vmax.f32 %v2466, %v2210
        %v2468 = vmax.f32 %v2467, %v2218
        %v2469 = vmax.f32 %v2468, %v2226
        %v2470 = vmax.f32 %v2469, %v2234
        %v2471 = vmax.f32 %v2470, %v2242
        %v2472 = vmax.f32 %v2471, %v2250
        %v2473 = vmax.f32 %v2472, %v2258
        %v2474 = vmax.f32 %v2473, %v2266
        %v2475 = vmax.f32 %v2474, %v2274
        %v2476 = vmax.f32 %v2475, %v2282
        %v2477 = vmax.f32 %v2476, %v2290
        %v2478 = vmax.f32 %v2477, %v2298
        %v2479 = vmax.f32 %v2478, %v2306
        %v2480 = vmax.f32 %v2479, %v2314
        %v2481 = vmax.f32 %v2480, %v2322
        %v2482 = vmax.f32 %v2481, %v2330
        %v2483 = vmax.f32 %v2482, %v2338
        %v2484 = vmax.f32 %v2483, %v2346
        %v2485 = vmax.f32 %v2484, %v2354
        %v2486 = vmax.f32 %v2485, %v2362
        %v2487 = vmax.f32 %v2486, %v2370
        %v2488 = vmax.f32 %v2487, %v2378
        %v2489 = vmax.f32 %v2488, %v2386
        %v2490 = vmax.f32 %v2489, %v2394
        %v2491 = vmax.f32 %v2490, %v2402
        %v2492 = vmax.f32 %v2491, %v2410
        %v2493 = vmax.f32 %v2492, %v2418
        %v2494 = vrot.slane %v2493, 4
        %v2495 = vmax.f32 %v2493, %v2494
        %v2496 = vrot.slane %v2495, 2
        %v2497 = vmax.f32 %v2495, %v2496
        %v2498 = vrot.slane %v2497, 1
        %v2499 = vmax.f32 %v2497, %v2498
        %v2500 = vmax.f32 %v2171, %v2179
        %v2501 = vmax.f32 %v2500, %v2187
        %v2502 = vmax.f32 %v2501, %v2195
        %v2503 = vmax.f32 %v2502, %v2203
        %v2504 = vmax.f32 %v2503, %v2211
        %v2505 = vmax.f32 %v2504, %v2219
        %v2506 = vmax.f32 %v2505, %v2227
        %v2507 = vmax.f32 %v2506, %v2235
        %v2508 = vmax.f32 %v2507, %v2243
        %v2509 = vmax.f32 %v2508, %v2251
        %v2510 = vmax.f32 %v2509, %v2259
        %v2511 = vmax.f32 %v2510, %v2267
        %v2512 = vmax.f32 %v2511, %v2275
        %v2513 = vmax.f32 %v2512, %v2283
        %v2514 = vmax.f32 %v2513, %v2291
        %v2515 = vmax.f32 %v2514, %v2299
        %v2516 = vmax.f32 %v2515, %v2307
        %v2517 = vmax.f32 %v2516, %v2315
        %v2518 = vmax.f32 %v2517, %v2323
        %v2519 = vmax.f32 %v2518, %v2331
        %v2520 = vmax.f32 %v2519, %v2339
        %v2521 = vmax.f32 %v2520, %v2347
        %v2522 = vmax.f32 %v2521, %v2355
        %v2523 = vmax.f32 %v2522, %v2363
        %v2524 = vmax.f32 %v2523, %v2371
        %v2525 = vmax.f32 %v2524, %v2379
        %v2526 = vmax.f32 %v2525, %v2387
        %v2527 = vmax.f32 %v2526, %v2395
        %v2528 = vmax.f32 %v2527, %v2403
        %v2529 = vmax.f32 %v2528, %v2411
        %v2530 = vmax.f32 %v2529, %v2419
        %v2531 = vrot.slane %v2530, 4
        %v2532 = vmax.f32 %v2530, %v2531
        %v2533 = vrot.slane %v2532, 2
        %v2534 = vmax.f32 %v2532, %v2533
        %v2535 = vrot.slane %v2534, 1
        %v2536 = vmax.f32 %v2534, %v2535
        %v2537 = vmax.f32 %v2172, %v2180
        %v2538 = vmax.f32 %v2537, %v2188
        %v2539 = vmax.f32 %v2538, %v2196
        %v2540 = vmax.f32 %v2539, %v2204
        %v2541 = vmax.f32 %v2540, %v2212
        %v2542 = vmax.f32 %v2541, %v2220
        %v2543 = vmax.f32 %v2542, %v2228
        %v2544 = vmax.f32 %v2543, %v2236
        %v2545 = vmax.f32 %v2544, %v2244
        %v2546 = vmax.f32 %v2545, %v2252
        %v2547 = vmax.f32 %v2546, %v2260
        %v2548 = vmax.f32 %v2547, %v2268
        %v2549 = vmax.f32 %v2548, %v2276
        %v2550 = vmax.f32 %v2549, %v2284
        %v2551 = vmax.f32 %v2550, %v2292
        %v2552 = vmax.f32 %v2551, %v2300
        %v2553 = vmax.f32 %v2552, %v2308
        %v2554 = vmax.f32 %v2553, %v2316
        %v2555 = vmax.f32 %v2554, %v2324
        %v2556 = vmax.f32 %v2555, %v2332
        %v2557 = vmax.f32 %v2556, %v2340
        %v2558 = vmax.f32 %v2557, %v2348
        %v2559 = vmax.f32 %v2558, %v2356
        %v2560 = vmax.f32 %v2559, %v2364
        %v2561 = vmax.f32 %v2560, %v2372
        %v2562 = vmax.f32 %v2561, %v2380
        %v2563 = vmax.f32 %v2562, %v2388
        %v2564 = vmax.f32 %v2563, %v2396
        %v2565 = vmax.f32 %v2564, %v2404
        %v2566 = vmax.f32 %v2565, %v2412
        %v2567 = vmax.f32 %v2566, %v2420
        %v2568 = vrot.slane %v2567, 4
        %v2569 = vmax.f32 %v2567, %v2568
        %v2570 = vrot.slane %v2569, 2
        %v2571 = vmax.f32 %v2569, %v2570
        %v2572 = vrot.slane %v2571, 1
        %v2573 = vmax.f32 %v2571, %v2572
        %v2574 = vmax.f32 %v2173, %v2181
        %v2575 = vmax.f32 %v2574, %v2189
        %v2576 = vmax.f32 %v2575, %v2197
        %v2577 = vmax.f32 %v2576, %v2205
        %v2578 = vmax.f32 %v2577, %v2213
        %v2579 = vmax.f32 %v2578, %v2221
        %v2580 = vmax.f32 %v2579, %v2229
        %v2581 = vmax.f32 %v2580, %v2237
        %v2582 = vmax.f32 %v2581, %v2245
        %v2583 = vmax.f32 %v2582, %v2253
        %v2584 = vmax.f32 %v2583, %v2261
        %v2585 = vmax.f32 %v2584, %v2269
        %v2586 = vmax.f32 %v2585, %v2277
        %v2587 = vmax.f32 %v2586, %v2285
        %v2588 = vmax.f32 %v2587, %v2293
        %v2589 = vmax.f32 %v2588, %v2301
        %v2590 = vmax.f32 %v2589, %v2309
        %v2591 = vmax.f32 %v2590, %v2317
        %v2592 = vmax.f32 %v2591, %v2325
        %v2593 = vmax.f32 %v2592, %v2333
        %v2594 = vmax.f32 %v2593, %v2341
        %v2595 = vmax.f32 %v2594, %v2349
        %v2596 = vmax.f32 %v2595, %v2357
        %v2597 = vmax.f32 %v2596, %v2365
        %v2598 = vmax.f32 %v2597, %v2373
        %v2599 = vmax.f32 %v2598, %v2381
        %v2600 = vmax.f32 %v2599, %v2389
        %v2601 = vmax.f32 %v2600, %v2397
        %v2602 = vmax.f32 %v2601, %v2405
        %v2603 = vmax.f32 %v2602, %v2413
        %v2604 = vmax.f32 %v2603, %v2421
        %v2605 = vrot.slane %v2604, 4
        %v2606 = vmax.f32 %v2604, %v2605
        %v2607 = vrot.slane %v2606, 2
        %v2608 = vmax.f32 %v2606, %v2607
        %v2609 = vrot.slane %v2608, 1
        %v2610 = vmax.f32 %v2608, %v2609
        %v2611 = vmax.f32 %v2174, %v2182
        %v2612 = vmax.f32 %v2611, %v2190
        %v2613 = vmax.f32 %v2612, %v2198
        %v2614 = vmax.f32 %v2613, %v2206
        %v2615 = vmax.f32 %v2614, %v2214
        %v2616 = vmax.f32 %v2615, %v2222
        %v2617 = vmax.f32 %v2616, %v2230
        %v2618 = vmax.f32 %v2617, %v2238
        %v2619 = vmax.f32 %v2618, %v2246
        %v2620 = vmax.f32 %v2619, %v2254
        %v2621 = vmax.f32 %v2620, %v2262
        %v2622 = vmax.f32 %v2621, %v2270
        %v2623 = vmax.f32 %v2622, %v2278
        %v2624 = vmax.f32 %v2623, %v2286
        %v2625 = vmax.f32 %v2624, %v2294
        %v2626 = vmax.f32 %v2625, %v2302
        %v2627 = vmax.f32 %v2626, %v2310
        %v2628 = vmax.f32 %v2627, %v2318
        %v2629 = vmax.f32 %v2628, %v2326
        %v2630 = vmax.f32 %v2629, %v2334
        %v2631 = vmax.f32 %v2630, %v2342
        %v2632 = vmax.f32 %v2631, %v2350
        %v2633 = vmax.f32 %v2632, %v2358
        %v2634 = vmax.f32 %v2633, %v2366
        %v2635 = vmax.f32 %v2634, %v2374
        %v2636 = vmax.f32 %v2635, %v2382
        %v2637 = vmax.f32 %v2636, %v2390
        %v2638 = vmax.f32 %v2637, %v2398
        %v2639 = vmax.f32 %v2638, %v2406
        %v2640 = vmax.f32 %v2639, %v2414
        %v2641 = vmax.f32 %v2640, %v2422
        %v2642 = vrot.slane %v2641, 4
        %v2643 = vmax.f32 %v2641, %v2642
        %v2644 = vrot.slane %v2643, 2
        %v2645 = vmax.f32 %v2643, %v2644
        %v2646 = vrot.slane %v2645, 1
        %v2647 = vmax.f32 %v2645, %v2646
        %v2648 = vmax.f32 %v2175, %v2183
        %v2649 = vmax.f32 %v2648, %v2191
        %v2650 = vmax.f32 %v2649, %v2199
        %v2651 = vmax.f32 %v2650, %v2207
        %v2652 = vmax.f32 %v2651, %v2215
        %v2653 = vmax.f32 %v2652, %v2223
        %v2654 = vmax.f32 %v2653, %v2231
        %v2655 = vmax.f32 %v2654, %v2239
        %v2656 = vmax.f32 %v2655, %v2247
        %v2657 = vmax.f32 %v2656, %v2255
        %v2658 = vmax.f32 %v2657, %v2263
        %v2659 = vmax.f32 %v2658, %v2271
        %v2660 = vmax.f32 %v2659, %v2279
        %v2661 = vmax.f32 %v2660, %v2287
        %v2662 = vmax.f32 %v2661, %v2295
        %v2663 = vmax.f32 %v2662, %v2303
        %v2664 = vmax.f32 %v2663, %v2311
        %v2665 = vmax.f32 %v2664, %v2319
        %v2666 = vmax.f32 %v2665, %v2327
        %v2667 = vmax.f32 %v2666, %v2335
        %v2668 = vmax.f32 %v2667, %v2343
        %v2669 = vmax.f32 %v2668, %v2351
        %v2670 = vmax.f32 %v2669, %v2359
        %v2671 = vmax.f32 %v2670, %v2367
        %v2672 = vmax.f32 %v2671, %v2375
        %v2673 = vmax.f32 %v2672, %v2383
        %v2674 = vmax.f32 %v2673, %v2391
        %v2675 = vmax.f32 %v2674, %v2399
        %v2676 = vmax.f32 %v2675, %v2407
        %v2677 = vmax.f32 %v2676, %v2415
        %v2678 = vmax.f32 %v2677, %v2423
        %v2679 = vrot.slane %v2678, 4
        %v2680 = vmax.f32 %v2678, %v2679
        %v2681 = vrot.slane %v2680, 2
        %v2682 = vmax.f32 %v2680, %v2681
        %v2683 = vrot.slane %v2682, 1
        %v2684 = vmax.f32 %v2682, %v2683
        %v2685 = vmax.f32 %v2176, %v2184
        %v2686 = vmax.f32 %v2685, %v2192
        %v2687 = vmax.f32 %v2686, %v2200
        %v2688 = vmax.f32 %v2687, %v2208
        %v2689 = vmax.f32 %v2688, %v2216
        %v2690 = vmax.f32 %v2689, %v2224
        %v2691 = vmax.f32 %v2690, %v2232
        %v2692 = vmax.f32 %v2691, %v2240
        %v2693 = vmax.f32 %v2692, %v2248
        %v2694 = vmax.f32 %v2693, %v2256
        %v2695 = vmax.f32 %v2694, %v2264
        %v2696 = vmax.f32 %v2695, %v2272
        %v2697 = vmax.f32 %v2696, %v2280
        %v2698 = vmax.f32 %v2697, %v2288
        %v2699 = vmax.f32 %v2698, %v2296
        %v2700 = vmax.f32 %v2699, %v2304
        %v2701 = vmax.f32 %v2700, %v2312
        %v2702 = vmax.f32 %v2701, %v2320
        %v2703 = vmax.f32 %v2702, %v2328
        %v2704 = vmax.f32 %v2703, %v2336
        %v2705 = vmax.f32 %v2704, %v2344
        %v2706 = vmax.f32 %v2705, %v2352
        %v2707 = vmax.f32 %v2706, %v2360
        %v2708 = vmax.f32 %v2707, %v2368
        %v2709 = vmax.f32 %v2708, %v2376
        %v2710 = vmax.f32 %v2709, %v2384
        %v2711 = vmax.f32 %v2710, %v2392
        %v2712 = vmax.f32 %v2711, %v2400
        %v2713 = vmax.f32 %v2712, %v2408
        %v2714 = vmax.f32 %v2713, %v2416
        %v2715 = vmax.f32 %v2714, %v2424
        %v2716 = vrot.slane %v2715, 4
        %v2717 = vmax.f32 %v2715, %v2716
        %v2718 = vrot.slane %v2717, 2
        %v2719 = vmax.f32 %v2717, %v2718
        %v2720 = vrot.slane %v2719, 1
        %v2721 = vmax.f32 %v2719, %v2720
        %v2730 = vrot.slane %v2499, 7
        %v2731 = vrot.slane %v2536, 6
        %v2732 = vrot.slane %v2573, 5
        %v2733 = vrot.slane %v2610, 4
        %v2734 = vrot.slane %v2647, 3
        %v2735 = vrot.slane %v2684, 2
        %v2736 = vrot.slane %v2721, 1
        %vm2737 = vcmask 1040384
        %v2738 = vsel %vm2737, %v2462, %v2730
        %vm2739 = vcmask 1042434
        %v2740 = vsel %vm2739, %v2731, %v2732
        %vm2741 = vcmask 1041408
        %v2742 = vsel %vm2741, %v2738, %v2740
        %vm2743 = vcmask 1044484
        %v2744 = vsel %vm2743, %v2733, %v2734
        %vm2745 = vcmask 1046534
        %v2746 = vsel %vm2745, %v2735, %v2736
        %vm2747 = vcmask 1045508
        %v2748 = vsel %vm2747, %v2744, %v2746
        %vm2749 = vcmask 1043456
        %v2750 = vsel %vm2749, %v2742, %v2748
        %v2752 = vmax.f32 %v2425, %v2750
        %2753 = vst [vmem:[#allocation2] sm:$0xff] %v2752
        %p2754 = scmp.eq.s32.totalorder %s34, 1
        // Predicated region
        $region89: #{tpu_custom_call.1} parent=71 // pred_check
          %p2755 = pneg %p2754
        $region90: #{tpu_custom_call.1} parent=71 // pred_check_branch
          %2757 = sbr.rel (%p2755) target = $region92
        $region91: #{tpu_custom_call.1} parent=71 // pred_region
          %v2758 = vld [vmem:[#allocation2] sm:$0xff]
          %v2760 = vperm.slane %v2758, 0
          %v2761 = vperm.slane %v2758, 1
          %v2762 = vperm.slane %v2758, 2
          %v2763 = vperm.slane %v2758, 3
          %v2764 = vperm.slane %v2758, 4
          %v2765 = vperm.slane %v2758, 5
          %v2766 = vperm.slane %v2758, 6
          %v2767 = vperm.slane %v2758, 7
          %v2776 = vpack.c.bf16 %v2760, %v2760
          %v2777 = vpack.c.bf16 %v2761, %v2761
          %v2778 = vpack.c.bf16 %v2762, %v2762
          %v2779 = vpack.c.bf16 %v2763, %v2763
          %v2780 = vpack.c.bf16 %v2764, %v2764
          %v2781 = vpack.c.bf16 %v2765, %v2765
          %v2782 = vpack.c.bf16 %v2766, %v2766
          %v2783 = vpack.c.bf16 %v2767, %v2767
          %v2784 = vld [vmem:[#allocation3] sm:$0xff]
          %v2785 = vld [vmem:[#allocation3 + $0x8] sm:$0xff]
          %v2786 = vld [vmem:[#allocation3 + $0x10] sm:$0xff]
          %v2787 = vld [vmem:[#allocation3 + $0x18] sm:$0xff]
          %v2788 = vld [vmem:[#allocation3 + $0x20] sm:$0xff]
          %v2789 = vld [vmem:[#allocation3 + $0x28] sm:$0xff]
          %v2790 = vld [vmem:[#allocation3 + $0x30] sm:$0xff]
          %v2791 = vld [vmem:[#allocation3 + $0x38] sm:$0xff]
          %v2792 = vld [vmem:[#allocation3 + $0x40] sm:$0xff]
          %v2793 = vld [vmem:[#allocation3 + $0x48] sm:$0xff]
          %v2794 = vld [vmem:[#allocation3 + $0x50] sm:$0xff]
          %v2795 = vld [vmem:[#allocation3 + $0x58] sm:$0xff]
          %v2796 = vld [vmem:[#allocation3 + $0x60] sm:$0xff]
          %v2797 = vld [vmem:[#allocation3 + $0x68] sm:$0xff]
          %v2798 = vld [vmem:[#allocation3 + $0x70] sm:$0xff]
          %v2799 = vld [vmem:[#allocation3 + $0x78] sm:$0xff]
          %v2800 = vld [vmem:[#allocation3 + $0x80] sm:$0xff]
          %v2801 = vld [vmem:[#allocation3 + $0x88] sm:$0xff]
          %v2802 = vld [vmem:[#allocation3 + $0x90] sm:$0xff]
          %v2803 = vld [vmem:[#allocation3 + $0x98] sm:$0xff]
          %v2804 = vld [vmem:[#allocation3 + $0xa0] sm:$0xff]
          %v2805 = vld [vmem:[#allocation3 + $0xa8] sm:$0xff]
          %v2806 = vld [vmem:[#allocation3 + $0xb0] sm:$0xff]
          %v2807 = vld [vmem:[#allocation3 + $0xb8] sm:$0xff]
          %v2808 = vld [vmem:[#allocation3 + $0xc0] sm:$0xff]
          %v2809 = vld [vmem:[#allocation3 + $0xc8] sm:$0xff]
          %v2810 = vld [vmem:[#allocation3 + $0xd0] sm:$0xff]
          %v2811 = vld [vmem:[#allocation3 + $0xd8] sm:$0xff]
          %v2812 = vld [vmem:[#allocation3 + $0xe0] sm:$0xff]
          %v2813 = vld [vmem:[#allocation3 + $0xe8] sm:$0xff]
          %v2814 = vld [vmem:[#allocation3 + $0xf0] sm:$0xff]
          %v2815 = vld [vmem:[#allocation3 + $0xf8] sm:$0xff]
          %v2816 = vld [vmem:[#allocation3 + $0x100] sm:$0xff]
          %v2817 = vld [vmem:[#allocation3 + $0x108] sm:$0xff]
          %v2818 = vld [vmem:[#allocation3 + $0x110] sm:$0xff]
          %v2819 = vld [vmem:[#allocation3 + $0x118] sm:$0xff]
          %v2820 = vld [vmem:[#allocation3 + $0x120] sm:$0xff]
          %v2821 = vld [vmem:[#allocation3 + $0x128] sm:$0xff]
          %v2822 = vld [vmem:[#allocation3 + $0x130] sm:$0xff]
          %v2823 = vld [vmem:[#allocation3 + $0x138] sm:$0xff]
          %v2824 = vld [vmem:[#allocation3 + $0x140] sm:$0xff]
          %v2825 = vld [vmem:[#allocation3 + $0x148] sm:$0xff]
          %v2826 = vld [vmem:[#allocation3 + $0x150] sm:$0xff]
          %v2827 = vld [vmem:[#allocation3 + $0x158] sm:$0xff]
          %v2828 = vld [vmem:[#allocation3 + $0x160] sm:$0xff]
          %v2829 = vld [vmem:[#allocation3 + $0x168] sm:$0xff]
          %v2830 = vld [vmem:[#allocation3 + $0x170] sm:$0xff]
          %v2831 = vld [vmem:[#allocation3 + $0x178] sm:$0xff]
          %v2832 = vld [vmem:[#allocation3 + $0x180] sm:$0xff]
          %v2833 = vld [vmem:[#allocation3 + $0x188] sm:$0xff]
          %v2834 = vld [vmem:[#allocation3 + $0x190] sm:$0xff]
          %v2835 = vld [vmem:[#allocation3 + $0x198] sm:$0xff]
          %v2836 = vld [vmem:[#allocation3 + $0x1a0] sm:$0xff]
          %v2837 = vld [vmem:[#allocation3 + $0x1a8] sm:$0xff]
          %v2838 = vld [vmem:[#allocation3 + $0x1b0] sm:$0xff]
          %v2839 = vld [vmem:[#allocation3 + $0x1b8] sm:$0xff]
          %v2840 = vld [vmem:[#allocation3 + $0x1c0] sm:$0xff]
          %v2841 = vld [vmem:[#allocation3 + $0x1c8] sm:$0xff]
          %v2842 = vld [vmem:[#allocation3 + $0x1d0] sm:$0xff]
          %v2843 = vld [vmem:[#allocation3 + $0x1d8] sm:$0xff]
          %v2844 = vld [vmem:[#allocation3 + $0x1e0] sm:$0xff]
          %v2845 = vld [vmem:[#allocation3 + $0x1e8] sm:$0xff]
          %v2846 = vld [vmem:[#allocation3 + $0x1f0] sm:$0xff]
          %v2847 = vld [vmem:[#allocation3 + $0x1f8] sm:$0xff]
          %v2848 = vld [vmem:[#allocation3 + $0x200] sm:$0xff]
          %v2849 = vld [vmem:[#allocation3 + $0x208] sm:$0xff]
          %v2850 = vld [vmem:[#allocation3 + $0x210] sm:$0xff]
          %v2851 = vld [vmem:[#allocation3 + $0x218] sm:$0xff]
          %v2852 = vld [vmem:[#allocation3 + $0x220] sm:$0xff]
          %v2853 = vld [vmem:[#allocation3 + $0x228] sm:$0xff]
          %v2854 = vld [vmem:[#allocation3 + $0x230] sm:$0xff]
          %v2855 = vld [vmem:[#allocation3 + $0x238] sm:$0xff]
          %v2856 = vld [vmem:[#allocation3 + $0x240] sm:$0xff]
          %v2857 = vld [vmem:[#allocation3 + $0x248] sm:$0xff]
          %v2858 = vld [vmem:[#allocation3 + $0x250] sm:$0xff]
          %v2859 = vld [vmem:[#allocation3 + $0x258] sm:$0xff]
          %v2860 = vld [vmem:[#allocation3 + $0x260] sm:$0xff]
          %v2861 = vld [vmem:[#allocation3 + $0x268] sm:$0xff]
          %v2862 = vld [vmem:[#allocation3 + $0x270] sm:$0xff]
          %v2863 = vld [vmem:[#allocation3 + $0x278] sm:$0xff]
          %v2864 = vld [vmem:[#allocation3 + $0x280] sm:$0xff]
          %v2865 = vld [vmem:[#allocation3 + $0x288] sm:$0xff]
          %v2866 = vld [vmem:[#allocation3 + $0x290] sm:$0xff]
          %v2867 = vld [vmem:[#allocation3 + $0x298] sm:$0xff]
          %v2868 = vld [vmem:[#allocation3 + $0x2a0] sm:$0xff]
          %v2869 = vld [vmem:[#allocation3 + $0x2a8] sm:$0xff]
          %v2870 = vld [vmem:[#allocation3 + $0x2b0] sm:$0xff]
          %v2871 = vld [vmem:[#allocation3 + $0x2b8] sm:$0xff]
          %v2872 = vld [vmem:[#allocation3 + $0x2c0] sm:$0xff]
          %v2873 = vld [vmem:[#allocation3 + $0x2c8] sm:$0xff]
          %v2874 = vld [vmem:[#allocation3 + $0x2d0] sm:$0xff]
          %v2875 = vld [vmem:[#allocation3 + $0x2d8] sm:$0xff]
          %v2876 = vld [vmem:[#allocation3 + $0x2e0] sm:$0xff]
          %v2877 = vld [vmem:[#allocation3 + $0x2e8] sm:$0xff]
          %v2878 = vld [vmem:[#allocation3 + $0x2f0] sm:$0xff]
          %v2879 = vld [vmem:[#allocation3 + $0x2f8] sm:$0xff]
          %v2880 = vld [vmem:[#allocation3 + $0x300] sm:$0xff]
          %v2881 = vld [vmem:[#allocation3 + $0x308] sm:$0xff]
          %v2882 = vld [vmem:[#allocation3 + $0x310] sm:$0xff]
          %v2883 = vld [vmem:[#allocation3 + $0x318] sm:$0xff]
          %v2884 = vld [vmem:[#allocation3 + $0x320] sm:$0xff]
          %v2885 = vld [vmem:[#allocation3 + $0x328] sm:$0xff]
          %v2886 = vld [vmem:[#allocation3 + $0x330] sm:$0xff]
          %v2887 = vld [vmem:[#allocation3 + $0x338] sm:$0xff]
          %v2888 = vld [vmem:[#allocation3 + $0x340] sm:$0xff]
          %v2889 = vld [vmem:[#allocation3 + $0x348] sm:$0xff]
          %v2890 = vld [vmem:[#allocation3 + $0x350] sm:$0xff]
          %v2891 = vld [vmem:[#allocation3 + $0x358] sm:$0xff]
          %v2892 = vld [vmem:[#allocation3 + $0x360] sm:$0xff]
          %v2893 = vld [vmem:[#allocation3 + $0x368] sm:$0xff]
          %v2894 = vld [vmem:[#allocation3 + $0x370] sm:$0xff]
          %v2895 = vld [vmem:[#allocation3 + $0x378] sm:$0xff]
          %v2896 = vld [vmem:[#allocation3 + $0x380] sm:$0xff]
          %v2897 = vld [vmem:[#allocation3 + $0x388] sm:$0xff]
          %v2898 = vld [vmem:[#allocation3 + $0x390] sm:$0xff]
          %v2899 = vld [vmem:[#allocation3 + $0x398] sm:$0xff]
          %v2900 = vld [vmem:[#allocation3 + $0x3a0] sm:$0xff]
          %v2901 = vld [vmem:[#allocation3 + $0x3a8] sm:$0xff]
          %v2902 = vld [vmem:[#allocation3 + $0x3b0] sm:$0xff]
          %v2903 = vld [vmem:[#allocation3 + $0x3b8] sm:$0xff]
          %v2904 = vld [vmem:[#allocation3 + $0x3c0] sm:$0xff]
          %v2905 = vld [vmem:[#allocation3 + $0x3c8] sm:$0xff]
          %v2906 = vld [vmem:[#allocation3 + $0x3d0] sm:$0xff]
          %v2907 = vld [vmem:[#allocation3 + $0x3d8] sm:$0xff]
          %v2908 = vld [vmem:[#allocation3 + $0x3e0] sm:$0xff]
          %v2909 = vld [vmem:[#allocation3 + $0x3e8] sm:$0xff]
          %v2910 = vld [vmem:[#allocation3 + $0x3f0] sm:$0xff]
          %v2911 = vld [vmem:[#allocation3 + $0x3f8] sm:$0xff]
          %v2912 = vld [vmem:[#allocation3 + $0x400] sm:$0xff]
          %v2913 = vld [vmem:[#allocation3 + $0x408] sm:$0xff]
          %v2914 = vld [vmem:[#allocation3 + $0x410] sm:$0xff]
          %v2915 = vld [vmem:[#allocation3 + $0x418] sm:$0xff]
          %v2916 = vld [vmem:[#allocation3 + $0x420] sm:$0xff]
          %v2917 = vld [vmem:[#allocation3 + $0x428] sm:$0xff]
          %v2918 = vld [vmem:[#allocation3 + $0x430] sm:$0xff]
          %v2919 = vld [vmem:[#allocation3 + $0x438] sm:$0xff]
          %v2920 = vld [vmem:[#allocation3 + $0x440] sm:$0xff]
          %v2921 = vld [vmem:[#allocation3 + $0x448] sm:$0xff]
          %v2922 = vld [vmem:[#allocation3 + $0x450] sm:$0xff]
          %v2923 = vld [vmem:[#allocation3 + $0x458] sm:$0xff]
          %v2924 = vld [vmem:[#allocation3 + $0x460] sm:$0xff]
          %v2925 = vld [vmem:[#allocation3 + $0x468] sm:$0xff]
          %v2926 = vld [vmem:[#allocation3 + $0x470] sm:$0xff]
          %v2927 = vld [vmem:[#allocation3 + $0x478] sm:$0xff]
          %v2928 = vld [vmem:[#allocation3 + $0x480] sm:$0xff]
          %v2929 = vld [vmem:[#allocation3 + $0x488] sm:$0xff]
          %v2930 = vld [vmem:[#allocation3 + $0x490] sm:$0xff]
          %v2931 = vld [vmem:[#allocation3 + $0x498] sm:$0xff]
          %v2932 = vld [vmem:[#allocation3 + $0x4a0] sm:$0xff]
          %v2933 = vld [vmem:[#allocation3 + $0x4a8] sm:$0xff]
          %v2934 = vld [vmem:[#allocation3 + $0x4b0] sm:$0xff]
          %v2935 = vld [vmem:[#allocation3 + $0x4b8] sm:$0xff]
          %v2936 = vld [vmem:[#allocation3 + $0x4c0] sm:$0xff]
          %v2937 = vld [vmem:[#allocation3 + $0x4c8] sm:$0xff]
          %v2938 = vld [vmem:[#allocation3 + $0x4d0] sm:$0xff]
          %v2939 = vld [vmem:[#allocation3 + $0x4d8] sm:$0xff]
          %v2940 = vld [vmem:[#allocation3 + $0x4e0] sm:$0xff]
          %v2941 = vld [vmem:[#allocation3 + $0x4e8] sm:$0xff]
          %v2942 = vld [vmem:[#allocation3 + $0x4f0] sm:$0xff]
          %v2943 = vld [vmem:[#allocation3 + $0x4f8] sm:$0xff]
          %v2944 = vld [vmem:[#allocation3 + $0x500] sm:$0xff]
          %v2945 = vld [vmem:[#allocation3 + $0x508] sm:$0xff]
          %v2946 = vld [vmem:[#allocation3 + $0x510] sm:$0xff]
          %v2947 = vld [vmem:[#allocation3 + $0x518] sm:$0xff]
          %v2948 = vld [vmem:[#allocation3 + $0x520] sm:$0xff]
          %v2949 = vld [vmem:[#allocation3 + $0x528] sm:$0xff]
          %v2950 = vld [vmem:[#allocation3 + $0x530] sm:$0xff]
          %v2951 = vld [vmem:[#allocation3 + $0x538] sm:$0xff]
          %v2952 = vld [vmem:[#allocation3 + $0x540] sm:$0xff]
          %v2953 = vld [vmem:[#allocation3 + $0x548] sm:$0xff]
          %v2954 = vld [vmem:[#allocation3 + $0x550] sm:$0xff]
          %v2955 = vld [vmem:[#allocation3 + $0x558] sm:$0xff]
          %v2956 = vld [vmem:[#allocation3 + $0x560] sm:$0xff]
          %v2957 = vld [vmem:[#allocation3 + $0x568] sm:$0xff]
          %v2958 = vld [vmem:[#allocation3 + $0x570] sm:$0xff]
          %v2959 = vld [vmem:[#allocation3 + $0x578] sm:$0xff]
          %v2960 = vld [vmem:[#allocation3 + $0x580] sm:$0xff]
          %v2961 = vld [vmem:[#allocation3 + $0x588] sm:$0xff]
          %v2962 = vld [vmem:[#allocation3 + $0x590] sm:$0xff]
          %v2963 = vld [vmem:[#allocation3 + $0x598] sm:$0xff]
          %v2964 = vld [vmem:[#allocation3 + $0x5a0] sm:$0xff]
          %v2965 = vld [vmem:[#allocation3 + $0x5a8] sm:$0xff]
          %v2966 = vld [vmem:[#allocation3 + $0x5b0] sm:$0xff]
          %v2967 = vld [vmem:[#allocation3 + $0x5b8] sm:$0xff]
          %v2968 = vld [vmem:[#allocation3 + $0x5c0] sm:$0xff]
          %v2969 = vld [vmem:[#allocation3 + $0x5c8] sm:$0xff]
          %v2970 = vld [vmem:[#allocation3 + $0x5d0] sm:$0xff]
          %v2971 = vld [vmem:[#allocation3 + $0x5d8] sm:$0xff]
          %v2972 = vld [vmem:[#allocation3 + $0x5e0] sm:$0xff]
          %v2973 = vld [vmem:[#allocation3 + $0x5e8] sm:$0xff]
          %v2974 = vld [vmem:[#allocation3 + $0x5f0] sm:$0xff]
          %v2975 = vld [vmem:[#allocation3 + $0x5f8] sm:$0xff]
          %v2976 = vld [vmem:[#allocation3 + $0x600] sm:$0xff]
          %v2977 = vld [vmem:[#allocation3 + $0x608] sm:$0xff]
          %v2978 = vld [vmem:[#allocation3 + $0x610] sm:$0xff]
          %v2979 = vld [vmem:[#allocation3 + $0x618] sm:$0xff]
          %v2980 = vld [vmem:[#allocation3 + $0x620] sm:$0xff]
          %v2981 = vld [vmem:[#allocation3 + $0x628] sm:$0xff]
          %v2982 = vld [vmem:[#allocation3 + $0x630] sm:$0xff]
          %v2983 = vld [vmem:[#allocation3 + $0x638] sm:$0xff]
          %v2984 = vld [vmem:[#allocation3 + $0x640] sm:$0xff]
          %v2985 = vld [vmem:[#allocation3 + $0x648] sm:$0xff]
          %v2986 = vld [vmem:[#allocation3 + $0x650] sm:$0xff]
          %v2987 = vld [vmem:[#allocation3 + $0x658] sm:$0xff]
          %v2988 = vld [vmem:[#allocation3 + $0x660] sm:$0xff]
          %v2989 = vld [vmem:[#allocation3 + $0x668] sm:$0xff]
          %v2990 = vld [vmem:[#allocation3 + $0x670] sm:$0xff]
          %v2991 = vld [vmem:[#allocation3 + $0x678] sm:$0xff]
          %v2992 = vld [vmem:[#allocation3 + $0x680] sm:$0xff]
          %v2993 = vld [vmem:[#allocation3 + $0x688] sm:$0xff]
          %v2994 = vld [vmem:[#allocation3 + $0x690] sm:$0xff]
          %v2995 = vld [vmem:[#allocation3 + $0x698] sm:$0xff]
          %v2996 = vld [vmem:[#allocation3 + $0x6a0] sm:$0xff]
          %v2997 = vld [vmem:[#allocation3 + $0x6a8] sm:$0xff]
          %v2998 = vld [vmem:[#allocation3 + $0x6b0] sm:$0xff]
          %v2999 = vld [vmem:[#allocation3 + $0x6b8] sm:$0xff]
          %v3000 = vld [vmem:[#allocation3 + $0x6c0] sm:$0xff]
          %v3001 = vld [vmem:[#allocation3 + $0x6c8] sm:$0xff]
          %v3002 = vld [vmem:[#allocation3 + $0x6d0] sm:$0xff]
          %v3003 = vld [vmem:[#allocation3 + $0x6d8] sm:$0xff]
          %v3004 = vld [vmem:[#allocation3 + $0x6e0] sm:$0xff]
          %v3005 = vld [vmem:[#allocation3 + $0x6e8] sm:$0xff]
          %v3006 = vld [vmem:[#allocation3 + $0x6f0] sm:$0xff]
          %v3007 = vld [vmem:[#allocation3 + $0x6f8] sm:$0xff]
          %v3008 = vld [vmem:[#allocation3 + $0x700] sm:$0xff]
          %v3009 = vld [vmem:[#allocation3 + $0x708] sm:$0xff]
          %v3010 = vld [vmem:[#allocation3 + $0x710] sm:$0xff]
          %v3011 = vld [vmem:[#allocation3 + $0x718] sm:$0xff]
          %v3012 = vld [vmem:[#allocation3 + $0x720] sm:$0xff]
          %v3013 = vld [vmem:[#allocation3 + $0x728] sm:$0xff]
          %v3014 = vld [vmem:[#allocation3 + $0x730] sm:$0xff]
          %v3015 = vld [vmem:[#allocation3 + $0x738] sm:$0xff]
          %v3016 = vld [vmem:[#allocation3 + $0x740] sm:$0xff]
          %v3017 = vld [vmem:[#allocation3 + $0x748] sm:$0xff]
          %v3018 = vld [vmem:[#allocation3 + $0x750] sm:$0xff]
          %v3019 = vld [vmem:[#allocation3 + $0x758] sm:$0xff]
          %v3020 = vld [vmem:[#allocation3 + $0x760] sm:$0xff]
          %v3021 = vld [vmem:[#allocation3 + $0x768] sm:$0xff]
          %v3022 = vld [vmem:[#allocation3 + $0x770] sm:$0xff]
          %v3023 = vld [vmem:[#allocation3 + $0x778] sm:$0xff]
          %v3024 = vld [vmem:[#allocation3 + $0x780] sm:$0xff]
          %v3025 = vld [vmem:[#allocation3 + $0x788] sm:$0xff]
          %v3026 = vld [vmem:[#allocation3 + $0x790] sm:$0xff]
          %v3027 = vld [vmem:[#allocation3 + $0x798] sm:$0xff]
          %v3028 = vld [vmem:[#allocation3 + $0x7a0] sm:$0xff]
          %v3029 = vld [vmem:[#allocation3 + $0x7a8] sm:$0xff]
          %v3030 = vld [vmem:[#allocation3 + $0x7b0] sm:$0xff]
          %v3031 = vld [vmem:[#allocation3 + $0x7b8] sm:$0xff]
          %v3032 = vld [vmem:[#allocation3 + $0x7c0] sm:$0xff]
          %v3033 = vld [vmem:[#allocation3 + $0x7c8] sm:$0xff]
          %v3034 = vld [vmem:[#allocation3 + $0x7d0] sm:$0xff]
          %v3035 = vld [vmem:[#allocation3 + $0x7d8] sm:$0xff]
          %v3036 = vld [vmem:[#allocation3 + $0x7e0] sm:$0xff]
          %v3037 = vld [vmem:[#allocation3 + $0x7e8] sm:$0xff]
          %v3038 = vld [vmem:[#allocation3 + $0x7f0] sm:$0xff]
          %v3039 = vld [vmem:[#allocation3 + $0x7f8] sm:$0xff]
          %v3040 = vld [vmem:[%s8] sm:$0xf]
          %v3297 = vunpack.c.l.b16 %v2784
          %v3298 = vunpack.c.h.b16 %v2784
          %v3299 = vunpack.c.l.b16 %v2785
          %v3300 = vunpack.c.h.b16 %v2785
          %v3301 = vunpack.c.l.b16 %v2786
          %v3302 = vunpack.c.h.b16 %v2786
          %v3303 = vunpack.c.l.b16 %v2787
          %v3304 = vunpack.c.h.b16 %v2787
          %v3305 = vunpack.c.l.b16 %v2788
          %v3306 = vunpack.c.h.b16 %v2788
          %v3307 = vunpack.c.l.b16 %v2789
          %v3308 = vunpack.c.h.b16 %v2789
          %v3309 = vunpack.c.l.b16 %v2790
          %v3310 = vunpack.c.h.b16 %v2790
          %v3311 = vunpack.c.l.b16 %v2791
          %v3312 = vunpack.c.h.b16 %v2791
          %v3313 = vunpack.c.l.b16 %v2792
          %v3314 = vunpack.c.h.b16 %v2792
          %v3315 = vunpack.c.l.b16 %v2793
          %v3316 = vunpack.c.h.b16 %v2793
          %v3317 = vunpack.c.l.b16 %v2794
          %v3318 = vunpack.c.h.b16 %v2794
          %v3319 = vunpack.c.l.b16 %v2795
          %v3320 = vunpack.c.h.b16 %v2795
          %v3321 = vunpack.c.l.b16 %v2796
          %v3322 = vunpack.c.h.b16 %v2796
          %v3323 = vunpack.c.l.b16 %v2797
          %v3324 = vunpack.c.h.b16 %v2797
          %v3325 = vunpack.c.l.b16 %v2798
          %v3326 = vunpack.c.h.b16 %v2798
          %v3327 = vunpack.c.l.b16 %v2799
          %v3328 = vunpack.c.h.b16 %v2799
          %v3329 = vunpack.c.l.b16 %v2800
          %v3330 = vunpack.c.h.b16 %v2800
          %v3331 = vunpack.c.l.b16 %v2801
          %v3332 = vunpack.c.h.b16 %v2801
          %v3333 = vunpack.c.l.b16 %v2802
          %v3334 = vunpack.c.h.b16 %v2802
          %v3335 = vunpack.c.l.b16 %v2803
          %v3336 = vunpack.c.h.b16 %v2803
          %v3337 = vunpack.c.l.b16 %v2804
          %v3338 = vunpack.c.h.b16 %v2804
          %v3339 = vunpack.c.l.b16 %v2805
          %v3340 = vunpack.c.h.b16 %v2805
          %v3341 = vunpack.c.l.b16 %v2806
          %v3342 = vunpack.c.h.b16 %v2806
          %v3343 = vunpack.c.l.b16 %v2807
          %v3344 = vunpack.c.h.b16 %v2807
          %v3345 = vunpack.c.l.b16 %v2808
          %v3346 = vunpack.c.h.b16 %v2808
          %v3347 = vunpack.c.l.b16 %v2809
          %v3348 = vunpack.c.h.b16 %v2809
          %v3349 = vunpack.c.l.b16 %v2810
          %v3350 = vunpack.c.h.b16 %v2810
          %v3351 = vunpack.c.l.b16 %v2811
          %v3352 = vunpack.c.h.b16 %v2811
          %v3353 = vunpack.c.l.b16 %v2812
          %v3354 = vunpack.c.h.b16 %v2812
          %v3355 = vunpack.c.l.b16 %v2813
          %v3356 = vunpack.c.h.b16 %v2813
          %v3357 = vunpack.c.l.b16 %v2814
          %v3358 = vunpack.c.h.b16 %v2814
          %v3359 = vunpack.c.l.b16 %v2815
          %v3360 = vunpack.c.h.b16 %v2815
          %v3361 = vunpack.c.l.b16 %v2816
          %v3362 = vunpack.c.h.b16 %v2816
          %v3363 = vunpack.c.l.b16 %v2817
          %v3364 = vunpack.c.h.b16 %v2817
          %v3365 = vunpack.c.l.b16 %v2818
          %v3366 = vunpack.c.h.b16 %v2818
          %v3367 = vunpack.c.l.b16 %v2819
          %v3368 = vunpack.c.h.b16 %v2819
          %v3369 = vunpack.c.l.b16 %v2820
          %v3370 = vunpack.c.h.b16 %v2820
          %v3371 = vunpack.c.l.b16 %v2821
          %v3372 = vunpack.c.h.b16 %v2821
          %v3373 = vunpack.c.l.b16 %v2822
          %v3374 = vunpack.c.h.b16 %v2822
          %v3375 = vunpack.c.l.b16 %v2823
          %v3376 = vunpack.c.h.b16 %v2823
          %v3377 = vunpack.c.l.b16 %v2824
          %v3378 = vunpack.c.h.b16 %v2824
          %v3379 = vunpack.c.l.b16 %v2825
          %v3380 = vunpack.c.h.b16 %v2825
          %v3381 = vunpack.c.l.b16 %v2826
          %v3382 = vunpack.c.h.b16 %v2826
          %v3383 = vunpack.c.l.b16 %v2827
          %v3384 = vunpack.c.h.b16 %v2827
          %v3385 = vunpack.c.l.b16 %v2828
          %v3386 = vunpack.c.h.b16 %v2828
          %v3387 = vunpack.c.l.b16 %v2829
          %v3388 = vunpack.c.h.b16 %v2829
          %v3389 = vunpack.c.l.b16 %v2830
          %v3390 = vunpack.c.h.b16 %v2830
          %v3391 = vunpack.c.l.b16 %v2831
          %v3392 = vunpack.c.h.b16 %v2831
          %v3393 = vunpack.c.l.b16 %v2832
          %v3394 = vunpack.c.h.b16 %v2832
          %v3395 = vunpack.c.l.b16 %v2833
          %v3396 = vunpack.c.h.b16 %v2833
          %v3397 = vunpack.c.l.b16 %v2834
          %v3398 = vunpack.c.h.b16 %v2834
          %v3399 = vunpack.c.l.b16 %v2835
          %v3400 = vunpack.c.h.b16 %v2835
          %v3401 = vunpack.c.l.b16 %v2836
          %v3402 = vunpack.c.h.b16 %v2836
          %v3403 = vunpack.c.l.b16 %v2837
          %v3404 = vunpack.c.h.b16 %v2837
          %v3405 = vunpack.c.l.b16 %v2838
          %v3406 = vunpack.c.h.b16 %v2838
          %v3407 = vunpack.c.l.b16 %v2839
          %v3408 = vunpack.c.h.b16 %v2839
          %v3409 = vunpack.c.l.b16 %v2840
          %v3410 = vunpack.c.h.b16 %v2840
          %v3411 = vunpack.c.l.b16 %v2841
          %v3412 = vunpack.c.h.b16 %v2841
          %v3413 = vunpack.c.l.b16 %v2842
          %v3414 = vunpack.c.h.b16 %v2842
          %v3415 = vunpack.c.l.b16 %v2843
          %v3416 = vunpack.c.h.b16 %v2843
          %v3417 = vunpack.c.l.b16 %v2844
          %v3418 = vunpack.c.h.b16 %v2844
          %v3419 = vunpack.c.l.b16 %v2845
          %v3420 = vunpack.c.h.b16 %v2845
          %v3421 = vunpack.c.l.b16 %v2846
          %v3422 = vunpack.c.h.b16 %v2846
          %v3423 = vunpack.c.l.b16 %v2847
          %v3424 = vunpack.c.h.b16 %v2847
          %v3425 = vunpack.c.l.b16 %v2848
          %v3426 = vunpack.c.h.b16 %v2848
          %v3427 = vunpack.c.l.b16 %v2849
          %v3428 = vunpack.c.h.b16 %v2849
          %v3429 = vunpack.c.l.b16 %v2850
          %v3430 = vunpack.c.h.b16 %v2850
          %v3431 = vunpack.c.l.b16 %v2851
          %v3432 = vunpack.c.h.b16 %v2851
          %v3433 = vunpack.c.l.b16 %v2852
          %v3434 = vunpack.c.h.b16 %v2852
          %v3435 = vunpack.c.l.b16 %v2853
          %v3436 = vunpack.c.h.b16 %v2853
          %v3437 = vunpack.c.l.b16 %v2854
          %v3438 = vunpack.c.h.b16 %v2854
          %v3439 = vunpack.c.l.b16 %v2855
          %v3440 = vunpack.c.h.b16 %v2855
          %v3441 = vunpack.c.l.b16 %v2856
          %v3442 = vunpack.c.h.b16 %v2856
          %v3443 = vunpack.c.l.b16 %v2857
          %v3444 = vunpack.c.h.b16 %v2857
          %v3445 = vunpack.c.l.b16 %v2858
          %v3446 = vunpack.c.h.b16 %v2858
          %v3447 = vunpack.c.l.b16 %v2859
          %v3448 = vunpack.c.h.b16 %v2859
          %v3449 = vunpack.c.l.b16 %v2860
          %v3450 = vunpack.c.h.b16 %v2860
          %v3451 = vunpack.c.l.b16 %v2861
          %v3452 = vunpack.c.h.b16 %v2861
          %v3453 = vunpack.c.l.b16 %v2862
          %v3454 = vunpack.c.h.b16 %v2862
          %v3455 = vunpack.c.l.b16 %v2863
          %v3456 = vunpack.c.h.b16 %v2863
          %v3457 = vunpack.c.l.b16 %v2864
          %v3458 = vunpack.c.h.b16 %v2864
          %v3459 = vunpack.c.l.b16 %v2865
          %v3460 = vunpack.c.h.b16 %v2865
          %v3461 = vunpack.c.l.b16 %v2866
          %v3462 = vunpack.c.h.b16 %v2866
          %v3463 = vunpack.c.l.b16 %v2867
          %v3464 = vunpack.c.h.b16 %v2867
          %v3465 = vunpack.c.l.b16 %v2868
          %v3466 = vunpack.c.h.b16 %v2868
          %v3467 = vunpack.c.l.b16 %v2869
          %v3468 = vunpack.c.h.b16 %v2869
          %v3469 = vunpack.c.l.b16 %v2870
          %v3470 = vunpack.c.h.b16 %v2870
          %v3471 = vunpack.c.l.b16 %v2871
          %v3472 = vunpack.c.h.b16 %v2871
          %v3473 = vunpack.c.l.b16 %v2872
          %v3474 = vunpack.c.h.b16 %v2872
          %v3475 = vunpack.c.l.b16 %v2873
          %v3476 = vunpack.c.h.b16 %v2873
          %v3477 = vunpack.c.l.b16 %v2874
          %v3478 = vunpack.c.h.b16 %v2874
          %v3479 = vunpack.c.l.b16 %v2875
          %v3480 = vunpack.c.h.b16 %v2875
          %v3481 = vunpack.c.l.b16 %v2876
          %v3482 = vunpack.c.h.b16 %v2876
          %v3483 = vunpack.c.l.b16 %v2877
          %v3484 = vunpack.c.h.b16 %v2877
          %v3485 = vunpack.c.l.b16 %v2878
          %v3486 = vunpack.c.h.b16 %v2878
          %v3487 = vunpack.c.l.b16 %v2879
          %v3488 = vunpack.c.h.b16 %v2879
          %v3489 = vunpack.c.l.b16 %v2880
          %v3490 = vunpack.c.h.b16 %v2880
          %v3491 = vunpack.c.l.b16 %v2881
          %v3492 = vunpack.c.h.b16 %v2881
          %v3493 = vunpack.c.l.b16 %v2882
          %v3494 = vunpack.c.h.b16 %v2882
          %v3495 = vunpack.c.l.b16 %v2883
          %v3496 = vunpack.c.h.b16 %v2883
          %v3497 = vunpack.c.l.b16 %v2884
          %v3498 = vunpack.c.h.b16 %v2884
          %v3499 = vunpack.c.l.b16 %v2885
          %v3500 = vunpack.c.h.b16 %v2885
          %v3501 = vunpack.c.l.b16 %v2886
          %v3502 = vunpack.c.h.b16 %v2886
          %v3503 = vunpack.c.l.b16 %v2887
          %v3504 = vunpack.c.h.b16 %v2887
          %v3505 = vunpack.c.l.b16 %v2888
          %v3506 = vunpack.c.h.b16 %v2888
          %v3507 = vunpack.c.l.b16 %v2889
          %v3508 = vunpack.c.h.b16 %v2889
          %v3509 = vunpack.c.l.b16 %v2890
          %v3510 = vunpack.c.h.b16 %v2890
          %v3511 = vunpack.c.l.b16 %v2891
          %v3512 = vunpack.c.h.b16 %v2891
          %v3513 = vunpack.c.l.b16 %v2892
          %v3514 = vunpack.c.h.b16 %v2892
          %v3515 = vunpack.c.l.b16 %v2893
          %v3516 = vunpack.c.h.b16 %v2893
          %v3517 = vunpack.c.l.b16 %v2894
          %v3518 = vunpack.c.h.b16 %v2894
          %v3519 = vunpack.c.l.b16 %v2895
          %v3520 = vunpack.c.h.b16 %v2895
          %v3521 = vunpack.c.l.b16 %v2896
          %v3522 = vunpack.c.h.b16 %v2896
          %v3523 = vunpack.c.l.b16 %v2897
          %v3524 = vunpack.c.h.b16 %v2897
          %v3525 = vunpack.c.l.b16 %v2898
          %v3526 = vunpack.c.h.b16 %v2898
          %v3527 = vunpack.c.l.b16 %v2899
          %v3528 = vunpack.c.h.b16 %v2899
          %v3529 = vunpack.c.l.b16 %v2900
          %v3530 = vunpack.c.h.b16 %v2900
          %v3531 = vunpack.c.l.b16 %v2901
          %v3532 = vunpack.c.h.b16 %v2901
          %v3533 = vunpack.c.l.b16 %v2902
          %v3534 = vunpack.c.h.b16 %v2902
          %v3535 = vunpack.c.l.b16 %v2903
          %v3536 = vunpack.c.h.b16 %v2903
          %v3537 = vunpack.c.l.b16 %v2904
          %v3538 = vunpack.c.h.b16 %v2904
          %v3539 = vunpack.c.l.b16 %v2905
          %v3540 = vunpack.c.h.b16 %v2905
          %v3541 = vunpack.c.l.b16 %v2906
          %v3542 = vunpack.c.h.b16 %v2906
          %v3543 = vunpack.c.l.b16 %v2907
          %v3544 = vunpack.c.h.b16 %v2907
          %v3545 = vunpack.c.l.b16 %v2908
          %v3546 = vunpack.c.h.b16 %v2908
          %v3547 = vunpack.c.l.b16 %v2909
          %v3548 = vunpack.c.h.b16 %v2909
          %v3549 = vunpack.c.l.b16 %v2910
          %v3550 = vunpack.c.h.b16 %v2910
          %v3551 = vunpack.c.l.b16 %v2911
          %v3552 = vunpack.c.h.b16 %v2911
          %v3553 = vunpack.c.l.b16 %v2912
          %v3554 = vunpack.c.h.b16 %v2912
          %v3555 = vunpack.c.l.b16 %v2913
          %v3556 = vunpack.c.h.b16 %v2913
          %v3557 = vunpack.c.l.b16 %v2914
          %v3558 = vunpack.c.h.b16 %v2914
          %v3559 = vunpack.c.l.b16 %v2915
          %v3560 = vunpack.c.h.b16 %v2915
          %v3561 = vunpack.c.l.b16 %v2916
          %v3562 = vunpack.c.h.b16 %v2916
          %v3563 = vunpack.c.l.b16 %v2917
          %v3564 = vunpack.c.h.b16 %v2917
          %v3565 = vunpack.c.l.b16 %v2918
          %v3566 = vunpack.c.h.b16 %v2918
          %v3567 = vunpack.c.l.b16 %v2919
          %v3568 = vunpack.c.h.b16 %v2919
          %v3569 = vunpack.c.l.b16 %v2920
          %v3570 = vunpack.c.h.b16 %v2920
          %v3571 = vunpack.c.l.b16 %v2921
          %v3572 = vunpack.c.h.b16 %v2921
          %v3573 = vunpack.c.l.b16 %v2922
          %v3574 = vunpack.c.h.b16 %v2922
          %v3575 = vunpack.c.l.b16 %v2923
          %v3576 = vunpack.c.h.b16 %v2923
          %v3577 = vunpack.c.l.b16 %v2924
          %v3578 = vunpack.c.h.b16 %v2924
          %v3579 = vunpack.c.l.b16 %v2925
          %v3580 = vunpack.c.h.b16 %v2925
          %v3581 = vunpack.c.l.b16 %v2926
          %v3582 = vunpack.c.h.b16 %v2926
          %v3583 = vunpack.c.l.b16 %v2927
          %v3584 = vunpack.c.h.b16 %v2927
          %v3585 = vunpack.c.l.b16 %v2928
          %v3586 = vunpack.c.h.b16 %v2928
          %v3587 = vunpack.c.l.b16 %v2929
          %v3588 = vunpack.c.h.b16 %v2929
          %v3589 = vunpack.c.l.b16 %v2930
          %v3590 = vunpack.c.h.b16 %v2930
          %v3591 = vunpack.c.l.b16 %v2931
          %v3592 = vunpack.c.h.b16 %v2931
          %v3593 = vunpack.c.l.b16 %v2932
          %v3594 = vunpack.c.h.b16 %v2932
          %v3595 = vunpack.c.l.b16 %v2933
          %v3596 = vunpack.c.h.b16 %v2933
          %v3597 = vunpack.c.l.b16 %v2934
          %v3598 = vunpack.c.h.b16 %v2934
          %v3599 = vunpack.c.l.b16 %v2935
          %v3600 = vunpack.c.h.b16 %v2935
          %v3601 = vunpack.c.l.b16 %v2936
          %v3602 = vunpack.c.h.b16 %v2936
          %v3603 = vunpack.c.l.b16 %v2937
          %v3604 = vunpack.c.h.b16 %v2937
          %v3605 = vunpack.c.l.b16 %v2938
          %v3606 = vunpack.c.h.b16 %v2938
          %v3607 = vunpack.c.l.b16 %v2939
          %v3608 = vunpack.c.h.b16 %v2939
          %v3609 = vunpack.c.l.b16 %v2940
          %v3610 = vunpack.c.h.b16 %v2940
          %v3611 = vunpack.c.l.b16 %v2941
          %v3612 = vunpack.c.h.b16 %v2941
          %v3613 = vunpack.c.l.b16 %v2942
          %v3614 = vunpack.c.h.b16 %v2942
          %v3615 = vunpack.c.l.b16 %v2943
          %v3616 = vunpack.c.h.b16 %v2943
          %v3617 = vunpack.c.l.b16 %v2944
          %v3618 = vunpack.c.h.b16 %v2944
          %v3619 = vunpack.c.l.b16 %v2945
          %v3620 = vunpack.c.h.b16 %v2945
          %v3621 = vunpack.c.l.b16 %v2946
          %v3622 = vunpack.c.h.b16 %v2946
          %v3623 = vunpack.c.l.b16 %v2947
          %v3624 = vunpack.c.h.b16 %v2947
          %v3625 = vunpack.c.l.b16 %v2948
          %v3626 = vunpack.c.h.b16 %v2948
          %v3627 = vunpack.c.l.b16 %v2949
          %v3628 = vunpack.c.h.b16 %v2949
          %v3629 = vunpack.c.l.b16 %v2950
          %v3630 = vunpack.c.h.b16 %v2950
          %v3631 = vunpack.c.l.b16 %v2951
          %v3632 = vunpack.c.h.b16 %v2951
          %v3633 = vunpack.c.l.b16 %v2952
          %v3634 = vunpack.c.h.b16 %v2952
          %v3635 = vunpack.c.l.b16 %v2953
          %v3636 = vunpack.c.h.b16 %v2953
          %v3637 = vunpack.c.l.b16 %v2954
          %v3638 = vunpack.c.h.b16 %v2954
          %v3639 = vunpack.c.l.b16 %v2955
          %v3640 = vunpack.c.h.b16 %v2955
          %v3641 = vunpack.c.l.b16 %v2956
          %v3642 = vunpack.c.h.b16 %v2956
          %v3643 = vunpack.c.l.b16 %v2957
          %v3644 = vunpack.c.h.b16 %v2957
          %v3645 = vunpack.c.l.b16 %v2958
          %v3646 = vunpack.c.h.b16 %v2958
          %v3647 = vunpack.c.l.b16 %v2959
          %v3648 = vunpack.c.h.b16 %v2959
          %v3649 = vunpack.c.l.b16 %v2960
          %v3650 = vunpack.c.h.b16 %v2960
          %v3651 = vunpack.c.l.b16 %v2961
          %v3652 = vunpack.c.h.b16 %v2961
          %v3653 = vunpack.c.l.b16 %v2962
          %v3654 = vunpack.c.h.b16 %v2962
          %v3655 = vunpack.c.l.b16 %v2963
          %v3656 = vunpack.c.h.b16 %v2963
          %v3657 = vunpack.c.l.b16 %v2964
          %v3658 = vunpack.c.h.b16 %v2964
          %v3659 = vunpack.c.l.b16 %v2965
          %v3660 = vunpack.c.h.b16 %v2965
          %v3661 = vunpack.c.l.b16 %v2966
          %v3662 = vunpack.c.h.b16 %v2966
          %v3663 = vunpack.c.l.b16 %v2967
          %v3664 = vunpack.c.h.b16 %v2967
          %v3665 = vunpack.c.l.b16 %v2968
          %v3666 = vunpack.c.h.b16 %v2968
          %v3667 = vunpack.c.l.b16 %v2969
          %v3668 = vunpack.c.h.b16 %v2969
          %v3669 = vunpack.c.l.b16 %v2970
          %v3670 = vunpack.c.h.b16 %v2970
          %v3671 = vunpack.c.l.b16 %v2971
          %v3672 = vunpack.c.h.b16 %v2971
          %v3673 = vunpack.c.l.b16 %v2972
          %v3674 = vunpack.c.h.b16 %v2972
          %v3675 = vunpack.c.l.b16 %v2973
          %v3676 = vunpack.c.h.b16 %v2973
          %v3677 = vunpack.c.l.b16 %v2974
          %v3678 = vunpack.c.h.b16 %v2974
          %v3679 = vunpack.c.l.b16 %v2975
          %v3680 = vunpack.c.h.b16 %v2975
          %v3681 = vunpack.c.l.b16 %v2976
          %v3682 = vunpack.c.h.b16 %v2976
          %v3683 = vunpack.c.l.b16 %v2977
          %v3684 = vunpack.c.h.b16 %v2977
          %v3685 = vunpack.c.l.b16 %v2978
          %v3686 = vunpack.c.h.b16 %v2978
          %v3687 = vunpack.c.l.b16 %v2979
          %v3688 = vunpack.c.h.b16 %v2979
          %v3689 = vunpack.c.l.b16 %v2980
          %v3690 = vunpack.c.h.b16 %v2980
          %v3691 = vunpack.c.l.b16 %v2981
          %v3692 = vunpack.c.h.b16 %v2981
          %v3693 = vunpack.c.l.b16 %v2982
          %v3694 = vunpack.c.h.b16 %v2982
          %v3695 = vunpack.c.l.b16 %v2983
          %v3696 = vunpack.c.h.b16 %v2983
          %v3697 = vunpack.c.l.b16 %v2984
          %v3698 = vunpack.c.h.b16 %v2984
          %v3699 = vunpack.c.l.b16 %v2985
          %v3700 = vunpack.c.h.b16 %v2985
          %v3701 = vunpack.c.l.b16 %v2986
          %v3702 = vunpack.c.h.b16 %v2986
          %v3703 = vunpack.c.l.b16 %v2987
          %v3704 = vunpack.c.h.b16 %v2987
          %v3705 = vunpack.c.l.b16 %v2988
          %v3706 = vunpack.c.h.b16 %v2988
          %v3707 = vunpack.c.l.b16 %v2989
          %v3708 = vunpack.c.h.b16 %v2989
          %v3709 = vunpack.c.l.b16 %v2990
          %v3710 = vunpack.c.h.b16 %v2990
          %v3711 = vunpack.c.l.b16 %v2991
          %v3712 = vunpack.c.h.b16 %v2991
          %v3713 = vunpack.c.l.b16 %v2992
          %v3714 = vunpack.c.h.b16 %v2992
          %v3715 = vunpack.c.l.b16 %v2993
          %v3716 = vunpack.c.h.b16 %v2993
          %v3717 = vunpack.c.l.b16 %v2994
          %v3718 = vunpack.c.h.b16 %v2994
          %v3719 = vunpack.c.l.b16 %v2995
          %v3720 = vunpack.c.h.b16 %v2995
          %v3721 = vunpack.c.l.b16 %v2996
          %v3722 = vunpack.c.h.b16 %v2996
          %v3723 = vunpack.c.l.b16 %v2997
          %v3724 = vunpack.c.h.b16 %v2997
          %v3725 = vunpack.c.l.b16 %v2998
          %v3726 = vunpack.c.h.b16 %v2998
          %v3727 = vunpack.c.l.b16 %v2999
          %v3728 = vunpack.c.h.b16 %v2999
          %v3729 = vunpack.c.l.b16 %v3000
          %v3730 = vunpack.c.h.b16 %v3000
          %v3731 = vunpack.c.l.b16 %v3001
          %v3732 = vunpack.c.h.b16 %v3001
          %v3733 = vunpack.c.l.b16 %v3002
          %v3734 = vunpack.c.h.b16 %v3002
          %v3735 = vunpack.c.l.b16 %v3003
          %v3736 = vunpack.c.h.b16 %v3003
          %v3737 = vunpack.c.l.b16 %v3004
          %v3738 = vunpack.c.h.b16 %v3004
          %v3739 = vunpack.c.l.b16 %v3005
          %v3740 = vunpack.c.h.b16 %v3005
          %v3741 = vunpack.c.l.b16 %v3006
          %v3742 = vunpack.c.h.b16 %v3006
          %v3743 = vunpack.c.l.b16 %v3007
          %v3744 = vunpack.c.h.b16 %v3007
          %v3745 = vunpack.c.l.b16 %v3008
          %v3746 = vunpack.c.h.b16 %v3008
          %v3747 = vunpack.c.l.b16 %v3009
          %v3748 = vunpack.c.h.b16 %v3009
          %v3749 = vunpack.c.l.b16 %v3010
          %v3750 = vunpack.c.h.b16 %v3010
          %v3751 = vunpack.c.l.b16 %v3011
          %v3752 = vunpack.c.h.b16 %v3011
          %v3753 = vunpack.c.l.b16 %v3012
          %v3754 = vunpack.c.h.b16 %v3012
          %v3755 = vunpack.c.l.b16 %v3013
          %v3756 = vunpack.c.h.b16 %v3013
          %v3757 = vunpack.c.l.b16 %v3014
          %v3758 = vunpack.c.h.b16 %v3014
          %v3759 = vunpack.c.l.b16 %v3015
          %v3760 = vunpack.c.h.b16 %v3015
          %v3761 = vunpack.c.l.b16 %v3016
          %v3762 = vunpack.c.h.b16 %v3016
          %v3763 = vunpack.c.l.b16 %v3017
          %v3764 = vunpack.c.h.b16 %v3017
          %v3765 = vunpack.c.l.b16 %v3018
          %v3766 = vunpack.c.h.b16 %v3018
          %v3767 = vunpack.c.l.b16 %v3019
          %v3768 = vunpack.c.h.b16 %v3019
          %v3769 = vunpack.c.l.b16 %v3020
          %v3770 = vunpack.c.h.b16 %v3020
          %v3771 = vunpack.c.l.b16 %v3021
          %v3772 = vunpack.c.h.b16 %v3021
          %v3773 = vunpack.c.l.b16 %v3022
          %v3774 = vunpack.c.h.b16 %v3022
          %v3775 = vunpack.c.l.b16 %v3023
          %v3776 = vunpack.c.h.b16 %v3023
          %v3777 = vunpack.c.l.b16 %v3024
          %v3778 = vunpack.c.h.b16 %v3024
          %v3779 = vunpack.c.l.b16 %v3025
          %v3780 = vunpack.c.h.b16 %v3025
          %v3781 = vunpack.c.l.b16 %v3026
          %v3782 = vunpack.c.h.b16 %v3026
          %v3783 = vunpack.c.l.b16 %v3027
          %v3784 = vunpack.c.h.b16 %v3027
          %v3785 = vunpack.c.l.b16 %v3028
          %v3786 = vunpack.c.h.b16 %v3028
          %v3787 = vunpack.c.l.b16 %v3029
          %v3788 = vunpack.c.h.b16 %v3029
          %v3789 = vunpack.c.l.b16 %v3030
          %v3790 = vunpack.c.h.b16 %v3030
          %v3791 = vunpack.c.l.b16 %v3031
          %v3792 = vunpack.c.h.b16 %v3031
          %v3793 = vunpack.c.l.b16 %v3032
          %v3794 = vunpack.c.h.b16 %v3032
          %v3795 = vunpack.c.l.b16 %v3033
          %v3796 = vunpack.c.h.b16 %v3033
          %v3797 = vunpack.c.l.b16 %v3034
          %v3798 = vunpack.c.h.b16 %v3034
          %v3799 = vunpack.c.l.b16 %v3035
          %v3800 = vunpack.c.h.b16 %v3035
          %v3801 = vunpack.c.l.b16 %v3036
          %v3802 = vunpack.c.h.b16 %v3036
          %v3803 = vunpack.c.l.b16 %v3037
          %v3804 = vunpack.c.h.b16 %v3037
          %v3805 = vunpack.c.l.b16 %v3038
          %v3806 = vunpack.c.h.b16 %v3038
          %v3807 = vunpack.c.l.b16 %v3039
          %v3808 = vunpack.c.h.b16 %v3039
          %v3809 = vpack.c.b16 %v3301, %v3297
          %v3810 = vpack.c.b16 %v3302, %v3298
          %v3811 = vpack.c.b16 %v3303, %v3299
          %v3812 = vpack.c.b16 %v3304, %v3300
          %v3813 = vpack.c.b16 %v3309, %v3305
          %v3814 = vpack.c.b16 %v3310, %v3306
          %v3815 = vpack.c.b16 %v3311, %v3307
          %v3816 = vpack.c.b16 %v3312, %v3308
          %v3817 = vpack.c.b16 %v3317, %v3313
          %v3818 = vpack.c.b16 %v3318, %v3314
          %v3819 = vpack.c.b16 %v3319, %v3315
          %v3820 = vpack.c.b16 %v3320, %v3316
          %v3821 = vpack.c.b16 %v3325, %v3321
          %v3822 = vpack.c.b16 %v3326, %v3322
          %v3823 = vpack.c.b16 %v3327, %v3323
          %v3824 = vpack.c.b16 %v3328, %v3324
          %v3825 = vpack.c.b16 %v3333, %v3329
          %v3826 = vpack.c.b16 %v3334, %v3330
          %v3827 = vpack.c.b16 %v3335, %v3331
          %v3828 = vpack.c.b16 %v3336, %v3332
          %v3829 = vpack.c.b16 %v3341, %v3337
          %v3830 = vpack.c.b16 %v3342, %v3338
          %v3831 = vpack.c.b16 %v3343, %v3339
          %v3832 = vpack.c.b16 %v3344, %v3340
          %v3833 = vpack.c.b16 %v3349, %v3345
          %v3834 = vpack.c.b16 %v3350, %v3346
          %v3835 = vpack.c.b16 %v3351, %v3347
          %v3836 = vpack.c.b16 %v3352, %v3348
          %v3837 = vpack.c.b16 %v3357, %v3353
          %v3838 = vpack.c.b16 %v3358, %v3354
          %v3839 = vpack.c.b16 %v3359, %v3355
          %v3840 = vpack.c.b16 %v3360, %v3356
          %v3841 = vpack.c.b16 %v3365, %v3361
          %v3842 = vpack.c.b16 %v3366, %v3362
          %v3843 = vpack.c.b16 %v3367, %v3363
          %v3844 = vpack.c.b16 %v3368, %v3364
          %v3845 = vpack.c.b16 %v3373, %v3369
          %v3846 = vpack.c.b16 %v3374, %v3370
          %v3847 = vpack.c.b16 %v3375, %v3371
          %v3848 = vpack.c.b16 %v3376, %v3372
          %v3849 = vpack.c.b16 %v3381, %v3377
          %v3850 = vpack.c.b16 %v3382, %v3378
          %v3851 = vpack.c.b16 %v3383, %v3379
          %v3852 = vpack.c.b16 %v3384, %v3380
          %v3853 = vpack.c.b16 %v3389, %v3385
          %v3854 = vpack.c.b16 %v3390, %v3386
          %v3855 = vpack.c.b16 %v3391, %v3387
          %v3856 = vpack.c.b16 %v3392, %v3388
          %v3857 = vpack.c.b16 %v3397, %v3393
          %v3858 = vpack.c.b16 %v3398, %v3394
          %v3859 = vpack.c.b16 %v3399, %v3395
          %v3860 = vpack.c.b16 %v3400, %v3396
          %v3861 = vpack.c.b16 %v3405, %v3401
          %v3862 = vpack.c.b16 %v3406, %v3402
          %v3863 = vpack.c.b16 %v3407, %v3403
          %v3864 = vpack.c.b16 %v3408, %v3404
          %v3865 = vpack.c.b16 %v3413, %v3409
          %v3866 = vpack.c.b16 %v3414, %v3410
          %v3867 = vpack.c.b16 %v3415, %v3411
          %v3868 = vpack.c.b16 %v3416, %v3412
          %v3869 = vpack.c.b16 %v3421, %v3417
          %v3870 = vpack.c.b16 %v3422, %v3418
          %v3871 = vpack.c.b16 %v3423, %v3419
          %v3872 = vpack.c.b16 %v3424, %v3420
          %v3873 = vpack.c.b16 %v3429, %v3425
          %v3874 = vpack.c.b16 %v3430, %v3426
          %v3875 = vpack.c.b16 %v3431, %v3427
          %v3876 = vpack.c.b16 %v3432, %v3428
          %v3877 = vpack.c.b16 %v3437, %v3433
          %v3878 = vpack.c.b16 %v3438, %v3434
          %v3879 = vpack.c.b16 %v3439, %v3435
          %v3880 = vpack.c.b16 %v3440, %v3436
          %v3881 = vpack.c.b16 %v3445, %v3441
          %v3882 = vpack.c.b16 %v3446, %v3442
          %v3883 = vpack.c.b16 %v3447, %v3443
          %v3884 = vpack.c.b16 %v3448, %v3444
          %v3885 = vpack.c.b16 %v3453, %v3449
          %v3886 = vpack.c.b16 %v3454, %v3450
          %v3887 = vpack.c.b16 %v3455, %v3451
          %v3888 = vpack.c.b16 %v3456, %v3452
          %v3889 = vpack.c.b16 %v3461, %v3457
          %v3890 = vpack.c.b16 %v3462, %v3458
          %v3891 = vpack.c.b16 %v3463, %v3459
          %v3892 = vpack.c.b16 %v3464, %v3460
          %v3893 = vpack.c.b16 %v3469, %v3465
          %v3894 = vpack.c.b16 %v3470, %v3466
          %v3895 = vpack.c.b16 %v3471, %v3467
          %v3896 = vpack.c.b16 %v3472, %v3468
          %v3897 = vpack.c.b16 %v3477, %v3473
          %v3898 = vpack.c.b16 %v3478, %v3474
          %v3899 = vpack.c.b16 %v3479, %v3475
          %v3900 = vpack.c.b16 %v3480, %v3476
          %v3901 = vpack.c.b16 %v3485, %v3481
          %v3902 = vpack.c.b16 %v3486, %v3482
          %v3903 = vpack.c.b16 %v3487, %v3483
          %v3904 = vpack.c.b16 %v3488, %v3484
          %v3905 = vpack.c.b16 %v3493, %v3489
          %v3906 = vpack.c.b16 %v3494, %v3490
          %v3907 = vpack.c.b16 %v3495, %v3491
          %v3908 = vpack.c.b16 %v3496, %v3492
          %v3909 = vpack.c.b16 %v3501, %v3497
          %v3910 = vpack.c.b16 %v3502, %v3498
          %v3911 = vpack.c.b16 %v3503, %v3499
          %v3912 = vpack.c.b16 %v3504, %v3500
          %v3913 = vpack.c.b16 %v3509, %v3505
          %v3914 = vpack.c.b16 %v3510, %v3506
          %v3915 = vpack.c.b16 %v3511, %v3507
          %v3916 = vpack.c.b16 %v3512, %v3508
          %v3917 = vpack.c.b16 %v3517, %v3513
          %v3918 = vpack.c.b16 %v3518, %v3514
          %v3919 = vpack.c.b16 %v3519, %v3515
          %v3920 = vpack.c.b16 %v3520, %v3516
          %v3921 = vpack.c.b16 %v3525, %v3521
          %v3922 = vpack.c.b16 %v3526, %v3522
          %v3923 = vpack.c.b16 %v3527, %v3523
          %v3924 = vpack.c.b16 %v3528, %v3524
          %v3925 = vpack.c.b16 %v3533, %v3529
          %v3926 = vpack.c.b16 %v3534, %v3530
          %v3927 = vpack.c.b16 %v3535, %v3531
          %v3928 = vpack.c.b16 %v3536, %v3532
          %v3929 = vpack.c.b16 %v3541, %v3537
          %v3930 = vpack.c.b16 %v3542, %v3538
          %v3931 = vpack.c.b16 %v3543, %v3539
          %v3932 = vpack.c.b16 %v3544, %v3540
          %v3933 = vpack.c.b16 %v3549, %v3545
          %v3934 = vpack.c.b16 %v3550, %v3546
          %v3935 = vpack.c.b16 %v3551, %v3547
          %v3936 = vpack.c.b16 %v3552, %v3548
          %v3937 = vpack.c.b16 %v3557, %v3553
          %v3938 = vpack.c.b16 %v3558, %v3554
          %v3939 = vpack.c.b16 %v3559, %v3555
          %v3940 = vpack.c.b16 %v3560, %v3556
          %v3941 = vpack.c.b16 %v3565, %v3561
          %v3942 = vpack.c.b16 %v3566, %v3562
          %v3943 = vpack.c.b16 %v3567, %v3563
          %v3944 = vpack.c.b16 %v3568, %v3564
          %v3945 = vpack.c.b16 %v3573, %v3569
          %v3946 = vpack.c.b16 %v3574, %v3570
          %v3947 = vpack.c.b16 %v3575, %v3571
          %v3948 = vpack.c.b16 %v3576, %v3572
          %v3949 = vpack.c.b16 %v3581, %v3577
          %v3950 = vpack.c.b16 %v3582, %v3578
          %v3951 = vpack.c.b16 %v3583, %v3579
          %v3952 = vpack.c.b16 %v3584, %v3580
          %v3953 = vpack.c.b16 %v3589, %v3585
          %v3954 = vpack.c.b16 %v3590, %v3586
          %v3955 = vpack.c.b16 %v3591, %v3587
          %v3956 = vpack.c.b16 %v3592, %v3588
          %v3957 = vpack.c.b16 %v3597, %v3593
          %v3958 = vpack.c.b16 %v3598, %v3594
          %v3959 = vpack.c.b16 %v3599, %v3595
          %v3960 = vpack.c.b16 %v3600, %v3596
          %v3961 = vpack.c.b16 %v3605, %v3601
          %v3962 = vpack.c.b16 %v3606, %v3602
          %v3963 = vpack.c.b16 %v3607, %v3603
          %v3964 = vpack.c.b16 %v3608, %v3604
          %v3965 = vpack.c.b16 %v3613, %v3609
          %v3966 = vpack.c.b16 %v3614, %v3610
          %v3967 = vpack.c.b16 %v3615, %v3611
          %v3968 = vpack.c.b16 %v3616, %v3612
          %v3969 = vpack.c.b16 %v3621, %v3617
          %v3970 = vpack.c.b16 %v3622, %v3618
          %v3971 = vpack.c.b16 %v3623, %v3619
          %v3972 = vpack.c.b16 %v3624, %v3620
          %v3973 = vpack.c.b16 %v3629, %v3625
          %v3974 = vpack.c.b16 %v3630, %v3626
          %v3975 = vpack.c.b16 %v3631, %v3627
          %v3976 = vpack.c.b16 %v3632, %v3628
          %v3977 = vpack.c.b16 %v3637, %v3633
          %v3978 = vpack.c.b16 %v3638, %v3634
          %v3979 = vpack.c.b16 %v3639, %v3635
          %v3980 = vpack.c.b16 %v3640, %v3636
          %v3981 = vpack.c.b16 %v3645, %v3641
          %v3982 = vpack.c.b16 %v3646, %v3642
          %v3983 = vpack.c.b16 %v3647, %v3643
          %v3984 = vpack.c.b16 %v3648, %v3644
          %v3985 = vpack.c.b16 %v3653, %v3649
          %v3986 = vpack.c.b16 %v3654, %v3650
          %v3987 = vpack.c.b16 %v3655, %v3651
          %v3988 = vpack.c.b16 %v3656, %v3652
          %v3989 = vpack.c.b16 %v3661, %v3657
          %v3990 = vpack.c.b16 %v3662, %v3658
          %v3991 = vpack.c.b16 %v3663, %v3659
          %v3992 = vpack.c.b16 %v3664, %v3660
          %v3993 = vpack.c.b16 %v3669, %v3665
          %v3994 = vpack.c.b16 %v3670, %v3666
          %v3995 = vpack.c.b16 %v3671, %v3667
          %v3996 = vpack.c.b16 %v3672, %v3668
          %v3997 = vpack.c.b16 %v3677, %v3673
          %v3998 = vpack.c.b16 %v3678, %v3674
          %v3999 = vpack.c.b16 %v3679, %v3675
          %v4000 = vpack.c.b16 %v3680, %v3676
          %v4001 = vpack.c.b16 %v3685, %v3681
          %v4002 = vpack.c.b16 %v3686, %v3682
          %v4003 = vpack.c.b16 %v3687, %v3683
          %v4004 = vpack.c.b16 %v3688, %v3684
          %v4005 = vpack.c.b16 %v3693, %v3689
          %v4006 = vpack.c.b16 %v3694, %v3690
          %v4007 = vpack.c.b16 %v3695, %v3691
          %v4008 = vpack.c.b16 %v3696, %v3692
          %v4009 = vpack.c.b16 %v3701, %v3697
          %v4010 = vpack.c.b16 %v3702, %v3698
          %v4011 = vpack.c.b16 %v3703, %v3699
          %v4012 = vpack.c.b16 %v3704, %v3700
          %v4013 = vpack.c.b16 %v3709, %v3705
          %v4014 = vpack.c.b16 %v3710, %v3706
          %v4015 = vpack.c.b16 %v3711, %v3707
          %v4016 = vpack.c.b16 %v3712, %v3708
          %v4017 = vpack.c.b16 %v3717, %v3713
          %v4018 = vpack.c.b16 %v3718, %v3714
          %v4019 = vpack.c.b16 %v3719, %v3715
          %v4020 = vpack.c.b16 %v3720, %v3716
          %v4021 = vpack.c.b16 %v3725, %v3721
          %v4022 = vpack.c.b16 %v3726, %v3722
          %v4023 = vpack.c.b16 %v3727, %v3723
          %v4024 = vpack.c.b16 %v3728, %v3724
          %v4025 = vpack.c.b16 %v3733, %v3729
          %v4026 = vpack.c.b16 %v3734, %v3730
          %v4027 = vpack.c.b16 %v3735, %v3731
          %v4028 = vpack.c.b16 %v3736, %v3732
          %v4029 = vpack.c.b16 %v3741, %v3737
          %v4030 = vpack.c.b16 %v3742, %v3738
          %v4031 = vpack.c.b16 %v3743, %v3739
          %v4032 = vpack.c.b16 %v3744, %v3740
          %v4033 = vpack.c.b16 %v3749, %v3745
          %v4034 = vpack.c.b16 %v3750, %v3746
          %v4035 = vpack.c.b16 %v3751, %v3747
          %v4036 = vpack.c.b16 %v3752, %v3748
          %v4037 = vpack.c.b16 %v3757, %v3753
          %v4038 = vpack.c.b16 %v3758, %v3754
          %v4039 = vpack.c.b16 %v3759, %v3755
          %v4040 = vpack.c.b16 %v3760, %v3756
          %v4041 = vpack.c.b16 %v3765, %v3761
          %v4042 = vpack.c.b16 %v3766, %v3762
          %v4043 = vpack.c.b16 %v3767, %v3763
          %v4044 = vpack.c.b16 %v3768, %v3764
          %v4045 = vpack.c.b16 %v3773, %v3769
          %v4046 = vpack.c.b16 %v3774, %v3770
          %v4047 = vpack.c.b16 %v3775, %v3771
          %v4048 = vpack.c.b16 %v3776, %v3772
          %v4049 = vpack.c.b16 %v3781, %v3777
          %v4050 = vpack.c.b16 %v3782, %v3778
          %v4051 = vpack.c.b16 %v3783, %v3779
          %v4052 = vpack.c.b16 %v3784, %v3780
          %v4053 = vpack.c.b16 %v3789, %v3785
          %v4054 = vpack.c.b16 %v3790, %v3786
          %v4055 = vpack.c.b16 %v3791, %v3787
          %v4056 = vpack.c.b16 %v3792, %v3788
          %v4057 = vpack.c.b16 %v3797, %v3793
          %v4058 = vpack.c.b16 %v3798, %v3794
          %v4059 = vpack.c.b16 %v3799, %v3795
          %v4060 = vpack.c.b16 %v3800, %v3796
          %v4061 = vpack.c.b16 %v3805, %v3801
          %v4062 = vpack.c.b16 %v3806, %v3802
          %v4063 = vpack.c.b16 %v3807, %v3803
          %v4064 = vpack.c.b16 %v3808, %v3804
          %v4322 = vperm.slane %v3040, 0
          %v4323 = vperm.slane %v3040, 1
          %v4324 = vperm.slane %v3040, 2
          %v4325 = vperm.slane %v3040, 3
          %4330 = vmatpush.bf16.msra.mxu0 %v3837
          %4331 = vmatpush.bf16.msra.mxu0 %v3833
          %4332 = vmatpush.bf16.msra.mxu0 %v3829
          %4333 = vmatpush.bf16.msra.mxu0 %v3825
          %4334 = vmatpush.bf16.msra.mxu0 %v3821
          %4335 = vmatpush.bf16.msra.mxu0 %v3817
          %4336 = vmatpush.bf16.msra.mxu0 %v3813
          %4337 = vmatpush.bf16.msra.mxu0 %v3809
          %4338 = vmatmul.bf16.gmra.mxu0 %v2776
          %v4339 = vpop.f32.mrf.mxu0
          %v4340 = vadd.f32 %v4322, %v4339
          %v4341 = vpop.f32.mrf.mxu0
          %4342 = vdwg.mxu0
          %4343 = vmatpush.bf16.msra.mxu0 %v3869
          %4344 = vmatpush.bf16.msra.mxu0 %v3865
          %4345 = vmatpush.bf16.msra.mxu0 %v3861
          %4346 = vmatpush.bf16.msra.mxu0 %v3857
          %4347 = vmatpush.bf16.msra.mxu0 %v3853
          %4348 = vmatpush.bf16.msra.mxu0 %v3849
          %4349 = vmatpush.bf16.msra.mxu0 %v3845
          %4350 = vmatpush.bf16.msra.mxu0 %v3841
          %4351 = vmatmul.bf16.gmra.mxu0 %v2777
          %v4352 = vpop.f32.mrf.mxu0
          %v4353 = vadd.f32 %v4340, %v4352
          %v4354 = vpop.f32.mrf.mxu0
          %4355 = vdwg.mxu0
          %4356 = vmatpush.bf16.msra.mxu0 %v3901
          %4357 = vmatpush.bf16.msra.mxu0 %v3897
          %4358 = vmatpush.bf16.msra.mxu0 %v3893
          %4359 = vmatpush.bf16.msra.mxu0 %v3889
          %4360 = vmatpush.bf16.msra.mxu0 %v3885
          %4361 = vmatpush.bf16.msra.mxu0 %v3881
          %4362 = vmatpush.bf16.msra.mxu0 %v3877
          %4363 = vmatpush.bf16.msra.mxu0 %v3873
          %4364 = vmatmul.bf16.gmra.mxu0 %v2778
          %v4365 = vpop.f32.mrf.mxu0
          %v4366 = vadd.f32 %v4353, %v4365
          %v4367 = vpop.f32.mrf.mxu0
          %4368 = vdwg.mxu0
          %4369 = vmatpush.bf16.msra.mxu0 %v3933
          %4370 = vmatpush.bf16.msra.mxu0 %v3929
          %4371 = vmatpush.bf16.msra.mxu0 %v3925
          %4372 = vmatpush.bf16.msra.mxu0 %v3921
          %4373 = vmatpush.bf16.msra.mxu0 %v3917
          %4374 = vmatpush.bf16.msra.mxu0 %v3913
          %4375 = vmatpush.bf16.msra.mxu0 %v3909
          %4376 = vmatpush.bf16.msra.mxu0 %v3905
          %4377 = vmatmul.bf16.gmra.mxu0 %v2779
          %v4378 = vpop.f32.mrf.mxu0
          %v4379 = vadd.f32 %v4366, %v4378
          %v4380 = vpop.f32.mrf.mxu0
          %4381 = vdwg.mxu0
          %4382 = vmatpush.bf16.msra.mxu0 %v3965
          %4383 = vmatpush.bf16.msra.mxu0 %v3961
          %4384 = vmatpush.bf16.msra.mxu0 %v3957
          %4385 = vmatpush.bf16.msra.mxu0 %v3953
          %4386 = vmatpush.bf16.msra.mxu0 %v3949
          %4387 = vmatpush.bf16.msra.mxu0 %v3945
          %4388 = vmatpush.bf16.msra.mxu0 %v3941
          %4389 = vmatpush.bf16.msra.mxu0 %v3937
          %4390 = vmatmul.bf16.gmra.mxu0 %v2780
          %v4391 = vpop.f32.mrf.mxu0
          %v4392 = vadd.f32 %v4379, %v4391
          %v4393 = vpop.f32.mrf.mxu0
          %4394 = vdwg.mxu0
          %4395 = vmatpush.bf16.msra.mxu0 %v3997
          %4396 = vmatpush.bf16.msra.mxu0 %v3993
          %4397 = vmatpush.bf16.msra.mxu0 %v3989
          %4398 = vmatpush.bf16.msra.mxu0 %v3985
          %4399 = vmatpush.bf16.msra.mxu0 %v3981
          %4400 = vmatpush.bf16.msra.mxu0 %v3977
          %4401 = vmatpush.bf16.msra.mxu0 %v3973
          %4402 = vmatpush.bf16.msra.mxu0 %v3969
          %4403 = vmatmul.bf16.gmra.mxu0 %v2781
          %v4404 = vpop.f32.mrf.mxu0
          %v4405 = vadd.f32 %v4392, %v4404
          %v4406 = vpop.f32.mrf.mxu0
          %4407 = vdwg.mxu0
          %4408 = vmatpush.bf16.msra.mxu0 %v4029
          %4409 = vmatpush.bf16.msra.mxu0 %v4025
          %4410 = vmatpush.bf16.msra.mxu0 %v4021
          %4411 = vmatpush.bf16.msra.mxu0 %v4017
          %4412 = vmatpush.bf16.msra.mxu0 %v4013
          %4413 = vmatpush.bf16.msra.mxu0 %v4009
          %4414 = vmatpush.bf16.msra.mxu0 %v4005
          %4415 = vmatpush.bf16.msra.mxu0 %v4001
          %4416 = vmatmul.bf16.gmra.mxu0 %v2782
          %v4417 = vpop.f32.mrf.mxu0
          %v4418 = vadd.f32 %v4405, %v4417
          %v4419 = vpop.f32.mrf.mxu0
          %4420 = vdwg.mxu0
          %4421 = vmatpush.bf16.msra.mxu0 %v4061
          %4422 = vmatpush.bf16.msra.mxu0 %v4057
          %4423 = vmatpush.bf16.msra.mxu0 %v4053
          %4424 = vmatpush.bf16.msra.mxu0 %v4049
          %4425 = vmatpush.bf16.msra.mxu0 %v4045
          %4426 = vmatpush.bf16.msra.mxu0 %v4041
          %4427 = vmatpush.bf16.msra.mxu0 %v4037
          %4428 = vmatpush.bf16.msra.mxu0 %v4033
          %4429 = vmatmul.bf16.gmra.mxu0 %v2783
          %v4430 = vpop.f32.mrf.mxu0
          %v4431 = vadd.f32 %v4418, %v4430
          %v4432 = vpop.f32.mrf.mxu0
          %4433 = vdwg.mxu0
          %4434 = vmatpush.bf16.msra.mxu0 %v3838
          %4435 = vmatpush.bf16.msra.mxu0 %v3834
          %4436 = vmatpush.bf16.msra.mxu0 %v3830
          %4437 = vmatpush.bf16.msra.mxu0 %v3826
          %4438 = vmatpush.bf16.msra.mxu0 %v3822
          %4439 = vmatpush.bf16.msra.mxu0 %v3818
          %4440 = vmatpush.bf16.msra.mxu0 %v3814
          %4441 = vmatpush.bf16.msra.mxu0 %v3810
          %4442 = vmatmul.bf16.gmra.mxu0 %v2776
          %v4443 = vpop.f32.mrf.mxu0
          %v4444 = vadd.f32 %v4323, %v4443
          %v4445 = vpop.f32.mrf.mxu0
          %4446 = vdwg.mxu0
          %4447 = vmatpush.bf16.msra.mxu0 %v3870
          %4448 = vmatpush.bf16.msra.mxu0 %v3866
          %4449 = vmatpush.bf16.msra.mxu0 %v3862
          %4450 = vmatpush.bf16.msra.mxu0 %v3858
          %4451 = vmatpush.bf16.msra.mxu0 %v3854
          %4452 = vmatpush.bf16.msra.mxu0 %v3850
          %4453 = vmatpush.bf16.msra.mxu0 %v3846
          %4454 = vmatpush.bf16.msra.mxu0 %v3842
          %4455 = vmatmul.bf16.gmra.mxu0 %v2777
          %v4456 = vpop.f32.mrf.mxu0
          %v4457 = vadd.f32 %v4444, %v4456
          %v4458 = vpop.f32.mrf.mxu0
          %4459 = vdwg.mxu0
          %4460 = vmatpush.bf16.msra.mxu0 %v3902
          %4461 = vmatpush.bf16.msra.mxu0 %v3898
          %4462 = vmatpush.bf16.msra.mxu0 %v3894
          %4463 = vmatpush.bf16.msra.mxu0 %v3890
          %4464 = vmatpush.bf16.msra.mxu0 %v3886
          %4465 = vmatpush.bf16.msra.mxu0 %v3882
          %4466 = vmatpush.bf16.msra.mxu0 %v3878
          %4467 = vmatpush.bf16.msra.mxu0 %v3874
          %4468 = vmatmul.bf16.gmra.mxu0 %v2778
          %v4469 = vpop.f32.mrf.mxu0
          %v4470 = vadd.f32 %v4457, %v4469
          %v4471 = vpop.f32.mrf.mxu0
          %4472 = vdwg.mxu0
          %4473 = vmatpush.bf16.msra.mxu0 %v3934
          %4474 = vmatpush.bf16.msra.mxu0 %v3930
          %4475 = vmatpush.bf16.msra.mxu0 %v3926
          %4476 = vmatpush.bf16.msra.mxu0 %v3922
          %4477 = vmatpush.bf16.msra.mxu0 %v3918
          %4478 = vmatpush.bf16.msra.mxu0 %v3914
          %4479 = vmatpush.bf16.msra.mxu0 %v3910
          %4480 = vmatpush.bf16.msra.mxu0 %v3906
          %4481 = vmatmul.bf16.gmra.mxu0 %v2779
          %v4482 = vpop.f32.mrf.mxu0
          %v4483 = vadd.f32 %v4470, %v4482
          %v4484 = vpop.f32.mrf.mxu0
          %4485 = vdwg.mxu0
          %4486 = vmatpush.bf16.msra.mxu0 %v3966
          %4487 = vmatpush.bf16.msra.mxu0 %v3962
          %4488 = vmatpush.bf16.msra.mxu0 %v3958
          %4489 = vmatpush.bf16.msra.mxu0 %v3954
          %4490 = vmatpush.bf16.msra.mxu0 %v3950
          %4491 = vmatpush.bf16.msra.mxu0 %v3946
          %4492 = vmatpush.bf16.msra.mxu0 %v3942
          %4493 = vmatpush.bf16.msra.mxu0 %v3938
          %4494 = vmatmul.bf16.gmra.mxu0 %v2780
          %v4495 = vpop.f32.mrf.mxu0
          %v4496 = vadd.f32 %v4483, %v4495
          %v4497 = vpop.f32.mrf.mxu0
          %4498 = vdwg.mxu0
          %4499 = vmatpush.bf16.msra.mxu0 %v3998
          %4500 = vmatpush.bf16.msra.mxu0 %v3994
          %4501 = vmatpush.bf16.msra.mxu0 %v3990
          %4502 = vmatpush.bf16.msra.mxu0 %v3986
          %4503 = vmatpush.bf16.msra.mxu0 %v3982
          %4504 = vmatpush.bf16.msra.mxu0 %v3978
          %4505 = vmatpush.bf16.msra.mxu0 %v3974
          %4506 = vmatpush.bf16.msra.mxu0 %v3970
          %4507 = vmatmul.bf16.gmra.mxu0 %v2781
          %v4508 = vpop.f32.mrf.mxu0
          %v4509 = vadd.f32 %v4496, %v4508
          %v4510 = vpop.f32.mrf.mxu0
          %4511 = vdwg.mxu0
          %4512 = vmatpush.bf16.msra.mxu0 %v4030
          %4513 = vmatpush.bf16.msra.mxu0 %v4026
          %4514 = vmatpush.bf16.msra.mxu0 %v4022
          %4515 = vmatpush.bf16.msra.mxu0 %v4018
          %4516 = vmatpush.bf16.msra.mxu0 %v4014
          %4517 = vmatpush.bf16.msra.mxu0 %v4010
          %4518 = vmatpush.bf16.msra.mxu0 %v4006
          %4519 = vmatpush.bf16.msra.mxu0 %v4002
          %4520 = vmatmul.bf16.gmra.mxu0 %v2782
          %v4521 = vpop.f32.mrf.mxu0
          %v4522 = vadd.f32 %v4509, %v4521
          %v4523 = vpop.f32.mrf.mxu0
          %4524 = vdwg.mxu0
          %4525 = vmatpush.bf16.msra.mxu0 %v4062
          %4526 = vmatpush.bf16.msra.mxu0 %v4058
          %4527 = vmatpush.bf16.msra.mxu0 %v4054
          %4528 = vmatpush.bf16.msra.mxu0 %v4050
          %4529 = vmatpush.bf16.msra.mxu0 %v4046
          %4530 = vmatpush.bf16.msra.mxu0 %v4042
          %4531 = vmatpush.bf16.msra.mxu0 %v4038
          %4532 = vmatpush.bf16.msra.mxu0 %v4034
          %4533 = vmatmul.bf16.gmra.mxu0 %v2783
          %v4534 = vpop.f32.mrf.mxu0
          %v4535 = vadd.f32 %v4522, %v4534
          %v4536 = vpop.f32.mrf.mxu0
          %4537 = vdwg.mxu0
          %4538 = vmatpush.bf16.msra.mxu0 %v3839
          %4539 = vmatpush.bf16.msra.mxu0 %v3835
          %4540 = vmatpush.bf16.msra.mxu0 %v3831
          %4541 = vmatpush.bf16.msra.mxu0 %v3827
          %4542 = vmatpush.bf16.msra.mxu0 %v3823
          %4543 = vmatpush.bf16.msra.mxu0 %v3819
          %4544 = vmatpush.bf16.msra.mxu0 %v3815
          %4545 = vmatpush.bf16.msra.mxu0 %v3811
          %4546 = vmatmul.bf16.gmra.mxu0 %v2776
          %v4547 = vpop.f32.mrf.mxu0
          %v4548 = vadd.f32 %v4324, %v4547
          %v4549 = vpop.f32.mrf.mxu0
          %4550 = vdwg.mxu0
          %4551 = vmatpush.bf16.msra.mxu0 %v3871
          %4552 = vmatpush.bf16.msra.mxu0 %v3867
          %4553 = vmatpush.bf16.msra.mxu0 %v3863
          %4554 = vmatpush.bf16.msra.mxu0 %v3859
          %4555 = vmatpush.bf16.msra.mxu0 %v3855
          %4556 = vmatpush.bf16.msra.mxu0 %v3851
          %4557 = vmatpush.bf16.msra.mxu0 %v3847
          %4558 = vmatpush.bf16.msra.mxu0 %v3843
          %4559 = vmatmul.bf16.gmra.mxu0 %v2777
          %v4560 = vpop.f32.mrf.mxu0
          %v4561 = vadd.f32 %v4548, %v4560
          %v4562 = vpop.f32.mrf.mxu0
          %4563 = vdwg.mxu0
          %4564 = vmatpush.bf16.msra.mxu0 %v3903
          %4565 = vmatpush.bf16.msra.mxu0 %v3899
          %4566 = vmatpush.bf16.msra.mxu0 %v3895
          %4567 = vmatpush.bf16.msra.mxu0 %v3891
          %4568 = vmatpush.bf16.msra.mxu0 %v3887
          %4569 = vmatpush.bf16.msra.mxu0 %v3883
          %4570 = vmatpush.bf16.msra.mxu0 %v3879
          %4571 = vmatpush.bf16.msra.mxu0 %v3875
          %4572 = vmatmul.bf16.gmra.mxu0 %v2778
          %v4573 = vpop.f32.mrf.mxu0
          %v4574 = vadd.f32 %v4561, %v4573
          %v4575 = vpop.f32.mrf.mxu0
          %4576 = vdwg.mxu0
          %4577 = vmatpush.bf16.msra.mxu0 %v3935
          %4578 = vmatpush.bf16.msra.mxu0 %v3931
          %4579 = vmatpush.bf16.msra.mxu0 %v3927
          %4580 = vmatpush.bf16.msra.mxu0 %v3923
          %4581 = vmatpush.bf16.msra.mxu0 %v3919
          %4582 = vmatpush.bf16.msra.mxu0 %v3915
          %4583 = vmatpush.bf16.msra.mxu0 %v3911
          %4584 = vmatpush.bf16.msra.mxu0 %v3907
          %4585 = vmatmul.bf16.gmra.mxu0 %v2779
          %v4586 = vpop.f32.mrf.mxu0
          %v4587 = vadd.f32 %v4574, %v4586
          %v4588 = vpop.f32.mrf.mxu0
          %4589 = vdwg.mxu0
          %4590 = vmatpush.bf16.msra.mxu0 %v3967
          %4591 = vmatpush.bf16.msra.mxu0 %v3963
          %4592 = vmatpush.bf16.msra.mxu0 %v3959
          %4593 = vmatpush.bf16.msra.mxu0 %v3955
          %4594 = vmatpush.bf16.msra.mxu0 %v3951
          %4595 = vmatpush.bf16.msra.mxu0 %v3947
          %4596 = vmatpush.bf16.msra.mxu0 %v3943
          %4597 = vmatpush.bf16.msra.mxu0 %v3939
          %4598 = vmatmul.bf16.gmra.mxu0 %v2780
          %v4599 = vpop.f32.mrf.mxu0
          %v4600 = vadd.f32 %v4587, %v4599
          %v4601 = vpop.f32.mrf.mxu0
          %4602 = vdwg.mxu0
          %4603 = vmatpush.bf16.msra.mxu0 %v3999
          %4604 = vmatpush.bf16.msra.mxu0 %v3995
          %4605 = vmatpush.bf16.msra.mxu0 %v3991
          %4606 = vmatpush.bf16.msra.mxu0 %v3987
          %4607 = vmatpush.bf16.msra.mxu0 %v3983
          %4608 = vmatpush.bf16.msra.mxu0 %v3979
          %4609 = vmatpush.bf16.msra.mxu0 %v3975
          %4610 = vmatpush.bf16.msra.mxu0 %v3971
          %4611 = vmatmul.bf16.gmra.mxu0 %v2781
          %v4612 = vpop.f32.mrf.mxu0
          %v4613 = vadd.f32 %v4600, %v4612
          %v4614 = vpop.f32.mrf.mxu0
          %4615 = vdwg.mxu0
          %4616 = vmatpush.bf16.msra.mxu0 %v4031
          %4617 = vmatpush.bf16.msra.mxu0 %v4027
          %4618 = vmatpush.bf16.msra.mxu0 %v4023
          %4619 = vmatpush.bf16.msra.mxu0 %v4019
          %4620 = vmatpush.bf16.msra.mxu0 %v4015
          %4621 = vmatpush.bf16.msra.mxu0 %v4011
          %4622 = vmatpush.bf16.msra.mxu0 %v4007
          %4623 = vmatpush.bf16.msra.mxu0 %v4003
          %4624 = vmatmul.bf16.gmra.mxu0 %v2782
          %v4625 = vpop.f32.mrf.mxu0
          %v4626 = vadd.f32 %v4613, %v4625
          %v4627 = vpop.f32.mrf.mxu0
          %4628 = vdwg.mxu0
          %4629 = vmatpush.bf16.msra.mxu0 %v4063
          %4630 = vmatpush.bf16.msra.mxu0 %v4059
          %4631 = vmatpush.bf16.msra.mxu0 %v4055
          %4632 = vmatpush.bf16.msra.mxu0 %v4051
          %4633 = vmatpush.bf16.msra.mxu0 %v4047
          %4634 = vmatpush.bf16.msra.mxu0 %v4043
          %4635 = vmatpush.bf16.msra.mxu0 %v4039
          %4636 = vmatpush.bf16.msra.mxu0 %v4035
          %4637 = vmatmul.bf16.gmra.mxu0 %v2783
          %v4638 = vpop.f32.mrf.mxu0
          %v4639 = vadd.f32 %v4626, %v4638
          %v4640 = vpop.f32.mrf.mxu0
          %4641 = vdwg.mxu0
          %4642 = vmatpush.bf16.msra.mxu0 %v3840
          %4643 = vmatpush.bf16.msra.mxu0 %v3836
          %4644 = vmatpush.bf16.msra.mxu0 %v3832
          %4645 = vmatpush.bf16.msra.mxu0 %v3828
          %4646 = vmatpush.bf16.msra.mxu0 %v3824
          %4647 = vmatpush.bf16.msra.mxu0 %v3820
          %4648 = vmatpush.bf16.msra.mxu0 %v3816
          %4649 = vmatpush.bf16.msra.mxu0 %v3812
          %4650 = vmatmul.bf16.gmra.mxu0 %v2776
          %v4651 = vpop.f32.mrf.mxu0
          %v4652 = vadd.f32 %v4325, %v4651
          %v4653 = vpop.f32.mrf.mxu0
          %4654 = vdwg.mxu0
          %4655 = vmatpush.bf16.msra.mxu0 %v3872
          %4656 = vmatpush.bf16.msra.mxu0 %v3868
          %4657 = vmatpush.bf16.msra.mxu0 %v3864
          %4658 = vmatpush.bf16.msra.mxu0 %v3860
          %4659 = vmatpush.bf16.msra.mxu0 %v3856
          %4660 = vmatpush.bf16.msra.mxu0 %v3852
          %4661 = vmatpush.bf16.msra.mxu0 %v3848
          %4662 = vmatpush.bf16.msra.mxu0 %v3844
          %4663 = vmatmul.bf16.gmra.mxu0 %v2777
          %v4664 = vpop.f32.mrf.mxu0
          %v4665 = vadd.f32 %v4652, %v4664
          %v4666 = vpop.f32.mrf.mxu0
          %4667 = vdwg.mxu0
          %4668 = vmatpush.bf16.msra.mxu0 %v3904
          %4669 = vmatpush.bf16.msra.mxu0 %v3900
          %4670 = vmatpush.bf16.msra.mxu0 %v3896
          %4671 = vmatpush.bf16.msra.mxu0 %v3892
          %4672 = vmatpush.bf16.msra.mxu0 %v3888
          %4673 = vmatpush.bf16.msra.mxu0 %v3884
          %4674 = vmatpush.bf16.msra.mxu0 %v3880
          %4675 = vmatpush.bf16.msra.mxu0 %v3876
          %4676 = vmatmul.bf16.gmra.mxu0 %v2778
          %v4677 = vpop.f32.mrf.mxu0
          %v4678 = vadd.f32 %v4665, %v4677
          %v4679 = vpop.f32.mrf.mxu0
          %4680 = vdwg.mxu0
          %4681 = vmatpush.bf16.msra.mxu0 %v3936
          %4682 = vmatpush.bf16.msra.mxu0 %v3932
          %4683 = vmatpush.bf16.msra.mxu0 %v3928
          %4684 = vmatpush.bf16.msra.mxu0 %v3924
          %4685 = vmatpush.bf16.msra.mxu0 %v3920
          %4686 = vmatpush.bf16.msra.mxu0 %v3916
          %4687 = vmatpush.bf16.msra.mxu0 %v3912
          %4688 = vmatpush.bf16.msra.mxu0 %v3908
          %4689 = vmatmul.bf16.gmra.mxu0 %v2779
          %v4690 = vpop.f32.mrf.mxu0
          %v4691 = vadd.f32 %v4678, %v4690
          %v4692 = vpop.f32.mrf.mxu0
          %4693 = vdwg.mxu0
          %4694 = vmatpush.bf16.msra.mxu0 %v3968
          %4695 = vmatpush.bf16.msra.mxu0 %v3964
          %4696 = vmatpush.bf16.msra.mxu0 %v3960
          %4697 = vmatpush.bf16.msra.mxu0 %v3956
          %4698 = vmatpush.bf16.msra.mxu0 %v3952
          %4699 = vmatpush.bf16.msra.mxu0 %v3948
          %4700 = vmatpush.bf16.msra.mxu0 %v3944
          %4701 = vmatpush.bf16.msra.mxu0 %v3940
          %4702 = vmatmul.bf16.gmra.mxu0 %v2780
          %v4703 = vpop.f32.mrf.mxu0
          %v4704 = vadd.f32 %v4691, %v4703
          %v4705 = vpop.f32.mrf.mxu0
          %4706 = vdwg.mxu0
          %4707 = vmatpush.bf16.msra.mxu0 %v4000
          %4708 = vmatpush.bf16.msra.mxu0 %v3996
          %4709 = vmatpush.bf16.msra.mxu0 %v3992
          %4710 = vmatpush.bf16.msra.mxu0 %v3988
          %4711 = vmatpush.bf16.msra.mxu0 %v3984
          %4712 = vmatpush.bf16.msra.mxu0 %v3980
          %4713 = vmatpush.bf16.msra.mxu0 %v3976
          %4714 = vmatpush.bf16.msra.mxu0 %v3972
          %4715 = vmatmul.bf16.gmra.mxu0 %v2781
          %v4716 = vpop.f32.mrf.mxu0
          %v4717 = vadd.f32 %v4704, %v4716
          %v4718 = vpop.f32.mrf.mxu0
          %4719 = vdwg.mxu0
          %4720 = vmatpush.bf16.msra.mxu0 %v4032
          %4721 = vmatpush.bf16.msra.mxu0 %v4028
          %4722 = vmatpush.bf16.msra.mxu0 %v4024
          %4723 = vmatpush.bf16.msra.mxu0 %v4020
          %4724 = vmatpush.bf16.msra.mxu0 %v4016
          %4725 = vmatpush.bf16.msra.mxu0 %v4012
          %4726 = vmatpush.bf16.msra.mxu0 %v4008
          %4727 = vmatpush.bf16.msra.mxu0 %v4004
          %4728 = vmatmul.bf16.gmra.mxu0 %v2782
          %v4729 = vpop.f32.mrf.mxu0
          %v4730 = vadd.f32 %v4717, %v4729
          %v4731 = vpop.f32.mrf.mxu0
          %4732 = vdwg.mxu0
          %4733 = vmatpush.bf16.msra.mxu0 %v4064
          %4734 = vmatpush.bf16.msra.mxu0 %v4060
          %4735 = vmatpush.bf16.msra.mxu0 %v4056
          %4736 = vmatpush.bf16.msra.mxu0 %v4052
          %4737 = vmatpush.bf16.msra.mxu0 %v4048
          %4738 = vmatpush.bf16.msra.mxu0 %v4044
          %4739 = vmatpush.bf16.msra.mxu0 %v4040
          %4740 = vmatpush.bf16.msra.mxu0 %v4036
          %4741 = vmatmul.bf16.gmra.mxu0 %v2783
          %v4742 = vpop.f32.mrf.mxu0
          %v4743 = vadd.f32 %v4730, %v4742
          %v4744 = vpop.f32.mrf.mxu0
          %4745 = vdwg.mxu0
          %v4746 = vmax.f32 %v4431, 0.0
          %v4747 = vmax.f32 %v4535, 0.0
          %v4748 = vmax.f32 %v4639, 0.0
          %v4749 = vmax.f32 %v4743, 0.0
          %v4750 = vpack.c.bf16 %v4746, %v4746
          %v4751 = vpack.c.bf16 %v4747, %v4747
          %v4752 = vpack.c.bf16 %v4748, %v4748
          %v4753 = vpack.c.bf16 %v4749, %v4749
          %v4754 = vld [vmem:[#allocation6] sm:$0xff]
          %v4755 = vld [vmem:[#allocation6 + $0x8] sm:$0xff]
          %v4756 = vld [vmem:[#allocation6 + $0x10] sm:$0xff]
          %v4757 = vld [vmem:[#allocation6 + $0x18] sm:$0xff]
          %v4758 = vld [vmem:[#allocation6 + $0x20] sm:$0xff]
          %v4759 = vld [vmem:[#allocation6 + $0x28] sm:$0xff]
          %v4760 = vld [vmem:[#allocation6 + $0x30] sm:$0xff]
          %v4761 = vld [vmem:[#allocation6 + $0x38] sm:$0xff]
          %v4762 = vld [vmem:[#allocation6 + $0x40] sm:$0xff]
          %v4763 = vld [vmem:[#allocation6 + $0x48] sm:$0xff]
          %v4764 = vld [vmem:[#allocation6 + $0x50] sm:$0xff]
          %v4765 = vld [vmem:[#allocation6 + $0x58] sm:$0xff]
          %v4766 = vld [vmem:[#allocation6 + $0x60] sm:$0xff]
          %v4767 = vld [vmem:[#allocation6 + $0x68] sm:$0xff]
          %v4768 = vld [vmem:[#allocation6 + $0x70] sm:$0xff]
          %v4769 = vld [vmem:[#allocation6 + $0x78] sm:$0xff]
          %v4770 = vld [vmem:[#allocation6 + $0x80] sm:$0xff]
          %v4771 = vld [vmem:[#allocation6 + $0x88] sm:$0xff]
          %v4772 = vld [vmem:[#allocation6 + $0x90] sm:$0xff]
          %v4773 = vld [vmem:[#allocation6 + $0x98] sm:$0xff]
          %v4774 = vld [vmem:[#allocation6 + $0xa0] sm:$0xff]
          %v4775 = vld [vmem:[#allocation6 + $0xa8] sm:$0xff]
          %v4776 = vld [vmem:[#allocation6 + $0xb0] sm:$0xff]
          %v4777 = vld [vmem:[#allocation6 + $0xb8] sm:$0xff]
          %v4778 = vld [vmem:[#allocation6 + $0xc0] sm:$0xff]
          %v4779 = vld [vmem:[#allocation6 + $0xc8] sm:$0xff]
          %v4780 = vld [vmem:[#allocation6 + $0xd0] sm:$0xff]
          %v4781 = vld [vmem:[#allocation6 + $0xd8] sm:$0xff]
          %v4782 = vld [vmem:[#allocation6 + $0xe0] sm:$0xff]
          %v4783 = vld [vmem:[#allocation6 + $0xe8] sm:$0xff]
          %v4784 = vld [vmem:[#allocation6 + $0xf0] sm:$0xff]
          %v4785 = vld [vmem:[#allocation6 + $0xf8] sm:$0xff]
          %v4786 = vld [vmem:[#allocation6 + $0x100] sm:$0xff]
          %v4787 = vld [vmem:[#allocation6 + $0x108] sm:$0xff]
          %v4788 = vld [vmem:[#allocation6 + $0x110] sm:$0xff]
          %v4789 = vld [vmem:[#allocation6 + $0x118] sm:$0xff]
          %v4790 = vld [vmem:[#allocation6 + $0x120] sm:$0xff]
          %v4791 = vld [vmem:[#allocation6 + $0x128] sm:$0xff]
          %v4792 = vld [vmem:[#allocation6 + $0x130] sm:$0xff]
          %v4793 = vld [vmem:[#allocation6 + $0x138] sm:$0xff]
          %v4794 = vld [vmem:[#allocation6 + $0x140] sm:$0xff]
          %v4795 = vld [vmem:[#allocation6 + $0x148] sm:$0xff]
          %v4796 = vld [vmem:[#allocation6 + $0x150] sm:$0xff]
          %v4797 = vld [vmem:[#allocation6 + $0x158] sm:$0xff]
          %v4798 = vld [vmem:[#allocation6 + $0x160] sm:$0xff]
          %v4799 = vld [vmem:[#allocation6 + $0x168] sm:$0xff]
          %v4800 = vld [vmem:[#allocation6 + $0x170] sm:$0xff]
          %v4801 = vld [vmem:[#allocation6 + $0x178] sm:$0xff]
          %v4802 = vld [vmem:[#allocation6 + $0x180] sm:$0xff]
          %v4803 = vld [vmem:[#allocation6 + $0x188] sm:$0xff]
          %v4804 = vld [vmem:[#allocation6 + $0x190] sm:$0xff]
          %v4805 = vld [vmem:[#allocation6 + $0x198] sm:$0xff]
          %v4806 = vld [vmem:[#allocation6 + $0x1a0] sm:$0xff]
          %v4807 = vld [vmem:[#allocation6 + $0x1a8] sm:$0xff]
          %v4808 = vld [vmem:[#allocation6 + $0x1b0] sm:$0xff]
          %v4809 = vld [vmem:[#allocation6 + $0x1b8] sm:$0xff]
          %v4810 = vld [vmem:[#allocation6 + $0x1c0] sm:$0xff]
          %v4811 = vld [vmem:[#allocation6 + $0x1c8] sm:$0xff]
          %v4812 = vld [vmem:[#allocation6 + $0x1d0] sm:$0xff]
          %v4813 = vld [vmem:[#allocation6 + $0x1d8] sm:$0xff]
          %v4814 = vld [vmem:[#allocation6 + $0x1e0] sm:$0xff]
          %v4815 = vld [vmem:[#allocation6 + $0x1e8] sm:$0xff]
          %v4816 = vld [vmem:[#allocation6 + $0x1f0] sm:$0xff]
          %v4817 = vld [vmem:[#allocation6 + $0x1f8] sm:$0xff]
          %v4818 = vld [vmem:[%s10] sm:$0x3]
          %v4883 = vunpack.c.l.b16 %v4754
          %v4884 = vunpack.c.h.b16 %v4754
          %v4885 = vunpack.c.l.b16 %v4755
          %v4886 = vunpack.c.h.b16 %v4755
          %v4887 = vunpack.c.l.b16 %v4756
          %v4888 = vunpack.c.h.b16 %v4756
          %v4889 = vunpack.c.l.b16 %v4757
          %v4890 = vunpack.c.h.b16 %v4757
          %v4891 = vunpack.c.l.b16 %v4758
          %v4892 = vunpack.c.h.b16 %v4758
          %v4893 = vunpack.c.l.b16 %v4759
          %v4894 = vunpack.c.h.b16 %v4759
          %v4895 = vunpack.c.l.b16 %v4760
          %v4896 = vunpack.c.h.b16 %v4760
          %v4897 = vunpack.c.l.b16 %v4761
          %v4898 = vunpack.c.h.b16 %v4761
          %v4899 = vunpack.c.l.b16 %v4762
          %v4900 = vunpack.c.h.b16 %v4762
          %v4901 = vunpack.c.l.b16 %v4763
          %v4902 = vunpack.c.h.b16 %v4763
          %v4903 = vunpack.c.l.b16 %v4764
          %v4904 = vunpack.c.h.b16 %v4764
          %v4905 = vunpack.c.l.b16 %v4765
          %v4906 = vunpack.c.h.b16 %v4765
          %v4907 = vunpack.c.l.b16 %v4766
          %v4908 = vunpack.c.h.b16 %v4766
          %v4909 = vunpack.c.l.b16 %v4767
          %v4910 = vunpack.c.h.b16 %v4767
          %v4911 = vunpack.c.l.b16 %v4768
          %v4912 = vunpack.c.h.b16 %v4768
          %v4913 = vunpack.c.l.b16 %v4769
          %v4914 = vunpack.c.h.b16 %v4769
          %v4915 = vunpack.c.l.b16 %v4770
          %v4916 = vunpack.c.h.b16 %v4770
          %v4917 = vunpack.c.l.b16 %v4771
          %v4918 = vunpack.c.h.b16 %v4771
          %v4919 = vunpack.c.l.b16 %v4772
          %v4920 = vunpack.c.h.b16 %v4772
          %v4921 = vunpack.c.l.b16 %v4773
          %v4922 = vunpack.c.h.b16 %v4773
          %v4923 = vunpack.c.l.b16 %v4774
          %v4924 = vunpack.c.h.b16 %v4774
          %v4925 = vunpack.c.l.b16 %v4775
          %v4926 = vunpack.c.h.b16 %v4775
          %v4927 = vunpack.c.l.b16 %v4776
          %v4928 = vunpack.c.h.b16 %v4776
          %v4929 = vunpack.c.l.b16 %v4777
          %v4930 = vunpack.c.h.b16 %v4777
          %v4931 = vunpack.c.l.b16 %v4778
          %v4932 = vunpack.c.h.b16 %v4778
          %v4933 = vunpack.c.l.b16 %v4779
          %v4934 = vunpack.c.h.b16 %v4779
          %v4935 = vunpack.c.l.b16 %v4780
          %v4936 = vunpack.c.h.b16 %v4780
          %v4937 = vunpack.c.l.b16 %v4781
          %v4938 = vunpack.c.h.b16 %v4781
          %v4939 = vunpack.c.l.b16 %v4782
          %v4940 = vunpack.c.h.b16 %v4782
          %v4941 = vunpack.c.l.b16 %v4783
          %v4942 = vunpack.c.h.b16 %v4783
          %v4943 = vunpack.c.l.b16 %v4784
          %v4944 = vunpack.c.h.b16 %v4784
          %v4945 = vunpack.c.l.b16 %v4785
          %v4946 = vunpack.c.h.b16 %v4785
          %v4947 = vunpack.c.l.b16 %v4786
          %v4948 = vunpack.c.h.b16 %v4786
          %v4949 = vunpack.c.l.b16 %v4787
          %v4950 = vunpack.c.h.b16 %v4787
          %v4951 = vunpack.c.l.b16 %v4788
          %v4952 = vunpack.c.h.b16 %v4788
          %v4953 = vunpack.c.l.b16 %v4789
          %v4954 = vunpack.c.h.b16 %v4789
          %v4955 = vunpack.c.l.b16 %v4790
          %v4956 = vunpack.c.h.b16 %v4790
          %v4957 = vunpack.c.l.b16 %v4791
          %v4958 = vunpack.c.h.b16 %v4791
          %v4959 = vunpack.c.l.b16 %v4792
          %v4960 = vunpack.c.h.b16 %v4792
          %v4961 = vunpack.c.l.b16 %v4793
          %v4962 = vunpack.c.h.b16 %v4793
          %v4963 = vunpack.c.l.b16 %v4794
          %v4964 = vunpack.c.h.b16 %v4794
          %v4965 = vunpack.c.l.b16 %v4795
          %v4966 = vunpack.c.h.b16 %v4795
          %v4967 = vunpack.c.l.b16 %v4796
          %v4968 = vunpack.c.h.b16 %v4796
          %v4969 = vunpack.c.l.b16 %v4797
          %v4970 = vunpack.c.h.b16 %v4797
          %v4971 = vunpack.c.l.b16 %v4798
          %v4972 = vunpack.c.h.b16 %v4798
          %v4973 = vunpack.c.l.b16 %v4799
          %v4974 = vunpack.c.h.b16 %v4799
          %v4975 = vunpack.c.l.b16 %v4800
          %v4976 = vunpack.c.h.b16 %v4800
          %v4977 = vunpack.c.l.b16 %v4801
          %v4978 = vunpack.c.h.b16 %v4801
          %v4979 = vunpack.c.l.b16 %v4802
          %v4980 = vunpack.c.h.b16 %v4802
          %v4981 = vunpack.c.l.b16 %v4803
          %v4982 = vunpack.c.h.b16 %v4803
          %v4983 = vunpack.c.l.b16 %v4804
          %v4984 = vunpack.c.h.b16 %v4804
          %v4985 = vunpack.c.l.b16 %v4805
          %v4986 = vunpack.c.h.b16 %v4805
          %v4987 = vunpack.c.l.b16 %v4806
          %v4988 = vunpack.c.h.b16 %v4806
          %v4989 = vunpack.c.l.b16 %v4807
          %v4990 = vunpack.c.h.b16 %v4807
          %v4991 = vunpack.c.l.b16 %v4808
          %v4992 = vunpack.c.h.b16 %v4808
          %v4993 = vunpack.c.l.b16 %v4809
          %v4994 = vunpack.c.h.b16 %v4809
          %v4995 = vunpack.c.l.b16 %v4810
          %v4996 = vunpack.c.h.b16 %v4810
          %v4997 = vunpack.c.l.b16 %v4811
          %v4998 = vunpack.c.h.b16 %v4811
          %v4999 = vunpack.c.l.b16 %v4812
          %v5000 = vunpack.c.h.b16 %v4812
          %v5001 = vunpack.c.l.b16 %v4813
          %v5002 = vunpack.c.h.b16 %v4813
          %v5003 = vunpack.c.l.b16 %v4814
          %v5004 = vunpack.c.h.b16 %v4814
          %v5005 = vunpack.c.l.b16 %v4815
          %v5006 = vunpack.c.h.b16 %v4815
          %v5007 = vunpack.c.l.b16 %v4816
          %v5008 = vunpack.c.h.b16 %v4816
          %v5009 = vunpack.c.l.b16 %v4817
          %v5010 = vunpack.c.h.b16 %v4817
          %v5011 = vpack.c.b16 %v4885, %v4883
          %v5012 = vpack.c.b16 %v4886, %v4884
          %v5013 = vpack.c.b16 %v4889, %v4887
          %v5014 = vpack.c.b16 %v4890, %v4888
          %v5015 = vpack.c.b16 %v4893, %v4891
          %v5016 = vpack.c.b16 %v4894, %v4892
          %v5017 = vpack.c.b16 %v4897, %v4895
          %v5018 = vpack.c.b16 %v4898, %v4896
          %v5019 = vpack.c.b16 %v4901, %v4899
          %v5020 = vpack.c.b16 %v4902, %v4900
          %v5021 = vpack.c.b16 %v4905, %v4903
          %v5022 = vpack.c.b16 %v4906, %v4904
          %v5023 = vpack.c.b16 %v4909, %v4907
          %v5024 = vpack.c.b16 %v4910, %v4908
          %v5025 = vpack.c.b16 %v4913, %v4911
          %v5026 = vpack.c.b16 %v4914, %v4912
          %v5027 = vpack.c.b16 %v4917, %v4915
          %v5028 = vpack.c.b16 %v4918, %v4916
          %v5029 = vpack.c.b16 %v4921, %v4919
          %v5030 = vpack.c.b16 %v4922, %v4920
          %v5031 = vpack.c.b16 %v4925, %v4923
          %v5032 = vpack.c.b16 %v4926, %v4924
          %v5033 = vpack.c.b16 %v4929, %v4927
          %v5034 = vpack.c.b16 %v4930, %v4928
          %v5035 = vpack.c.b16 %v4933, %v4931
          %v5036 = vpack.c.b16 %v4934, %v4932
          %v5037 = vpack.c.b16 %v4937, %v4935
          %v5038 = vpack.c.b16 %v4938, %v4936
          %v5039 = vpack.c.b16 %v4941, %v4939
          %v5040 = vpack.c.b16 %v4942, %v4940
          %v5041 = vpack.c.b16 %v4945, %v4943
          %v5042 = vpack.c.b16 %v4946, %v4944
          %v5043 = vpack.c.b16 %v4949, %v4947
          %v5044 = vpack.c.b16 %v4950, %v4948
          %v5045 = vpack.c.b16 %v4953, %v4951
          %v5046 = vpack.c.b16 %v4954, %v4952
          %v5047 = vpack.c.b16 %v4957, %v4955
          %v5048 = vpack.c.b16 %v4958, %v4956
          %v5049 = vpack.c.b16 %v4961, %v4959
          %v5050 = vpack.c.b16 %v4962, %v4960
          %v5051 = vpack.c.b16 %v4965, %v4963
          %v5052 = vpack.c.b16 %v4966, %v4964
          %v5053 = vpack.c.b16 %v4969, %v4967
          %v5054 = vpack.c.b16 %v4970, %v4968
          %v5055 = vpack.c.b16 %v4973, %v4971
          %v5056 = vpack.c.b16 %v4974, %v4972
          %v5057 = vpack.c.b16 %v4977, %v4975
          %v5058 = vpack.c.b16 %v4978, %v4976
          %v5059 = vpack.c.b16 %v4981, %v4979
          %v5060 = vpack.c.b16 %v4982, %v4980
          %v5061 = vpack.c.b16 %v4985, %v4983
          %v5062 = vpack.c.b16 %v4986, %v4984
          %v5063 = vpack.c.b16 %v4989, %v4987
          %v5064 = vpack.c.b16 %v4990, %v4988
          %v5065 = vpack.c.b16 %v4993, %v4991
          %v5066 = vpack.c.b16 %v4994, %v4992
          %v5067 = vpack.c.b16 %v4997, %v4995
          %v5068 = vpack.c.b16 %v4998, %v4996
          %v5069 = vpack.c.b16 %v5001, %v4999
          %v5070 = vpack.c.b16 %v5002, %v5000
          %v5071 = vpack.c.b16 %v5005, %v5003
          %v5072 = vpack.c.b16 %v5006, %v5004
          %v5073 = vpack.c.b16 %v5009, %v5007
          %v5074 = vpack.c.b16 %v5010, %v5008
          %v5140 = vperm.slane %v4818, 0
          %v5141 = vperm.slane %v4818, 1
          %5144 = vmatpush.bf16.msra.mxu0 %v5025
          %5145 = vmatpush.bf16.msra.mxu0 %v5023
          %5146 = vmatpush.bf16.msra.mxu0 %v5021
          %5147 = vmatpush.bf16.msra.mxu0 %v5019
          %5148 = vmatpush.bf16.msra.mxu0 %v5017
          %5149 = vmatpush.bf16.msra.mxu0 %v5015
          %5150 = vmatpush.bf16.msra.mxu0 %v5013
          %5151 = vmatpush.bf16.msra.mxu0 %v5011
          %5152 = vmatmul.bf16.gmra.mxu0 %v4750
          %v5153 = vpop.f32.mrf.mxu0
          %v5154 = vadd.f32 %v5140, %v5153
          %v5155 = vpop.f32.mrf.mxu0
          %5156 = vdwg.mxu0
          %5157 = vmatpush.bf16.msra.mxu0 %v5041
          %5158 = vmatpush.bf16.msra.mxu0 %v5039
          %5159 = vmatpush.bf16.msra.mxu0 %v5037
          %5160 = vmatpush.bf16.msra.mxu0 %v5035
          %5161 = vmatpush.bf16.msra.mxu0 %v5033
          %5162 = vmatpush.bf16.msra.mxu0 %v5031
          %5163 = vmatpush.bf16.msra.mxu0 %v5029
          %5164 = vmatpush.bf16.msra.mxu0 %v5027
          %5165 = vmatmul.bf16.gmra.mxu0 %v4751
          %v5166 = vpop.f32.mrf.mxu0
          %v5167 = vadd.f32 %v5154, %v5166
          %v5168 = vpop.f32.mrf.mxu0
          %5169 = vdwg.mxu0
          %5170 = vmatpush.bf16.msra.mxu0 %v5057
          %5171 = vmatpush.bf16.msra.mxu0 %v5055
          %5172 = vmatpush.bf16.msra.mxu0 %v5053
          %5173 = vmatpush.bf16.msra.mxu0 %v5051
          %5174 = vmatpush.bf16.msra.mxu0 %v5049
          %5175 = vmatpush.bf16.msra.mxu0 %v5047
          %5176 = vmatpush.bf16.msra.mxu0 %v5045
          %5177 = vmatpush.bf16.msra.mxu0 %v5043
          %5178 = vmatmul.bf16.gmra.mxu0 %v4752
          %v5179 = vpop.f32.mrf.mxu0
          %v5180 = vadd.f32 %v5167, %v5179
          %v5181 = vpop.f32.mrf.mxu0
          %5182 = vdwg.mxu0
          %5183 = vmatpush.bf16.msra.mxu0 %v5073
          %5184 = vmatpush.bf16.msra.mxu0 %v5071
          %5185 = vmatpush.bf16.msra.mxu0 %v5069
          %5186 = vmatpush.bf16.msra.mxu0 %v5067
          %5187 = vmatpush.bf16.msra.mxu0 %v5065
          %5188 = vmatpush.bf16.msra.mxu0 %v5063
          %5189 = vmatpush.bf16.msra.mxu0 %v5061
          %5190 = vmatpush.bf16.msra.mxu0 %v5059
          %5191 = vmatmul.bf16.gmra.mxu0 %v4753
          %v5192 = vpop.f32.mrf.mxu0
          %v5193 = vadd.f32 %v5180, %v5192
          %v5194 = vpop.f32.mrf.mxu0
          %5195 = vdwg.mxu0
          %5196 = vmatpush.bf16.msra.mxu0 %v5026
          %5197 = vmatpush.bf16.msra.mxu0 %v5024
          %5198 = vmatpush.bf16.msra.mxu0 %v5022
          %5199 = vmatpush.bf16.msra.mxu0 %v5020
          %5200 = vmatpush.bf16.msra.mxu0 %v5018
          %5201 = vmatpush.bf16.msra.mxu0 %v5016
          %5202 = vmatpush.bf16.msra.mxu0 %v5014
          %5203 = vmatpush.bf16.msra.mxu0 %v5012
          %5204 = vmatmul.bf16.gmra.mxu0 %v4750
          %v5205 = vpop.f32.mrf.mxu0
          %v5206 = vadd.f32 %v5141, %v5205
          %v5207 = vpop.f32.mrf.mxu0
          %5208 = vdwg.mxu0
          %5209 = vmatpush.bf16.msra.mxu0 %v5042
          %5210 = vmatpush.bf16.msra.mxu0 %v5040
          %5211 = vmatpush.bf16.msra.mxu0 %v5038
          %5212 = vmatpush.bf16.msra.mxu0 %v5036
          %5213 = vmatpush.bf16.msra.mxu0 %v5034
          %5214 = vmatpush.bf16.msra.mxu0 %v5032
          %5215 = vmatpush.bf16.msra.mxu0 %v5030
          %5216 = vmatpush.bf16.msra.mxu0 %v5028
          %5217 = vmatmul.bf16.gmra.mxu0 %v4751
          %v5218 = vpop.f32.mrf.mxu0
          %v5219 = vadd.f32 %v5206, %v5218
          %v5220 = vpop.f32.mrf.mxu0
          %5221 = vdwg.mxu0
          %5222 = vmatpush.bf16.msra.mxu0 %v5058
          %5223 = vmatpush.bf16.msra.mxu0 %v5056
          %5224 = vmatpush.bf16.msra.mxu0 %v5054
          %5225 = vmatpush.bf16.msra.mxu0 %v5052
          %5226 = vmatpush.bf16.msra.mxu0 %v5050
          %5227 = vmatpush.bf16.msra.mxu0 %v5048
          %5228 = vmatpush.bf16.msra.mxu0 %v5046
          %5229 = vmatpush.bf16.msra.mxu0 %v5044
          %5230 = vmatmul.bf16.gmra.mxu0 %v4752
          %v5231 = vpop.f32.mrf.mxu0
          %v5232 = vadd.f32 %v5219, %v5231
          %v5233 = vpop.f32.mrf.mxu0
          %5234 = vdwg.mxu0
          %5235 = vmatpush.bf16.msra.mxu0 %v5074
          %5236 = vmatpush.bf16.msra.mxu0 %v5072
          %5237 = vmatpush.bf16.msra.mxu0 %v5070
          %5238 = vmatpush.bf16.msra.mxu0 %v5068
          %5239 = vmatpush.bf16.msra.mxu0 %v5066
          %5240 = vmatpush.bf16.msra.mxu0 %v5064
          %5241 = vmatpush.bf16.msra.mxu0 %v5062
          %5242 = vmatpush.bf16.msra.mxu0 %v5060
          %5243 = vmatmul.bf16.gmra.mxu0 %v4753
          %v5244 = vpop.f32.mrf.mxu0
          %v5245 = vadd.f32 %v5232, %v5244
          %v5246 = vpop.f32.mrf.mxu0
          %5247 = vdwg.mxu0
          %v5248 = vmax.f32 %v5193, 0.0
          %v5249 = vmax.f32 %v5245, 0.0
          %v5250 = vpack.c.bf16 %v5248, %v5248
          %v5251 = vpack.c.bf16 %v5249, %v5249
          %v5252 = vld [vmem:[#allocation8] sm:$0xff]
          %v5253 = vld [vmem:[#allocation8 + $0x8] sm:$0xff]
          %v5254 = vld [vmem:[#allocation8 + $0x10] sm:$0xff]
          %v5255 = vld [vmem:[#allocation8 + $0x18] sm:$0xff]
          %v5256 = vld [vmem:[#allocation8 + $0x20] sm:$0xff]
          %v5257 = vld [vmem:[#allocation8 + $0x28] sm:$0xff]
          %v5258 = vld [vmem:[#allocation8 + $0x30] sm:$0xff]
          %v5259 = vld [vmem:[#allocation8 + $0x38] sm:$0xff]
          %v5260 = vld [vmem:[#allocation8 + $0x40] sm:$0xff]
          %v5261 = vld [vmem:[#allocation8 + $0x48] sm:$0xff]
          %v5262 = vld [vmem:[#allocation8 + $0x50] sm:$0xff]
          %v5263 = vld [vmem:[#allocation8 + $0x58] sm:$0xff]
          %v5264 = vld [vmem:[#allocation8 + $0x60] sm:$0xff]
          %v5265 = vld [vmem:[#allocation8 + $0x68] sm:$0xff]
          %v5266 = vld [vmem:[#allocation8 + $0x70] sm:$0xff]
          %v5267 = vld [vmem:[#allocation8 + $0x78] sm:$0xff]
          %v5268 = vld [vmem:[#allocation8 + $0x80] sm:$0xff]
          %v5269 = vld [vmem:[#allocation8 + $0x88] sm:$0xff]
          %v5270 = vld [vmem:[#allocation8 + $0x90] sm:$0xff]
          %v5271 = vld [vmem:[#allocation8 + $0x98] sm:$0xff]
          %v5272 = vld [vmem:[#allocation8 + $0xa0] sm:$0xff]
          %v5273 = vld [vmem:[#allocation8 + $0xa8] sm:$0xff]
          %v5274 = vld [vmem:[#allocation8 + $0xb0] sm:$0xff]
          %v5275 = vld [vmem:[#allocation8 + $0xb8] sm:$0xff]
          %v5276 = vld [vmem:[#allocation8 + $0xc0] sm:$0xff]
          %v5277 = vld [vmem:[#allocation8 + $0xc8] sm:$0xff]
          %v5278 = vld [vmem:[#allocation8 + $0xd0] sm:$0xff]
          %v5279 = vld [vmem:[#allocation8 + $0xd8] sm:$0xff]
          %v5280 = vld [vmem:[#allocation8 + $0xe0] sm:$0xff]
          %v5281 = vld [vmem:[#allocation8 + $0xe8] sm:$0xff]
          %v5282 = vld [vmem:[#allocation8 + $0xf0] sm:$0xff]
          %v5283 = vld [vmem:[#allocation8 + $0xf8] sm:$0xff]
          %v5284 = vld [vmem:[%s12] sm:$0x3]
          %v5317 = vunpack.c.l.b16 %v5252
          %v5318 = vunpack.c.h.b16 %v5252
          %v5319 = vunpack.c.l.b16 %v5253
          %v5320 = vunpack.c.h.b16 %v5253
          %v5321 = vunpack.c.l.b16 %v5254
          %v5322 = vunpack.c.h.b16 %v5254
          %v5323 = vunpack.c.l.b16 %v5255
          %v5324 = vunpack.c.h.b16 %v5255
          %v5325 = vunpack.c.l.b16 %v5256
          %v5326 = vunpack.c.h.b16 %v5256
          %v5327 = vunpack.c.l.b16 %v5257
          %v5328 = vunpack.c.h.b16 %v5257
          %v5329 = vunpack.c.l.b16 %v5258
          %v5330 = vunpack.c.h.b16 %v5258
          %v5331 = vunpack.c.l.b16 %v5259
          %v5332 = vunpack.c.h.b16 %v5259
          %v5333 = vunpack.c.l.b16 %v5260
          %v5334 = vunpack.c.h.b16 %v5260
          %v5335 = vunpack.c.l.b16 %v5261
          %v5336 = vunpack.c.h.b16 %v5261
          %v5337 = vunpack.c.l.b16 %v5262
          %v5338 = vunpack.c.h.b16 %v5262
          %v5339 = vunpack.c.l.b16 %v5263
          %v5340 = vunpack.c.h.b16 %v5263
          %v5341 = vunpack.c.l.b16 %v5264
          %v5342 = vunpack.c.h.b16 %v5264
          %v5343 = vunpack.c.l.b16 %v5265
          %v5344 = vunpack.c.h.b16 %v5265
          %v5345 = vunpack.c.l.b16 %v5266
          %v5346 = vunpack.c.h.b16 %v5266
          %v5347 = vunpack.c.l.b16 %v5267
          %v5348 = vunpack.c.h.b16 %v5267
          %v5349 = vunpack.c.l.b16 %v5268
          %v5350 = vunpack.c.h.b16 %v5268
          %v5351 = vunpack.c.l.b16 %v5269
          %v5352 = vunpack.c.h.b16 %v5269
          %v5353 = vunpack.c.l.b16 %v5270
          %v5354 = vunpack.c.h.b16 %v5270
          %v5355 = vunpack.c.l.b16 %v5271
          %v5356 = vunpack.c.h.b16 %v5271
          %v5357 = vunpack.c.l.b16 %v5272
          %v5358 = vunpack.c.h.b16 %v5272
          %v5359 = vunpack.c.l.b16 %v5273
          %v5360 = vunpack.c.h.b16 %v5273
          %v5361 = vunpack.c.l.b16 %v5274
          %v5362 = vunpack.c.h.b16 %v5274
          %v5363 = vunpack.c.l.b16 %v5275
          %v5364 = vunpack.c.h.b16 %v5275
          %v5365 = vunpack.c.l.b16 %v5276
          %v5366 = vunpack.c.h.b16 %v5276
          %v5367 = vunpack.c.l.b16 %v5277
          %v5368 = vunpack.c.h.b16 %v5277
          %v5369 = vunpack.c.l.b16 %v5278
          %v5370 = vunpack.c.h.b16 %v5278
          %v5371 = vunpack.c.l.b16 %v5279
          %v5372 = vunpack.c.h.b16 %v5279
          %v5373 = vunpack.c.l.b16 %v5280
          %v5374 = vunpack.c.h.b16 %v5280
          %v5375 = vunpack.c.l.b16 %v5281
          %v5376 = vunpack.c.h.b16 %v5281
          %v5377 = vunpack.c.l.b16 %v5282
          %v5378 = vunpack.c.h.b16 %v5282
          %v5379 = vunpack.c.l.b16 %v5283
          %v5380 = vunpack.c.h.b16 %v5283
          %v5381 = vpack.c.b16 %v5319, %v5317
          %v5382 = vpack.c.b16 %v5320, %v5318
          %v5383 = vpack.c.b16 %v5323, %v5321
          %v5384 = vpack.c.b16 %v5324, %v5322
          %v5385 = vpack.c.b16 %v5327, %v5325
          %v5386 = vpack.c.b16 %v5328, %v5326
          %v5387 = vpack.c.b16 %v5331, %v5329
          %v5388 = vpack.c.b16 %v5332, %v5330
          %v5389 = vpack.c.b16 %v5335, %v5333
          %v5390 = vpack.c.b16 %v5336, %v5334
          %v5391 = vpack.c.b16 %v5339, %v5337
          %v5392 = vpack.c.b16 %v5340, %v5338
          %v5393 = vpack.c.b16 %v5343, %v5341
          %v5394 = vpack.c.b16 %v5344, %v5342
          %v5395 = vpack.c.b16 %v5347, %v5345
          %v5396 = vpack.c.b16 %v5348, %v5346
          %v5397 = vpack.c.b16 %v5351, %v5349
          %v5398 = vpack.c.b16 %v5352, %v5350
          %v5399 = vpack.c.b16 %v5355, %v5353
          %v5400 = vpack.c.b16 %v5356, %v5354
          %v5401 = vpack.c.b16 %v5359, %v5357
          %v5402 = vpack.c.b16 %v5360, %v5358
          %v5403 = vpack.c.b16 %v5363, %v5361
          %v5404 = vpack.c.b16 %v5364, %v5362
          %v5405 = vpack.c.b16 %v5367, %v5365
          %v5406 = vpack.c.b16 %v5368, %v5366
          %v5407 = vpack.c.b16 %v5371, %v5369
          %v5408 = vpack.c.b16 %v5372, %v5370
          %v5409 = vpack.c.b16 %v5375, %v5373
          %v5410 = vpack.c.b16 %v5376, %v5374
          %v5411 = vpack.c.b16 %v5379, %v5377
          %v5412 = vpack.c.b16 %v5380, %v5378
          %v5446 = vperm.slane %v5284, 0
          %v5447 = vperm.slane %v5284, 1
          %5450 = vmatpush.bf16.msra.mxu0 %v5395
          %5451 = vmatpush.bf16.msra.mxu0 %v5393
          %5452 = vmatpush.bf16.msra.mxu0 %v5391
          %5453 = vmatpush.bf16.msra.mxu0 %v5389
          %5454 = vmatpush.bf16.msra.mxu0 %v5387
          %5455 = vmatpush.bf16.msra.mxu0 %v5385
          %5456 = vmatpush.bf16.msra.mxu0 %v5383
          %5457 = vmatpush.bf16.msra.mxu0 %v5381
          %5458 = vmatmul.bf16.gmra.mxu0 %v5250
          %v5459 = vpop.f32.mrf.mxu0
          %v5460 = vadd.f32 %v5446, %v5459
          %v5461 = vpop.f32.mrf.mxu0
          %5462 = vdwg.mxu0
          %5463 = vmatpush.bf16.msra.mxu0 %v5411
          %5464 = vmatpush.bf16.msra.mxu0 %v5409
          %5465 = vmatpush.bf16.msra.mxu0 %v5407
          %5466 = vmatpush.bf16.msra.mxu0 %v5405
          %5467 = vmatpush.bf16.msra.mxu0 %v5403
          %5468 = vmatpush.bf16.msra.mxu0 %v5401
          %5469 = vmatpush.bf16.msra.mxu0 %v5399
          %5470 = vmatpush.bf16.msra.mxu0 %v5397
          %5471 = vmatmul.bf16.gmra.mxu0 %v5251
          %v5472 = vpop.f32.mrf.mxu0
          %v5473 = vadd.f32 %v5460, %v5472
          %v5474 = vpop.f32.mrf.mxu0
          %5475 = vdwg.mxu0
          %5476 = vmatpush.bf16.msra.mxu0 %v5396
          %5477 = vmatpush.bf16.msra.mxu0 %v5394
          %5478 = vmatpush.bf16.msra.mxu0 %v5392
          %5479 = vmatpush.bf16.msra.mxu0 %v5390
          %5480 = vmatpush.bf16.msra.mxu0 %v5388
          %5481 = vmatpush.bf16.msra.mxu0 %v5386
          %5482 = vmatpush.bf16.msra.mxu0 %v5384
          %5483 = vmatpush.bf16.msra.mxu0 %v5382
          %5484 = vmatmul.bf16.gmra.mxu0 %v5250
          %v5485 = vpop.f32.mrf.mxu0
          %v5486 = vadd.f32 %v5447, %v5485
          %v5487 = vpop.f32.mrf.mxu0
          %5488 = vdwg.mxu0
          %5489 = vmatpush.bf16.msra.mxu0 %v5412
          %5490 = vmatpush.bf16.msra.mxu0 %v5410
          %5491 = vmatpush.bf16.msra.mxu0 %v5408
          %5492 = vmatpush.bf16.msra.mxu0 %v5406
          %5493 = vmatpush.bf16.msra.mxu0 %v5404
          %5494 = vmatpush.bf16.msra.mxu0 %v5402
          %5495 = vmatpush.bf16.msra.mxu0 %v5400
          %5496 = vmatpush.bf16.msra.mxu0 %v5398
          %5497 = vmatmul.bf16.gmra.mxu0 %v5251
          %v5498 = vpop.f32.mrf.mxu0
          %v5499 = vadd.f32 %v5486, %v5498
          %v5500 = vpop.f32.mrf.mxu0
          %5501 = vdwg.mxu0
          %v5502 = vlaneseq
          %v5503 = vand.u32 %v5502, 127
          %v5504 = vadd.s32 %v5503, 128
          %vm5505 = vcmp.lt.s32.totalorder %v5503, 0
          %v5506 = vsub.s32 0, %v5503
          %v5507 = vsel %vm5505, %v5506, %v5503
          %v5508 = vand.u32 %v5507, 65535
          %v5509 = vshrl.u32 %v5507, 16
          %v5511 = vmul.u32 %v5508, 61681
          %v5512 = vmul.u32 %v5508, 61680
          %v5513 = vmul.u32 %v5509, 61681
          %v5514 = vmul.u32 %v5509, 61680
          %v5515 = vshll.u32 %v5512, 16
          %v5516 = vshrl.u32 %v5512, 16
          %v5517 = vshll.u32 %v5513, 16
          %v5518 = vshrl.u32 %v5513, 16
          %vm5519 = vc.u32 %v5511, %v5515
          %v5520 = vsel %vm5519, 1, 0
          %v5521 = vadd.s32 %v5511, %v5515
          %v5522 = vadd.s32 %v5514, %v5520
          %vm5523 = vc.u32 %v5521, %v5517
          %v5524 = vsel %vm5523, 1, 0
          %v5525 = vadd.s32 %v5521, %v5517
          %v5526 = vadd.s32 %v5522, %v5524
          %v5527 = vadd.s32 %v5526, %v5516
          %v5528 = vadd.s32 %v5527, %v5518
          %v5529 = vshrl.u32 %v5528, 4
          %v5530 = vmul.u32 %v5529, 17
          %v5531 = vsub.s32 %v5507, %v5530
          %v5532 = vsub.s32 0, %v5531
          %v5533 = vsel %vm5505, %v5532, %v5531
          %vm5534 = vcmp.lt.s32.totalorder %v5504, 0
          %v5535 = vsub.s32 0, %v5504
          %v5536 = vsel %vm5534, %v5535, %v5504
          %v5537 = vand.u32 %v5536, 65535
          %v5538 = vshrl.u32 %v5536, 16
          %v5540 = vmul.u32 %v5537, 61681
          %v5541 = vmul.u32 %v5537, 61680
          %v5542 = vmul.u32 %v5538, 61681
          %v5543 = vmul.u32 %v5538, 61680
          %v5544 = vshll.u32 %v5541, 16
          %v5545 = vshrl.u32 %v5541, 16
          %v5546 = vshll.u32 %v5542, 16
          %v5547 = vshrl.u32 %v5542, 16
          %vm5548 = vc.u32 %v5540, %v5544
          %v5549 = vsel %vm5548, 1, 0
          %v5550 = vadd.s32 %v5540, %v5544
          %v5551 = vadd.s32 %v5543, %v5549
          %vm5552 = vc.u32 %v5550, %v5546
          %v5553 = vsel %vm5552, 1, 0
          %v5554 = vadd.s32 %v5550, %v5546
          %v5555 = vadd.s32 %v5551, %v5553
          %v5556 = vadd.s32 %v5555, %v5545
          %v5557 = vadd.s32 %v5556, %v5547
          %v5558 = vshrl.u32 %v5557, 4
          %v5559 = vmul.u32 %v5558, 17
          %v5560 = vsub.s32 %v5536, %v5559
          %v5561 = vsub.s32 0, %v5560
          %v5562 = vsel %vm5534, %v5561, %v5560
          %vm5563 = vcmp.ne.s32.totalorder %v5533, 0
          %vm5564 = vcmp.ne.s32.totalorder %v5562, 0
          %vm5565 = vcmp.lt.s32.totalorder %v5533, 0
          %vm5566 = vcmp.lt.s32.totalorder %v5562, 0
          %vm5567 = vmand %vm5565, %vm5563
          %vm5568 = vmand %vm5566, %vm5564
          %v5569 = vadd.s32 %v5533, 17
          %v5570 = vadd.s32 %v5562, 17
          %v5571 = vsel %vm5567, %v5569, %v5533
          %v5572 = vsel %vm5568, %v5570, %v5562
          %vm5573 = vcmp.eq.s32.totalorder %v5571, 0
          %vm5574 = vcmp.eq.s32.totalorder %v5572, 0
          %v5575 = vsel %vm5573, 1.0, 0.0
          %v5576 = vsel %vm5574, 1.0, 0.0
          %v5577 = vadd.f32 %v5473, %v5575
          %v5578 = vadd.f32 %v5499, %v5576
          %v5581 = vrot.slane %v5578, 7
          %v5582 = vsel %vm2737, %v5577, %v5581
          %v5584 = vlaneseq
          %vm5585 = vcmp.ge.s32.totalorder %v5584, 0
          %vm5586 = vcmp.lt.s32.totalorder %v5584, 256
          %vm5587 = vmand %vm5585, %vm5586
          %5588 = vst.msk [vmem:[%s506] sm:$0x3] %vm5587, %v5582
        $region92: #{tpu_custom_call.1} parent=71 // pred_fallthru
          _
        %s5589 = sand.u32 %s329, 1
        %s5590 = scalar_lea.sflag [#allocation5], %s5589
        %s5591 = sand.u32 %s329, 1
        %s5592 = smul.addr %s5591, 2
        %s5593 = scalar_lea.vmem [#allocation9], %s5592
        // Predicated region
        $region93: #{tpu_custom_call.1} parent=71 // pred_check
          %p5594 = pneg %p339
        $region94: #{tpu_custom_call.1} parent=71 // pred_check_branch
          %5596 = sbr.rel (%p5594) target = $region96
        $region95: #{tpu_custom_call.1} parent=71 // pred_region
          %5598 = vsyncadd %s5590, 0
          %s5599 = smul.addr %s33, 2
          %s5600 = scalar_lea.hbm %s13, %s5599
          %s5602 = sshll.u32 %s5593, 4
          %s5603 = int_to_ptr.vmem [resolvable:$true] %s5602
          %s5604 = sshll.u32 %s5600, 4
          %s5605 = int_to_ptr.hbm [resolvable:$true] %s5604
          %5607 = dma.vmem_to_hbm [thread:$0]  %s5603, 32, %s5605, %s5590
        $region96: #{tpu_custom_call.1} parent=71 // pred_fallthru
          _
      $region72: #{tpu_custom_call.1} parent=5 // pred_fallthru
        _
      %p5608 = scmp.le.s32.totalorder 2, %s24
      // Predicated region
      $region97: #{tpu_custom_call.1} parent=5 // pred_check
        %p5609 = pneg %p5608
      $region98: #{tpu_custom_call.1} parent=5 // pred_check_branch
        %5611 = sbr.rel (%p5609) target = $region100
      $region99: #{tpu_custom_call.1} parent=5 // pred_region
        %s5612 = ssub.s32 %s24, 2
        // Predicated region
        $region101: #{tpu_custom_call.1} parent=99 // pred_check
          %p5613 = pneg %p345
        $region102: #{tpu_custom_call.1} parent=99 // pred_check_branch
          %5615 = sbr.rel (%p5613) target = $region104
        $region103: #{tpu_custom_call.1} parent=99 // pred_region
          %s5616 = sand.u32 %s330, 1
          %s5617 = scalar_lea.sflag [#allocation5], %s5616
          %s5618 = sand.u32 %s330, 1
          %s5619 = smul.addr %s5618, 2
          %s5620 = scalar_lea.vmem [#allocation9], %s5619
          %5622 = dma.done %s5617, 32
        $region104: #{tpu_custom_call.1} parent=99 // pred_fallthru
          _
      $region100: #{tpu_custom_call.1} parent=5 // pred_fallthru
        _
    $region6: #{tpu_custom_call.1} parent=1 // loop_footer
      %s28 = sadd.s32 1, %s24
    $region7: #{tpu_custom_call.1} parent=1 // loop_footer_branch
      %23 = sbr.rel target = $region3
    $region8: #{tpu_custom_call.1} parent=1 // loop_exit
      _
    %5623 = vsyncpa [#allocation4], 1
    %s5624 = scalar_lea.sflag [#allocation4], 1
    %5625 = vsyncpa %s5624, 1
    %5626 = vsyncpa [#allocation7], 1
    %5627 = vsyncpa [#allocation5], 1
    %s5628 = scalar_lea.sflag [#allocation5], 1
    %5629 = vsyncpa %s5628, 1

</llo_original>
